<compile_context>
chip_gen: v5e
topology: v5e:2x2
jax: 0.10.0
libtpu: 0.0.40
codegen_flags: <defaults>
</compile_context>

<pallas_src>
import jax
import jax.numpy as jnp
import numpy as np
from jax.experimental import pallas as pl
from jax.experimental.pallas import tpu as pltpu

EPS = 1e-5
LANES = 128


def _round_up(x, m):
    return ((x + m - 1) // m) * m


def _bytes(shape, dtype):
    return int(np.prod(shape)) * np.dtype(dtype).itemsize


def _vmem_limit(block_bytes):
    # double-buffered pipeline + slack, capped at 48 MiB so it leaves headroom on
    # v7x's 64 MiB VMEM (v5e/v6e have 128 MiB).
    return int(min(48 << 20, max(16 << 20, 2 * block_bytes + (4 << 20))))


def _row_tile(M, C, bytes_per_elem, budget_bytes):
    """Row tile: multiple of 8 sublanes, >=2 grid steps when possible, VMEM-bounded."""
    budget_rows = max(8, budget_bytes // max(1, C * bytes_per_elem))
    tm = min(M, budget_rows, max(8, M // 2))
    return max(8, (tm // 8) * 8)


# ----------------------------- BN + ReLU kernel ----------------------------- #

def _bn_relu_kernel(x_ref, s_ref, b_ref, o_ref):
    # y = max(x * scale + shift, 0); math in f32 (v5e VPU has no bf16), store bf16
    y = x_ref[...].astype(jnp.float32) * s_ref[...] + b_ref[...]
    o_ref[...] = jnp.maximum(y, 0.0).astype(o_ref.dtype)


def bn_relu_rows(x_rows, scale, shift, out_dtype=jnp.bfloat16):
    """Per-channel affine + ReLU on (rows, C); C is a multiple of 128 (lane-dense)."""
    M, C = x_rows.shape
    tm = _row_tile(M, C, 8, 8 << 20)
    Mp = _round_up(M, tm)
    if Mp != M:
        x_rows = jnp.pad(x_rows, ((0, Mp - M), (0, 0)))
    blk = (_bytes((tm, C), x_rows.dtype) + _bytes((tm, C), out_dtype)
           + 2 * _bytes((1, C), jnp.float32))
    out = pl.pallas_call(
        _bn_relu_kernel,
        out_shape=jax.ShapeDtypeStruct((Mp, C), out_dtype),
        grid=(Mp // tm,),
        in_specs=[
            pl.BlockSpec((tm, C), lambda i: (i, 0)),
            pl.BlockSpec((1, C), lambda i: (0, 0)),
            pl.BlockSpec((1, C), lambda i: (0, 0)),
        ],
        out_specs=pl.BlockSpec((tm, C), lambda i: (i, 0)),
        compiler_params=pltpu.CompilerParams(
            dimension_semantics=("parallel",),
            vmem_limit_bytes=_vmem_limit(blk)),
    )(x_rows, scale, shift)
    return out[:M]


# ------------------------- 1x1 conv (row matmul) kernel ---------------------- #

def _pointwise_conv_kernel(x_ref, w_ref, b_ref, o_ref):
    y = jnp.dot(x_ref[...], w_ref[...], preferred_element_type=jnp.float32)
    o_ref[...] = (y + b_ref[...]).astype(o_ref.dtype)


def pointwise_conv(x_nhwc, w_oihw, b, stride, out_dtype=jnp.float32):
    """1x1 conv with bias.  Stride handled by a strided slice in the wrapper
    (layout glue) so the kernel is a plain lane-dense row-tiled matmul."""
    N, H, W, Cp = x_nhwc.shape
    Cout, Cin, KH, KW = w_oihw.shape
    assert KH == 1 and KW == 1 and Cp % LANES == 0 and Cin <= Cp
    Coutp = _round_up(Cout, LANES)
    if stride > 1:
        x_nhwc = x_nhwc[:, ::stride, ::stride, :]
    Ho, Wo = x_nhwc.shape[1], x_nhwc.shape[2]
    M = N * Ho * Wo
    x_rows = x_nhwc.reshape(M, Cp).astype(jnp.bfloat16)

    w = jnp.transpose(w_oihw[:, :, 0, 0], (1, 0))                     # (Cin, Cout)
    w = jnp.pad(w, ((0, Cp - Cin), (0, Coutp - Cout))).astype(jnp.bfloat16)
    bias = jnp.pad(b, (0, Coutp - Cout)).reshape(1, Coutp).astype(jnp.float32)

    tm = _row_tile(M, Cp, 2, 4 << 20)
    Mp = _round_up(M, tm)
    if Mp != M:
        x_rows = jnp.pad(x_rows, ((0, Mp - M), (0, 0)))
    blk = (_bytes((tm, Cp), jnp.bfloat16) + _bytes((Cp, Coutp), jnp.bfloat16)
           + _bytes((tm, Coutp), out_dtype) + _bytes((1, Coutp), jnp.float32))
    out = pl.pallas_call(
        _pointwise_conv_kernel,
        out_shape=jax.ShapeDtypeStruct((Mp, Coutp), out_dtype),
        grid=(Mp // tm,),
        in_specs=[
            pl.BlockSpec((tm, Cp), lambda i: (i, 0)),
            pl.BlockSpec((Cp, Coutp), lambda i: (0, 0)),
            pl.BlockSpec((1, Coutp), lambda i: (0, 0)),
        ],
        out_specs=pl.BlockSpec((tm, Coutp), lambda i: (i, 0)),
        compiler_params=pltpu.CompilerParams(
            dimension_semantics=("parallel",),
            vmem_limit_bytes=_vmem_limit(blk)),
    )(x_rows, w, bias)
    return out[:M].reshape(N, Ho, Wo, Coutp)


# ------------------------ tap-decomposed 3x3 conv kernel --------------------- #

def _make_conv_kernel(tap_starts, L, Wq, Ho, Wo, fuse_bn_relu, has_residual):
    """Conv as KH*KW 2-D tap matmuls over full-width row windows of one image.

    The input block is the whole prepared image (flattened rows, Cp lanes); each
    tap reads rows [start, start+L) (unit stride, static offsets) and accumulates
    an (L, Coutp) f32 value on the MXU.  The wanted output pixel (ho, wo) lives at
    accumulator row ho*Wq + wo (identical offsets for every tap); the few extra
    rows (Wq vs Wo) are wasted MXU work (<~20%) but avoid any in-kernel reshape
    or strided load.  The epilogue (bias / residual / BN+ReLU) is fused per row.
    """
    def kernel(*refs):
        x_ref, w_ref, b_ref = refs[0], refs[1], refs[2]
        i = 3
        if fuse_bn_relu:
            s_ref, t_ref = refs[i], refs[i + 1]
            i += 2
        if has_residual:
            r_ref = refs[i]
            i += 1
        o_ref = refs[i]

        coutp = o_ref.shape[-1]
        # bias folded into the accumulator init (saves a per-row add in the epilogue)
        acc = jnp.broadcast_to(b_ref[...].astype(jnp.float32), (L, coutp))
        # static unrolled tap loop: one MXU matmul per (kh, kw) tap, f32 accumulate
        for ti, start in enumerate(tap_starts):
            a = x_ref[0, start:start + L, :]                        # (L, Cp) bf16
            acc = acc + jnp.dot(a, w_ref[ti],
                                preferred_element_type=jnp.float32)

        # fused epilogue, one lane-dense (Wo, Coutp) row-block at a time
        if fuse_bn_relu:
            scale = s_ref[...]
            shift = t_ref[...]
        for ho in range(Ho):
            y = acc[ho * Wq: ho * Wq + Wo, :]
            if has_residual:
                y = y + r_ref[0, ho, :, :].astype(jnp.float32)      # + shortcut
            if fuse_bn_relu:
                y = jnp.maximum(y * scale + shift, 0.0)             # BN2 + ReLU
            o_ref[0, ho, :, :] = y.astype(o_ref.dtype)
    return kernel


def _prep_conv_input(x_nhwc, ksize, stride, padding):
    """Pad (and space-to-depth for stride 2) so every conv tap is a unit-stride
    window of a single per-image block.

    Returns (x_prep (N, R, Wq, C), taps [(tap_idx, row0, col0)], (Ho, Wo))."""
    N, H, W, C = x_nhwc.shape
    Ho = (H + 2 * padding - ksize) // stride + 1
    Wo = (W + 2 * padding - ksize) // stride + 1
    xp = jnp.pad(x_nhwc, ((0, 0), (padding, padding), (padding, padding), (0, 0)))
    if stride == 1:
        taps = [(kh * ksize + kw, kh, kw) for kh in range(ksize) for kw in range(ksize)]
        return xp, taps, (Ho, Wo)
    assert stride == 2, "only stride 1 / 2 supported"
    Hp, Wp = xp.shape[1], xp.shape[2]
    Hh = max(-(-Hp // 2), (ksize - 1) // 2 + Ho)
    Wh = max(-(-Wp // 2), (ksize - 1) // 2 + Wo)
    xp = jnp.pad(xp, ((0, 0), (0, 2 * Hh - Hp), (0, 2 * Wh - Wp), (0, 0)))
    # space-to-depth: 4 parity planes stacked along rows -> unit-stride tap windows
    xs = xp.reshape(N, Hh, 2, Wh, 2, C).transpose(0, 2, 4, 1, 3, 5)
    xs = xs.reshape(N, 4 * Hh, Wh, C)
    taps = []
    for kh in range(ksize):
        for kw in range(ksize):
            g = (kh % 2) * 2 + (kw % 2)
            taps.append((kh * ksize + kw, g * Hh + kh // 2, kw // 2))
    return xs, taps, (Ho, Wo)


def conv2d_block(x_nhwc, w_oihw, b, stride, padding, *,
                 bn_scale=None, bn_shift=None, residual=None,
                 out_dtype=jnp.float32):
    """Conv2d (PyTorch OIHW weights + bias) on channel-padded NHWC input.

    Optional fused epilogues: BN affine + ReLU (bn_scale/bn_shift, shape (1, Coutp))
    and/or residual add (residual, shape (N, Ho, Wo, Coutp)).
    Output: (N, Ho, Wo, Coutp) with Coutp = round_up(Cout, 128)."""
    N, H, W, Cp = x_nhwc.shape
    Cout, Cin, KH, KW = w_oihw.shape
    assert KH == KW and Cp % LANES == 0 and Cin <= Cp
    Coutp = _round_up(Cout, LANES)

    xq, taps, (Ho, Wo) = _prep_conv_input(x_nhwc, KH, stride, padding)
    _, R, Wq, _ = xq.shape
    xflat = xq.reshape(N, R * Wq, Cp).astype(jnp.bfloat16)   # free reshape (row-major)
    L = (Ho - 1) * Wq + Wo
    KK = KH * KW
    tap_starts = [0] * KK
    for (ti, r0, c0) in taps:
        assert r0 + Ho <= R and c0 + Wo <= Wq
        tap_starts[ti] = r0 * Wq + c0

    # weights -> (KK, Cp, Coutp) bf16, zero-padded channels (f32 MXU accumulation)
    w = jnp.transpose(w_oihw, (2, 3, 1, 0)).reshape(KK, Cin, Cout)
    w = jnp.pad(w, ((0, 0), (0, Cp - Cin), (0, Coutp - Cout))).astype(jnp.bfloat16)
    bias = jnp.pad(b, (0, Coutp - Cout)).reshape(1, Coutp).astype(jnp.float32)

    fuse_bn = bn_scale is not None
    has_res = residual is not None

    in_specs = [
        pl.BlockSpec((1, R * Wq, Cp), lambda n: (n, 0, 0)),     # whole image per step
        pl.BlockSpec((KK, Cp, Coutp), lambda n: (0, 0, 0)),     # all tap weights
        pl.BlockSpec((1, Coutp), lambda n: (0, 0)),             # bias
    ]
    args = [xflat, w, bias]
    if fuse_bn:
        in_specs += [pl.BlockSpec((1, Coutp), lambda n: (0, 0)),
                     pl.BlockSpec((1, Coutp), lambda n: (0, 0))]
        args += [bn_scale, bn_shift]
    if has_res:
        in_specs.append(pl.BlockSpec((1, Ho, Wo, Coutp), lambda n: (n, 0, 0, 0)))
        args.append(residual)

    kernel = _make_conv_kernel(tap_starts, L, Wq, Ho, Wo, fuse_bn, has_res)

    blk = (_bytes((1, R * Wq, Cp), jnp.bfloat16)
           + _bytes((KK, Cp, Coutp), jnp.bfloat16)
           + _bytes((1, Ho, Wo, Coutp), out_dtype)
           + (_bytes((1, Ho, Wo, Coutp), jnp.float32) if has_res else 0)
           + _bytes((L, Coutp), jnp.float32)        # accumulator
           + 4 * _bytes((1, Coutp), jnp.float32))

    # TODO(synk): for large feature maps add an H-tile grid axis (with halo rows) and
    # a channel-block reduction axis so per-step VMEM stays bounded on v7x (64 MiB).
    return pl.pallas_call(
        kernel,
        out_shape=jax.ShapeDtypeStruct((N, Ho, Wo, Coutp), out_dtype),
        grid=(N,),
        in_specs=in_specs,
        out_specs=pl.BlockSpec((1, Ho, Wo, Coutp), lambda n: (n, 0, 0, 0)),
        compiler_params=pltpu.CompilerParams(
            dimension_semantics=("parallel",),      # batch steps shard across v7x TCs
            vmem_limit_bytes=_vmem_limit(blk)),
    )(*args)


# --------------------------------- JAX glue --------------------------------- #

def _bn_scale_shift(p, cpad):
    scale = p["gamma"] / jnp.sqrt(p["var"] + EPS)
    shift = p["beta"] - p["mean"] * scale
    c = scale.shape[0]
    scale = jnp.pad(scale, (0, cpad - c), constant_values=1.0)
    shift = jnp.pad(shift, (0, cpad - c))
    return (scale.reshape(1, cpad).astype(jnp.float32),
            shift.reshape(1, cpad).astype(jnp.float32))


def preact_block_forward(x_nchw, params, stride):
    """PreActBlock.forward.  Input/output NCHW, float32."""
    x = jnp.transpose(x_nchw, (0, 2, 3, 1)).astype(jnp.float32)      # NHWC
    N, H, W, Cin = x.shape
    Cout = params["conv1_w"].shape[0]
    Cp = _round_up(Cin, LANES)
    Coutp = _round_up(Cout, LANES)

    # lane-dense channel padding (zeros)
    if Cp != Cin:
        x = jnp.pad(x, ((0, 0), (0, 0), (0, 0), (0, Cp - Cin)))

    # x = relu1(bn1(x))  -> bf16 for the MXU path (math in f32)
    s1, sh1 = _bn_scale_shift(params["bn1"], Cp)
    x_pre = bn_relu_rows(x.reshape(-1, Cp), s1, sh1).reshape(N, H, W, Cp)

    # out = conv1(x)   with fused bias + bn2 + relu2 epilogue
    # TODO(synk): training-mode dropout / batch-stats BN not implemented (eval mode).
    s2, sh2 = _bn_scale_shift(params["bn2"], Coutp)
    out1 = conv2d_block(x_pre, params["conv1_w"], params["conv1_b"], stride, 1,
                        bn_scale=s2, bn_shift=sh2, out_dtype=jnp.bfloat16)

    # shortcut(x): 1x1 strided conv when the shape changes, else identity (= x_pre)
    if stride != 1 or Cin != Cout:
        res = pointwise_conv(x_pre, params["sc_w"], params["sc_b"], stride,
                             out_dtype=jnp.float32)
    else:
        res = x_pre

    # out = conv2(out) + shortcut   (bias + residual add fused in the conv2 epilogue)
    out = conv2d_block(out1, params["conv2_w"], params["conv2_b"], 1, 1,
                       residual=res, out_dtype=jnp.float32)

    out = out[..., :Cout]                       # drop channel padding
    return jnp.transpose(out, (0, 3, 1, 2))     # back to NCHW


# ------------------------------ reference (JAX) ------------------------------ #

def reference_forward(x_nchw, params, stride):
    def bn(x, p):
        scale = p["gamma"] / jnp.sqrt(p["var"] + EPS)
        shift = p["beta"] - p["mean"] * scale
        return x * scale[None, :, None, None] + shift[None, :, None, None]

    def conv(x, w, b, s, pad):
        y = jax.lax.conv_general_dilated(
            x, w, (s, s), [(pad, pad), (pad, pad)],
            dimension_numbers=("NCHW", "OIHW", "NCHW"))
        return y + b[None, :, None, None]

    cin = params["conv1_w"].shape[1]
    cout = params["conv1_w"].shape[0]
    xp = jax.nn.relu(bn(x_nchw, params["bn1"]))
    out = conv(xp, params["conv1_w"], params["conv1_b"], stride, 1)
    out = jax.nn.relu(bn(out, params["bn2"]))
    out = conv(out, params["conv2_w"], params["conv2_b"], 1, 1)
    if stride != 1 or cin != cout:
        sc = conv(xp, params["sc_w"], params["sc_b"], stride, 0)
    else:
        sc = xp
    return out + sc


# ----------------------------------- main ------------------------------------ #

def make_params(key, cin, cout):
    ks = jax.random.split(key, 12)
    normal = lambda k, shape, s=0.1: (s * jax.random.normal(k, shape)).astype(jnp.float32)
    return {
        "bn1": {
            "gamma": 1.0 + normal(ks[0], (cin,)),
            "beta": normal(ks[1], (cin,)),
            "mean": normal(ks[2], (cin,)),
            "var": 1.0 + jnp.abs(normal(ks[3], (cin,))),
        },
        "conv1_w": normal(ks[4], (cout, cin, 3, 3)),
        "conv1_b": normal(ks[5], (cout,)),
        "bn2": {
            "gamma": 1.0 + normal(ks[6], (cout,)),
            "beta": normal(ks[7], (cout,)),
            "mean": normal(ks[8], (cout,)),
            "var": 1.0 + jnp.abs(normal(ks[9], (cout,))),
        },
        "conv2_w": normal(ks[10], (cout, cout, 3, 3)),
        "conv2_b": normal(ks[11], (cout,)),
        "sc_w": normal(jax.random.fold_in(key, 99), (cout, cin, 1, 1)),
        "sc_b": normal(jax.random.fold_in(key, 100), (cout,)),
    }


if __name__ == "__main__":
    key = jax.random.PRNGKey(0)
    k_x, k_p = jax.random.split(key)

    # config 1: downsampling block (stride 2, channel expansion -> conv shortcut)
    N, Cin, H, W = 2, 4, 16, 16
    Cout, stride = 8, 2
    x = jax.random.normal(k_x, (N, Cin, H, W), dtype=jnp.float32)
    params = make_params(k_p, Cin, Cout)

    out = jax.jit(lambda v: preact_block_forward(v, params, stride))(x)
    out = jax.block_until_ready(out)
    ref = reference_forward(x, params, stride)
    assert out.shape == (N, Cout, H // stride, W // stride), out.shape
    np.testing.assert_allclose(np.asarray(out), np.asarray(ref), rtol=3e-2, atol=3e-2)

    # config 2: identity-shortcut block (stride 1, same channel count)
    k_x2, k_p2 = jax.random.split(jax.random.PRNGKey(1))
    x2 = jax.random.normal(k_x2, (N, Cout, H, W), dtype=jnp.float32)
    params2 = make_params(k_p2, Cout, Cout)
    out2 = jax.block_until_ready(
        jax.jit(lambda v: preact_block_forward(v, params2, 1))(x2))
    ref2 = reference_forward(x2, params2, 1)
    assert out2.shape == (N, Cout, H, W), out2.shape
    np.testing.assert_allclose(np.asarray(out2), np.asarray(ref2), rtol=3e-2, atol=3e-2)

    print("KERNEL_OK")
</pallas_src>

<mosaic_0001>
module attributes {stable_mosaic.version = 11 : i64} {
  func.func @_bn_relu_kernel(%arg0: i32, %arg1: memref<256x128xf32, #tpu.memory_space<vmem>>, %arg2: memref<1x128xf32, #tpu.memory_space<vmem>>, %arg3: memref<1x128xf32, #tpu.memory_space<vmem>>, %arg4: memref<256x128xbf16, #tpu.memory_space<vmem>>) attributes {dimension_semantics = [#tpu.dimension_semantics<parallel>], iteration_bounds = array<i64: 2>, scalar_prefetch = 0 : i64, scratch_operands = 0 : i64, tpu.core_type = #tpu.core_type<tc>, window_params = [{transform_indices = @transform_0, window_bounds = array<i64: 256, 128>}, {pipeline_mode = #tpu.pipeline_mode<synchronous>, transform_indices = @transform_1, window_bounds = array<i64: 1, 128>}, {pipeline_mode = #tpu.pipeline_mode<synchronous>, transform_indices = @transform_2, window_bounds = array<i64: 1, 128>}, {transform_indices = @transform_3, window_bounds = array<i64: 256, 128>}]} {
    %c0 = arith.constant 0 : index
    %c0_0 = arith.constant 0 : index
    %0 = vector.load %arg1[%c0, %c0_0] : memref<256x128xf32, #tpu.memory_space<vmem>>, vector<256x128xf32>
    %c0_1 = arith.constant 0 : index
    %c0_2 = arith.constant 0 : index
    %1 = vector.load %arg2[%c0_1, %c0_2] : memref<1x128xf32, #tpu.memory_space<vmem>>, vector<1x128xf32>
    %2 = vector.broadcast %1 : vector<1x128xf32> to vector<256x128xf32>
    %3 = arith.mulf %0, %2 : vector<256x128xf32>
    %c0_3 = arith.constant 0 : index
    %c0_4 = arith.constant 0 : index
    %4 = vector.load %arg3[%c0_3, %c0_4] : memref<1x128xf32, #tpu.memory_space<vmem>>, vector<1x128xf32>
    %5 = vector.broadcast %4 : vector<1x128xf32> to vector<256x128xf32>
    %6 = arith.addf %3, %5 : vector<256x128xf32>
    %cst = arith.constant 0.000000e+00 : f32
    %7 = vector.broadcast %cst : f32 to vector<256x128xf32>
    %8 = arith.maximumf %6, %7 : vector<256x128xf32>
    %9 = arith.truncf %8 : vector<256x128xf32> to vector<256x128xbf16>
    %c0_5 = arith.constant 0 : index
    %c0_6 = arith.constant 0 : index
    %10 = vector.load %arg4[%c0_5, %c0_6] : memref<256x128xbf16, #tpu.memory_space<vmem>>, vector<256x128xbf16>
    tpu.vector_store %arg4[%c0_5, %c0_6], %9 {strides = array<i32>} : memref<256x128xbf16, #tpu.memory_space<vmem>>, vector<256x128xbf16>,
    return
  }
  func.func @transform_0(%arg0: i32) -> (i32, i32) {
    %c0_i32 = arith.constant 0 : i32
    %c0_i32_0 = arith.constant 0 : i32
    return %arg0, %c0_i32 : i32, i32
  }
  func.func @transform_1(%arg0: i32) -> (i32, i32) {
    %c0_i32 = arith.constant 0 : i32
    %c0_i32_0 = arith.constant 0 : i32
    %c0_i32_1 = arith.constant 0 : i32
    return %c0_i32, %c0_i32_0 : i32, i32
  }
  func.func @transform_2(%arg0: i32) -> (i32, i32) {
    %c0_i32 = arith.constant 0 : i32
    %c0_i32_0 = arith.constant 0 : i32
    %c0_i32_1 = arith.constant 0 : i32
    return %c0_i32, %c0_i32_0 : i32, i32
  }
  func.func @transform_3(%arg0: i32) -> (i32, i32) {
    %c0_i32 = arith.constant 0 : i32
    %c0_i32_0 = arith.constant 0 : i32
    return %arg0, %c0_i32 : i32, i32
  }
}

module attributes {stable_mosaic.version = 11 : i64} {
  func.func @_pointwise_conv_kernel(%arg0: i32, %arg1: memref<64x128xbf16, #tpu.memory_space<vmem>>, %arg2: memref<128x128xbf16, #tpu.memory_space<vmem>>, %arg3: memref<1x128xf32, #tpu.memory_space<vmem>>, %arg4: memref<64x128xf32, #tpu.memory_space<vmem>>) attributes {dimension_semantics = [#tpu.dimension_semantics<parallel>], iteration_bounds = array<i64: 2>, scalar_prefetch = 0 : i64, scratch_operands = 0 : i64, tpu.core_type = #tpu.core_type<tc>, window_params = [{transform_indices = @transform_0, window_bounds = array<i64: 64, 128>}, {pipeline_mode = #tpu.pipeline_mode<synchronous>, transform_indices = @transform_1, window_bounds = array<i64: 128, 128>}, {pipeline_mode = #tpu.pipeline_mode<synchronous>, transform_indices = @transform_2, window_bounds = array<i64: 1, 128>}, {transform_indices = @transform_3, window_bounds = array<i64: 64, 128>}]} {
    %c0 = arith.constant 0 : index
    %c0_0 = arith.constant 0 : index
    %0 = vector.load %arg1[%c0, %c0_0] : memref<64x128xbf16, #tpu.memory_space<vmem>>, vector<64x128xbf16>
    %c0_1 = arith.constant 0 : index
    %c0_2 = arith.constant 0 : index
    %1 = vector.load %arg2[%c0_1, %c0_2] : memref<128x128xbf16, #tpu.memory_space<vmem>>, vector<128x128xbf16>
    %cst = arith.constant dense<0.000000e+00> : vector<64x128xf32>
    %2 = tpu.matmul %0, %1, %cst {dimension_numbers = #tpu.dot_dimension_numbers<[1], [0], [0], [1], [0, 0, 1, 1], [], []>} : vector<64x128xbf16>, vector<128x128xbf16>, vector<64x128xf32> -> vector<64x128xf32>
    %c0_3 = arith.constant 0 : index
    %c0_4 = arith.constant 0 : index
    %3 = vector.load %arg3[%c0_3, %c0_4] : memref<1x128xf32, #tpu.memory_space<vmem>>, vector<1x128xf32>
    %4 = vector.broadcast %3 : vector<1x128xf32> to vector<64x128xf32>
    %5 = arith.addf %2, %4 : vector<64x128xf32>
    %c0_5 = arith.constant 0 : index
    %c0_6 = arith.constant 0 : index
    %6 = vector.load %arg4[%c0_5, %c0_6] : memref<64x128xf32, #tpu.memory_space<vmem>>, vector<64x128xf32>
    tpu.vector_store %arg4[%c0_5, %c0_6], %5 {strides = array<i32>} : memref<64x128xf32, #tpu.memory_space<vmem>>, vector<64x128xf32>,
    return
  }
  func.func @transform_0(%arg0: i32) -> (i32, i32) {
    %c0_i32 = arith.constant 0 : i32
    %c0_i32_0 = arith.constant 0 : i32
    return %arg0, %c0_i32 : i32, i32
  }
  func.func @transform_1(%arg0: i32) -> (i32, i32) {
    %c0_i32 = arith.constant 0 : i32
    %c0_i32_0 = arith.constant 0 : i32
    %c0_i32_1 = arith.constant 0 : i32
    return %c0_i32, %c0_i32_0 : i32, i32
  }
  func.func @transform_2(%arg0: i32) -> (i32, i32) {
    %c0_i32 = arith.constant 0 : i32
    %c0_i32_0 = arith.constant 0 : i32
    %c0_i32_1 = arith.constant 0 : i32
    return %c0_i32, %c0_i32_0 : i32, i32
  }
  func.func @transform_3(%arg0: i32) -> (i32, i32) {
    %c0_i32 = arith.constant 0 : i32
    %c0_i32_0 = arith.constant 0 : i32
    return %arg0, %c0_i32 : i32, i32
  }
}

module attributes {stable_mosaic.version = 11 : i64} {
  func.func @kernel(%arg0: i32, %arg1: memref<1x324x128xbf16, #tpu.memory_space<vmem>>, %arg2: memref<9x128x128xbf16, #tpu.memory_space<vmem>>, %arg3: memref<1x128xf32, #tpu.memory_space<vmem>>, %arg4: memref<1x128xf32, #tpu.memory_space<vmem>>, %arg5: memref<1x128xf32, #tpu.memory_space<vmem>>, %arg6: memref<1x8x8x128xbf16, #tpu.memory_space<vmem>>) attributes {dimension_semantics = [#tpu.dimension_semantics<parallel>], iteration_bounds = array<i64: 2>, scalar_prefetch = 0 : i64, scratch_operands = 0 : i64, tpu.core_type = #tpu.core_type<tc>, window_params = [{transform_indices = @transform_0, window_bounds = array<i64: 1, 324, 128>}, {pipeline_mode = #tpu.pipeline_mode<synchronous>, transform_indices = @transform_1, window_bounds = array<i64: 9, 128, 128>}, {pipeline_mode = #tpu.pipeline_mode<synchronous>, transform_indices = @transform_2, window_bounds = array<i64: 1, 128>}, {pipeline_mode = #tpu.pipeline_mode<synchronous>, transform_indices = @transform_3, window_bounds = array<i64: 1, 128>}, {pipeline_mode = #tpu.pipeline_mode<synchronous>, transform_indices = @transform_4, window_bounds = array<i64: 1, 128>}, {transform_indices = @transform_5, window_bounds = array<i64: 1, 8, 8, 128>}]} {
    %c0 = arith.constant 0 : index
    %c0_0 = arith.constant 0 : index
    %0 = vector.load %arg3[%c0, %c0_0] : memref<1x128xf32, #tpu.memory_space<vmem>>, vector<1x128xf32>
    %1 = vector.shape_cast %0 : vector<1x128xf32> to vector<1x128xf32>
    %2 = vector.broadcast %1 : vector<1x128xf32> to vector<71x128xf32>
    %c0_1 = arith.constant 0 : index
    %c0_2 = arith.constant 0 : index
    %c0_3 = arith.constant 0 : index
    %3 = vector.load %arg1[%c0_1, %c0_2, %c0_3] : memref<1x324x128xbf16, #tpu.memory_space<vmem>>, vector<1x71x128xbf16>
    %4 = vector.shape_cast %3 : vector<1x71x128xbf16> to vector<71x128xbf16>
    %c0_4 = arith.constant 0 : index
    %c0_5 = arith.constant 0 : index
    %c0_6 = arith.constant 0 : index
    %5 = vector.load %arg2[%c0_4, %c0_5, %c0_6] : memref<9x128x128xbf16, #tpu.memory_space<vmem>>, vector<1x128x128xbf16>
    %6 = vector.shape_cast %5 : vector<1x128x128xbf16> to vector<128x128xbf16>
    %cst = arith.constant dense<0.000000e+00> : vector<71x128xf32>
    %7 = tpu.matmul %4, %6, %cst {dimension_numbers = #tpu.dot_dimension_numbers<[1], [0], [0], [1], [0, 0, 1, 1], [], []>} : vector<71x128xbf16>, vector<128x128xbf16>, vector<71x128xf32> -> vector<71x128xf32>
    %8 = arith.addf %2, %7 : vector<71x128xf32>
    %c0_7 = arith.constant 0 : index
    %c81 = arith.constant 81 : index
    %c0_8 = arith.constant 0 : index
    %9 = vector.load %arg1[%c0_7, %c81, %c0_8] : memref<1x324x128xbf16, #tpu.memory_space<vmem>>, vector<1x71x128xbf16>
    %10 = vector.shape_cast %9 : vector<1x71x128xbf16> to vector<71x128xbf16>
    %c1 = arith.constant 1 : index
    %c0_9 = arith.constant 0 : index
    %c0_10 = arith.constant 0 : index
    %11 = vector.load %arg2[%c1, %c0_9, %c0_10] : memref<9x128x128xbf16, #tpu.memory_space<vmem>>, vector<1x128x128xbf16>
    %12 = vector.shape_cast %11 : vector<1x128x128xbf16> to vector<128x128xbf16>
    %cst_11 = arith.constant dense<0.000000e+00> : vector<71x128xf32>
    %13 = tpu.matmul %10, %12, %cst_11 {dimension_numbers = #tpu.dot_dimension_numbers<[1], [0], [0], [1], [0, 0, 1, 1], [], []>} : vector<71x128xbf16>, vector<128x128xbf16>, vector<71x128xf32> -> vector<71x128xf32>
    %14 = arith.addf %8, %13 : vector<71x128xf32>
    %c0_12 = arith.constant 0 : index
    %c1_13 = arith.constant 1 : index
    %c0_14 = arith.constant 0 : index
    %15 = vector.load %arg1[%c0_12, %c1_13, %c0_14] : memref<1x324x128xbf16, #tpu.memory_space<vmem>>, vector<1x71x128xbf16>
    %16 = vector.shape_cast %15 : vector<1x71x128xbf16> to vector<71x128xbf16>
    %c2 = arith.constant 2 : index
    %c0_15 = arith.constant 0 : index
    %c0_16 = arith.constant 0 : index
    %17 = vector.load %arg2[%c2, %c0_15, %c0_16] : memref<9x128x128xbf16, #tpu.memory_space<vmem>>, vector<1x128x128xbf16>
    %18 = vector.shape_cast %17 : vector<1x128x128xbf16> to vector<128x128xbf16>
    %cst_17 = arith.constant dense<0.000000e+00> : vector<71x128xf32>
    %19 = tpu.matmul %16, %18, %cst_17 {dimension_numbers = #tpu.dot_dimension_numbers<[1], [0], [0], [1], [0, 0, 1, 1], [], []>} : vector<71x128xbf16>, vector<128x128xbf16>, vector<71x128xf32> -> vector<71x128xf32>
    %20 = arith.addf %14, %19 : vector<71x128xf32>
    %c0_18 = arith.constant 0 : index
    %c162 = arith.constant 162 : index
    %c0_19 = arith.constant 0 : index
    %21 = vector.load %arg1[%c0_18, %c162, %c0_19] : memref<1x324x128xbf16, #tpu.memory_space<vmem>>, vector<1x71x128xbf16>
    %22 = vector.shape_cast %21 : vector<1x71x128xbf16> to vector<71x128xbf16>
    %c3 = arith.constant 3 : index
    %c0_20 = arith.constant 0 : index
    %c0_21 = arith.constant 0 : index
    %23 = vector.load %arg2[%c3, %c0_20, %c0_21] : memref<9x128x128xbf16, #tpu.memory_space<vmem>>, vector<1x128x128xbf16>
    %24 = vector.shape_cast %23 : vector<1x128x128xbf16> to vector<128x128xbf16>
    %cst_22 = arith.constant dense<0.000000e+00> : vector<71x128xf32>
    %25 = tpu.matmul %22, %24, %cst_22 {dimension_numbers = #tpu.dot_dimension_numbers<[1], [0], [0], [1], [0, 0, 1, 1], [], []>} : vector<71x128xbf16>, vector<128x128xbf16>, vector<71x128xf32> -> vector<71x128xf32>
    %26 = arith.addf %20, %25 : vector<71x128xf32>
    %c0_23 = arith.constant 0 : index
    %c243 = arith.constant 243 : index
    %c0_24 = arith.constant 0 : index
    %27 = vector.load %arg1[%c0_23, %c243, %c0_24] : memref<1x324x128xbf16, #tpu.memory_space<vmem>>, vector<1x71x128xbf16>
    %28 = vector.shape_cast %27 : vector<1x71x128xbf16> to vector<71x128xbf16>
    %c4 = arith.constant 4 : index
    %c0_25 = arith.constant 0 : index
    %c0_26 = arith.constant 0 : index
    %29 = vector.load %arg2[%c4, %c0_25, %c0_26] : memref<9x128x128xbf16, #tpu.memory_space<vmem>>, vector<1x128x128xbf16>
    %30 = vector.shape_cast %29 : vector<1x128x128xbf16> to vector<128x128xbf16>
    %cst_27 = arith.constant dense<0.000000e+00> : vector<71x128xf32>
    %31 = tpu.matmul %28, %30, %cst_27 {dimension_numbers = #tpu.dot_dimension_numbers<[1], [0], [0], [1], [0, 0, 1, 1], [], []>} : vector<71x128xbf16>, vector<128x128xbf16>, vector<71x128xf32> -> vector<71x128xf32>
    %32 = arith.addf %26, %31 : vector<71x128xf32>
    %c0_28 = arith.constant 0 : index
    %c163 = arith.constant 163 : index
    %c0_29 = arith.constant 0 : index
    %33 = vector.load %arg1[%c0_28, %c163, %c0_29] : memref<1x324x128xbf16, #tpu.memory_space<vmem>>, vector<1x71x128xbf16>
    %34 = vector.shape_cast %33 : vector<1x71x128xbf16> to vector<71x128xbf16>
    %c5 = arith.constant 5 : index
    %c0_30 = arith.constant 0 : index
    %c0_31 = arith.constant 0 : index
    %35 = vector.load %arg2[%c5, %c0_30, %c0_31] : memref<9x128x128xbf16, #tpu.memory_space<vmem>>, vector<1x128x128xbf16>
    %36 = vector.shape_cast %35 : vector<1x128x128xbf16> to vector<128x128xbf16>
    %cst_32 = arith.constant dense<0.000000e+00> : vector<71x128xf32>
    %37 = tpu.matmul %34, %36, %cst_32 {dimension_numbers = #tpu.dot_dimension_numbers<[1], [0], [0], [1], [0, 0, 1, 1], [], []>} : vector<71x128xbf16>, vector<128x128xbf16>, vector<71x128xf32> -> vector<71x128xf32>
    %38 = arith.addf %32, %37 : vector<71x128xf32>
    %c0_33 = arith.constant 0 : index
    %c9 = arith.constant 9 : index
    %c0_34 = arith.constant 0 : index
    %39 = vector.load %arg1[%c0_33, %c9, %c0_34] : memref<1x324x128xbf16, #tpu.memory_space<vmem>>, vector<1x71x128xbf16>
    %40 = vector.shape_cast %39 : vector<1x71x128xbf16> to vector<71x128xbf16>
    %c6 = arith.constant 6 : index
    %c0_35 = arith.constant 0 : index
    %c0_36 = arith.constant 0 : index
    %41 = vector.load %arg2[%c6, %c0_35, %c0_36] : memref<9x128x128xbf16, #tpu.memory_space<vmem>>, vector<1x128x128xbf16>
    %42 = vector.shape_cast %41 : vector<1x128x128xbf16> to vector<128x128xbf16>
    %cst_37 = arith.constant dense<0.000000e+00> : vector<71x128xf32>
    %43 = tpu.matmul %40, %42, %cst_37 {dimension_numbers = #tpu.dot_dimension_numbers<[1], [0], [0], [1], [0, 0, 1, 1], [], []>} : vector<71x128xbf16>, vector<128x128xbf16>, vector<71x128xf32> -> vector<71x128xf32>
    %44 = arith.addf %38, %43 : vector<71x128xf32>
    %c0_38 = arith.constant 0 : index
    %c90 = arith.constant 90 : index
    %c0_39 = arith.constant 0 : index
    %45 = vector.load %arg1[%c0_38, %c90, %c0_39] : memref<1x324x128xbf16, #tpu.memory_space<vmem>>, vector<1x71x128xbf16>
    %46 = vector.shape_cast %45 : vector<1x71x128xbf16> to vector<71x128xbf16>
    %c7 = arith.constant 7 : index
    %c0_40 = arith.constant 0 : index
    %c0_41 = arith.constant 0 : index
    %47 = vector.load %arg2[%c7, %c0_40, %c0_41] : memref<9x128x128xbf16, #tpu.memory_space<vmem>>, vector<1x128x128xbf16>
    %48 = vector.shape_cast %47 : vector<1x128x128xbf16> to vector<128x128xbf16>
    %cst_42 = arith.constant dense<0.000000e+00> : vector<71x128xf32>
    %49 = tpu.matmul %46, %48, %cst_42 {dimension_numbers = #tpu.dot_dimension_numbers<[1], [0], [0], [1], [0, 0, 1, 1], [], []>} : vector<71x128xbf16>, vector<128x128xbf16>, vector<71x128xf32> -> vector<71x128xf32>
    %50 = arith.addf %44, %49 : vector<71x128xf32>
    %c0_43 = arith.constant 0 : index
    %c10 = arith.constant 10 : index
    %c0_44 = arith.constant 0 : index
    %51 = vector.load %arg1[%c0_43, %c10, %c0_44] : memref<1x324x128xbf16, #tpu.memory_space<vmem>>, vector<1x71x128xbf16>
    %52 = vector.shape_cast %51 : vector<1x71x128xbf16> to vector<71x128xbf16>
    %c8 = arith.constant 8 : index
    %c0_45 = arith.constant 0 : index
    %c0_46 = arith.constant 0 : index
    %53 = vector.load %arg2[%c8, %c0_45, %c0_46] : memref<9x128x128xbf16, #tpu.memory_space<vmem>>, vector<1x128x128xbf16>
    %54 = vector.shape_cast %53 : vector<1x128x128xbf16> to vector<128x128xbf16>
    %cst_47 = arith.constant dense<0.000000e+00> : vector<71x128xf32>
    %55 = tpu.matmul %52, %54, %cst_47 {dimension_numbers = #tpu.dot_dimension_numbers<[1], [0], [0], [1], [0, 0, 1, 1], [], []>} : vector<71x128xbf16>, vector<128x128xbf16>, vector<71x128xf32> -> vector<71x128xf32>
    %56 = arith.addf %50, %55 : vector<71x128xf32>
    %c0_48 = arith.constant 0 : index
    %c0_49 = arith.constant 0 : index
    %57 = vector.load %arg4[%c0_48, %c0_49] : memref<1x128xf32, #tpu.memory_space<vmem>>, vector<1x128xf32>
    %c0_50 = arith.constant 0 : index
    %c0_51 = arith.constant 0 : index
    %58 = vector.load %arg5[%c0_50, %c0_51] : memref<1x128xf32, #tpu.memory_space<vmem>>, vector<1x128xf32>
    %59 = vector.extract_strided_slice %56 {offsets = [0, 0], sizes = [8, 128], strides = [1, 1]} : vector<71x128xf32> to vector<8x128xf32>
    %60 = vector.broadcast %57 : vector<1x128xf32> to vector<8x128xf32>
    %61 = arith.mulf %59, %60 : vector<8x128xf32>
    %62 = vector.broadcast %58 : vector<1x128xf32> to vector<8x128xf32>
    %63 = arith.addf %61, %62 : vector<8x128xf32>
    %cst_52 = arith.constant 0.000000e+00 : f32
    %64 = vector.broadcast %cst_52 : f32 to vector<8x128xf32>
    %65 = arith.maximumf %63, %64 : vector<8x128xf32>
    %66 = arith.truncf %65 : vector<8x128xf32> to vector<8x128xbf16>
    %c0_53 = arith.constant 0 : index
    %c0_54 = arith.constant 0 : index
    %c0_55 = arith.constant 0 : index
    %c0_56 = arith.constant 0 : index
    %67 = vector.load %arg6[%c0_53, %c0_54, %c0_55, %c0_56] : memref<1x8x8x128xbf16, #tpu.memory_space<vmem>>, vector<1x1x8x128xbf16>
    %68 = vector.shape_cast %67 : vector<1x1x8x128xbf16> to vector<8x128xbf16>
    %69 = vector.shape_cast %66 : vector<8x128xbf16> to vector<1x1x8x128xbf16>
    tpu.vector_store %arg6[%c0_53, %c0_54, %c0_55, %c0_56], %69 {strides = array<i32>} : memref<1x8x8x128xbf16, #tpu.memory_space<vmem>>, vector<1x1x8x128xbf16>,
    %70 = vector.extract_strided_slice %56 {offsets = [9, 0], sizes = [8, 128], strides = [1, 1]} : vector<71x128xf32> to vector<8x128xf32>
    %71 = vector.broadcast %57 : vector<1x128xf32> to vector<8x128xf32>
    %72 = arith.mulf %70, %71 : vector<8x128xf32>
    %73 = vector.broadcast %58 : vector<1x128xf32> to vector<8x128xf32>
    %74 = arith.addf %72, %73 : vector<8x128xf32>
    %cst_57 = arith.constant 0.000000e+00 : f32
    %75 = vector.broadcast %cst_57 : f32 to vector<8x128xf32>
    %76 = arith.maximumf %74, %75 : vector<8x128xf32>
    %77 = arith.truncf %76 : vector<8x128xf32> to vector<8x128xbf16>
    %c0_58 = arith.constant 0 : index
    %c1_59 = arith.constant 1 : index
    %c0_60 = arith.constant 0 : index
    %c0_61 = arith.constant 0 : index
    %78 = vector.load %arg6[%c0_58, %c1_59, %c0_60, %c0_61] : memref<1x8x8x128xbf16, #tpu.memory_space<vmem>>, vector<1x1x8x128xbf16>
    %79 = vector.shape_cast %78 : vector<1x1x8x128xbf16> to vector<8x128xbf16>
    %80 = vector.shape_cast %77 : vector<8x128xbf16> to vector<1x1x8x128xbf16>
    tpu.vector_store %arg6[%c0_58, %c1_59, %c0_60, %c0_61], %80 {strides = array<i32>} : memref<1x8x8x128xbf16, #tpu.memory_space<vmem>>, vector<1x1x8x128xbf16>,
    %81 = vector.extract_strided_slice %56 {offsets = [18, 0], sizes = [8, 128], strides = [1, 1]} : vector<71x128xf32> to vector<8x128xf32>
    %82 = vector.broadcast %57 : vector<1x128xf32> to vector<8x128xf32>
    %83 = arith.mulf %81, %82 : vector<8x128xf32>
    %84 = vector.broadcast %58 : vector<1x128xf32> to vector<8x128xf32>
    %85 = arith.addf %83, %84 : vector<8x128xf32>
    %cst_62 = arith.constant 0.000000e+00 : f32
    %86 = vector.broadcast %cst_62 : f32 to vector<8x128xf32>
    %87 = arith.maximumf %85, %86 : vector<8x128xf32>
    %88 = arith.truncf %87 : vector<8x128xf32> to vector<8x128xbf16>
    %c0_63 = arith.constant 0 : index
    %c2_64 = arith.constant 2 : index
    %c0_65 = arith.constant 0 : index
    %c0_66 = arith.constant 0 : index
    %89 = vector.load %arg6[%c0_63, %c2_64, %c0_65, %c0_66] : memref<1x8x8x128xbf16, #tpu.memory_space<vmem>>, vector<1x1x8x128xbf16>
    %90 = vector.shape_cast %89 : vector<1x1x8x128xbf16> to vector<8x128xbf16>
    %91 = vector.shape_cast %88 : vector<8x128xbf16> to vector<1x1x8x128xbf16>
    tpu.vector_store %arg6[%c0_63, %c2_64, %c0_65, %c0_66], %91 {strides = array<i32>} : memref<1x8x8x128xbf16, #tpu.memory_space<vmem>>, vector<1x1x8x128xbf16>,
    %92 = vector.extract_strided_slice %56 {offsets = [27, 0], sizes = [8, 128], strides = [1, 1]} : vector<71x128xf32> to vector<8x128xf32>
    %93 = vector.broadcast %57 : vector<1x128xf32> to vector<8x128xf32>
    %94 = arith.mulf %92, %93 : vector<8x128xf32>
    %95 = vector.broadcast %58 : vector<1x128xf32> to vector<8x128xf32>
    %96 = arith.addf %94, %95 : vector<8x128xf32>
    %cst_67 = arith.constant 0.000000e+00 : f32
    %97 = vector.broadcast %cst_67 : f32 to vector<8x128xf32>
    %98 = arith.maximumf %96, %97 : vector<8x128xf32>
    %99 = arith.truncf %98 : vector<8x128xf32> to vector<8x128xbf16>
    %c0_68 = arith.constant 0 : index
    %c3_69 = arith.constant 3 : index
    %c0_70 = arith.constant 0 : index
    %c0_71 = arith.constant 0 : index
    %100 = vector.load %arg6[%c0_68, %c3_69, %c0_70, %c0_71] : memref<1x8x8x128xbf16, #tpu.memory_space<vmem>>, vector<1x1x8x128xbf16>
    %101 = vector.shape_cast %100 : vector<1x1x8x128xbf16> to vector<8x128xbf16>
    %102 = vector.shape_cast %99 : vector<8x128xbf16> to vector<1x1x8x128xbf16>
    tpu.vector_store %arg6[%c0_68, %c3_69, %c0_70, %c0_71], %102 {strides = array<i32>} : memref<1x8x8x128xbf16, #tpu.memory_space<vmem>>, vector<1x1x8x128xbf16>,
    %103 = vector.extract_strided_slice %56 {offsets = [36, 0], sizes = [8, 128], strides = [1, 1]} : vector<71x128xf32> to vector<8x128xf32>
    %104 = vector.broadcast %57 : vector<1x128xf32> to vector<8x128xf32>
    %105 = arith.mulf %103, %104 : vector<8x128xf32>
    %106 = vector.broadcast %58 : vector<1x128xf32> to vector<8x128xf32>
    %107 = arith.addf %105, %106 : vector<8x128xf32>
    %cst_72 = arith.constant 0.000000e+00 : f32
    %108 = vector.broadcast %cst_72 : f32 to vector<8x128xf32>
    %109 = arith.maximumf %107, %108 : vector<8x128xf32>
    %110 = arith.truncf %109 : vector<8x128xf32> to vector<8x128xbf16>
    %c0_73 = arith.constant 0 : index
    %c4_74 = arith.constant 4 : index
    %c0_75 = arith.constant 0 : index
    %c0_76 = arith.constant 0 : index
    %111 = vector.load %arg6[%c0_73, %c4_74, %c0_75, %c0_76] : memref<1x8x8x128xbf16, #tpu.memory_space<vmem>>, vector<1x1x8x128xbf16>
    %112 = vector.shape_cast %111 : vector<1x1x8x128xbf16> to vector<8x128xbf16>
    %113 = vector.shape_cast %110 : vector<8x128xbf16> to vector<1x1x8x128xbf16>
    tpu.vector_store %arg6[%c0_73, %c4_74, %c0_75, %c0_76], %113 {strides = array<i32>} : memref<1x8x8x128xbf16, #tpu.memory_space<vmem>>, vector<1x1x8x128xbf16>,
    %114 = vector.extract_strided_slice %56 {offsets = [45, 0], sizes = [8, 128], strides = [1, 1]} : vector<71x128xf32> to vector<8x128xf32>
    %115 = vector.broadcast %57 : vector<1x128xf32> to vector<8x128xf32>
    %116 = arith.mulf %114, %115 : vector<8x128xf32>
    %117 = vector.broadcast %58 : vector<1x128xf32> to vector<8x128xf32>
    %118 = arith.addf %116, %117 : vector<8x128xf32>
    %cst_77 = arith.constant 0.000000e+00 : f32
    %119 = vector.broadcast %cst_77 : f32 to vector<8x128xf32>
    %120 = arith.maximumf %118, %119 : vector<8x128xf32>
    %121 = arith.truncf %120 : vector<8x128xf32> to vector<8x128xbf16>
    %c0_78 = arith.constant 0 : index
    %c5_79 = arith.constant 5 : index
    %c0_80 = arith.constant 0 : index
    %c0_81 = arith.constant 0 : index
    %122 = vector.load %arg6[%c0_78, %c5_79, %c0_80, %c0_81] : memref<1x8x8x128xbf16, #tpu.memory_space<vmem>>, vector<1x1x8x128xbf16>
    %123 = vector.shape_cast %122 : vector<1x1x8x128xbf16> to vector<8x128xbf16>
    %124 = vector.shape_cast %121 : vector<8x128xbf16> to vector<1x1x8x128xbf16>
    tpu.vector_store %arg6[%c0_78, %c5_79, %c0_80, %c0_81], %124 {strides = array<i32>} : memref<1x8x8x128xbf16, #tpu.memory_space<vmem>>, vector<1x1x8x128xbf16>,
    %125 = vector.extract_strided_slice %56 {offsets = [54, 0], sizes = [8, 128], strides = [1, 1]} : vector<71x128xf32> to vector<8x128xf32>
    %126 = vector.broadcast %57 : vector<1x128xf32> to vector<8x128xf32>
    %127 = arith.mulf %125, %126 : vector<8x128xf32>
    %128 = vector.broadcast %58 : vector<1x128xf32> to vector<8x128xf32>
    %129 = arith.addf %127, %128 : vector<8x128xf32>
    %cst_82 = arith.constant 0.000000e+00 : f32
    %130 = vector.broadcast %cst_82 : f32 to vector<8x128xf32>
    %131 = arith.maximumf %129, %130 : vector<8x128xf32>
    %132 = arith.truncf %131 : vector<8x128xf32> to vector<8x128xbf16>
    %c0_83 = arith.constant 0 : index
    %c6_84 = arith.constant 6 : index
    %c0_85 = arith.constant 0 : index
    %c0_86 = arith.constant 0 : index
    %133 = vector.load %arg6[%c0_83, %c6_84, %c0_85, %c0_86] : memref<1x8x8x128xbf16, #tpu.memory_space<vmem>>, vector<1x1x8x128xbf16>
    %134 = vector.shape_cast %133 : vector<1x1x8x128xbf16> to vector<8x128xbf16>
    %135 = vector.shape_cast %132 : vector<8x128xbf16> to vector<1x1x8x128xbf16>
    tpu.vector_store %arg6[%c0_83, %c6_84, %c0_85, %c0_86], %135 {strides = array<i32>} : memref<1x8x8x128xbf16, #tpu.memory_space<vmem>>, vector<1x1x8x128xbf16>,
    %136 = vector.extract_strided_slice %56 {offsets = [63, 0], sizes = [8, 128], strides = [1, 1]} : vector<71x128xf32> to vector<8x128xf32>
    %137 = vector.broadcast %57 : vector<1x128xf32> to vector<8x128xf32>
    %138 = arith.mulf %136, %137 : vector<8x128xf32>
    %139 = vector.broadcast %58 : vector<1x128xf32> to vector<8x128xf32>
    %140 = arith.addf %138, %139 : vector<8x128xf32>
    %cst_87 = arith.constant 0.000000e+00 : f32
    %141 = vector.broadcast %cst_87 : f32 to vector<8x128xf32>
    %142 = arith.maximumf %140, %141 : vector<8x128xf32>
    %143 = arith.truncf %142 : vector<8x128xf32> to vector<8x128xbf16>
    %c0_88 = arith.constant 0 : index
    %c7_89 = arith.constant 7 : index
    %c0_90 = arith.constant 0 : index
    %c0_91 = arith.constant 0 : index
    %144 = vector.load %arg6[%c0_88, %c7_89, %c0_90, %c0_91] : memref<1x8x8x128xbf16, #tpu.memory_space<vmem>>, vector<1x1x8x128xbf16>
    %145 = vector.shape_cast %144 : vector<1x1x8x128xbf16> to vector<8x128xbf16>
    %146 = vector.shape_cast %143 : vector<8x128xbf16> to vector<1x1x8x128xbf16>
    tpu.vector_store %arg6[%c0_88, %c7_89, %c0_90, %c0_91], %146 {strides = array<i32>} : memref<1x8x8x128xbf16, #tpu.memory_space<vmem>>, vector<1x1x8x128xbf16>,
    return
  }
  func.func @transform_0(%arg0: i32) -> (i32, i32, i32) {
    %c0_i32 = arith.constant 0 : i32
    %c0_i32_0 = arith.constant 0 : i32
    %c0_i32_1 = arith.constant 0 : i32
    return %arg0, %c0_i32, %c0_i32_0 : i32, i32, i32
  }
  func.func @transform_1(%arg0: i32) -> (i32, i32, i32) {
    %c0_i32 = arith.constant 0 : i32
    %c0_i32_0 = arith.constant 0 : i32
    %c0_i32_1 = arith.constant 0 : i32
    %c0_i32_2 = arith.constant 0 : i32
    return %c0_i32, %c0_i32_0, %c0_i32_1 : i32, i32, i32
  }
  func.func @transform_2(%arg0: i32) -> (i32, i32) {
    %c0_i32 = arith.constant 0 : i32
    %c0_i32_0 = arith.constant 0 : i32
    %c0_i32_1 = arith.constant 0 : i32
    return %c0_i32, %c0_i32_0 : i32, i32
  }
  func.func @transform_3(%arg0: i32) -> (i32, i32) {
    %c0_i32 = arith.constant 0 : i32
    %c0_i32_0 = arith.constant 0 : i32
    %c0_i32_1 = arith.constant 0 : i32
    return %c0_i32, %c0_i32_0 : i32, i32
  }
  func.func @transform_4(%arg0: i32) -> (i32, i32) {
    %c0_i32 = arith.constant 0 : i32
    %c0_i32_0 = arith.constant 0 : i32
    %c0_i32_1 = arith.constant 0 : i32
    return %c0_i32, %c0_i32_0 : i32, i32
  }
  func.func @transform_5(%arg0: i32) -> (i32, i32, i32, i32) {
    %c0_i32 = arith.constant 0 : i32
    %c0_i32_0 = arith.constant 0 : i32
    %c0_i32_1 = arith.constant 0 : i32
    %c0_i32_2 = arith.constant 0 : i32
    return %arg0, %c0_i32, %c0_i32_0, %c0_i32_1 : i32, i32, i32, i32
  }
}

module attributes {stable_mosaic.version = 11 : i64} {
  func.func @kernel(%arg0: i32, %arg1: memref<1x100x128xbf16, #tpu.memory_space<vmem>>, %arg2: memref<9x128x128xbf16, #tpu.memory_space<vmem>>, %arg3: memref<1x128xf32, #tpu.memory_space<vmem>>, %arg4: memref<1x8x8x128xf32, #tpu.memory_space<vmem>>, %arg5: memref<1x8x8x128xf32, #tpu.memory_space<vmem>>) attributes {dimension_semantics = [#tpu.dimension_semantics<parallel>], iteration_bounds = array<i64: 2>, scalar_prefetch = 0 : i64, scratch_operands = 0 : i64, tpu.core_type = #tpu.core_type<tc>, window_params = [{transform_indices = @transform_0, window_bounds = array<i64: 1, 100, 128>}, {pipeline_mode = #tpu.pipeline_mode<synchronous>, transform_indices = @transform_1, window_bounds = array<i64: 9, 128, 128>}, {pipeline_mode = #tpu.pipeline_mode<synchronous>, transform_indices = @transform_2, window_bounds = array<i64: 1, 128>}, {transform_indices = @transform_3, window_bounds = array<i64: 1, 8, 8, 128>}, {transform_indices = @transform_4, window_bounds = array<i64: 1, 8, 8, 128>}]} {
    %c0 = arith.constant 0 : index
    %c0_0 = arith.constant 0 : index
    %0 = vector.load %arg3[%c0, %c0_0] : memref<1x128xf32, #tpu.memory_space<vmem>>, vector<1x128xf32>
    %1 = vector.shape_cast %0 : vector<1x128xf32> to vector<1x128xf32>
    %2 = vector.broadcast %1 : vector<1x128xf32> to vector<78x128xf32>
    %c0_1 = arith.constant 0 : index
    %c0_2 = arith.constant 0 : index
    %c0_3 = arith.constant 0 : index
    %3 = vector.load %arg1[%c0_1, %c0_2, %c0_3] : memref<1x100x128xbf16, #tpu.memory_space<vmem>>, vector<1x78x128xbf16>
    %4 = vector.shape_cast %3 : vector<1x78x128xbf16> to vector<78x128xbf16>
    %c0_4 = arith.constant 0 : index
    %c0_5 = arith.constant 0 : index
    %c0_6 = arith.constant 0 : index
    %5 = vector.load %arg2[%c0_4, %c0_5, %c0_6] : memref<9x128x128xbf16, #tpu.memory_space<vmem>>, vector<1x128x128xbf16>
    %6 = vector.shape_cast %5 : vector<1x128x128xbf16> to vector<128x128xbf16>
    %cst = arith.constant dense<0.000000e+00> : vector<78x128xf32>
    %7 = tpu.matmul %4, %6, %cst {dimension_numbers = #tpu.dot_dimension_numbers<[1], [0], [0], [1], [0, 0, 1, 1], [], []>} : vector<78x128xbf16>, vector<128x128xbf16>, vector<78x128xf32> -> vector<78x128xf32>
    %8 = arith.addf %2, %7 : vector<78x128xf32>
    %c0_7 = arith.constant 0 : index
    %c1 = arith.constant 1 : index
    %c0_8 = arith.constant 0 : index
    %9 = vector.load %arg1[%c0_7, %c1, %c0_8] : memref<1x100x128xbf16, #tpu.memory_space<vmem>>, vector<1x78x128xbf16>
    %10 = vector.shape_cast %9 : vector<1x78x128xbf16> to vector<78x128xbf16>
    %c1_9 = arith.constant 1 : index
    %c0_10 = arith.constant 0 : index
    %c0_11 = arith.constant 0 : index
    %11 = vector.load %arg2[%c1_9, %c0_10, %c0_11] : memref<9x128x128xbf16, #tpu.memory_space<vmem>>, vector<1x128x128xbf16>
    %12 = vector.shape_cast %11 : vector<1x128x128xbf16> to vector<128x128xbf16>
    %cst_12 = arith.constant dense<0.000000e+00> : vector<78x128xf32>
    %13 = tpu.matmul %10, %12, %cst_12 {dimension_numbers = #tpu.dot_dimension_numbers<[1], [0], [0], [1], [0, 0, 1, 1], [], []>} : vector<78x128xbf16>, vector<128x128xbf16>, vector<78x128xf32> -> vector<78x128xf32>
    %14 = arith.addf %8, %13 : vector<78x128xf32>
    %c0_13 = arith.constant 0 : index
    %c2 = arith.constant 2 : index
    %c0_14 = arith.constant 0 : index
    %15 = vector.load %arg1[%c0_13, %c2, %c0_14] : memref<1x100x128xbf16, #tpu.memory_space<vmem>>, vector<1x78x128xbf16>
    %16 = vector.shape_cast %15 : vector<1x78x128xbf16> to vector<78x128xbf16>
    %c2_15 = arith.constant 2 : index
    %c0_16 = arith.constant 0 : index
    %c0_17 = arith.constant 0 : index
    %17 = vector.load %arg2[%c2_15, %c0_16, %c0_17] : memref<9x128x128xbf16, #tpu.memory_space<vmem>>, vector<1x128x128xbf16>
    %18 = vector.shape_cast %17 : vector<1x128x128xbf16> to vector<128x128xbf16>
    %cst_18 = arith.constant dense<0.000000e+00> : vector<78x128xf32>
    %19 = tpu.matmul %16, %18, %cst_18 {dimension_numbers = #tpu.dot_dimension_numbers<[1], [0], [0], [1], [0, 0, 1, 1], [], []>} : vector<78x128xbf16>, vector<128x128xbf16>, vector<78x128xf32> -> vector<78x128xf32>
    %20 = arith.addf %14, %19 : vector<78x128xf32>
    %c0_19 = arith.constant 0 : index
    %c10 = arith.constant 10 : index
    %c0_20 = arith.constant 0 : index
    %21 = vector.load %arg1[%c0_19, %c10, %c0_20] : memref<1x100x128xbf16, #tpu.memory_space<vmem>>, vector<1x78x128xbf16>
    %22 = vector.shape_cast %21 : vector<1x78x128xbf16> to vector<78x128xbf16>
    %c3 = arith.constant 3 : index
    %c0_21 = arith.constant 0 : index
    %c0_22 = arith.constant 0 : index
    %23 = vector.load %arg2[%c3, %c0_21, %c0_22] : memref<9x128x128xbf16, #tpu.memory_space<vmem>>, vector<1x128x128xbf16>
    %24 = vector.shape_cast %23 : vector<1x128x128xbf16> to vector<128x128xbf16>
    %cst_23 = arith.constant dense<0.000000e+00> : vector<78x128xf32>
    %25 = tpu.matmul %22, %24, %cst_23 {dimension_numbers = #tpu.dot_dimension_numbers<[1], [0], [0], [1], [0, 0, 1, 1], [], []>} : vector<78x128xbf16>, vector<128x128xbf16>, vector<78x128xf32> -> vector<78x128xf32>
    %26 = arith.addf %20, %25 : vector<78x128xf32>
    %c0_24 = arith.constant 0 : index
    %c11 = arith.constant 11 : index
    %c0_25 = arith.constant 0 : index
    %27 = vector.load %arg1[%c0_24, %c11, %c0_25] : memref<1x100x128xbf16, #tpu.memory_space<vmem>>, vector<1x78x128xbf16>
    %28 = vector.shape_cast %27 : vector<1x78x128xbf16> to vector<78x128xbf16>
    %c4 = arith.constant 4 : index
    %c0_26 = arith.constant 0 : index
    %c0_27 = arith.constant 0 : index
    %29 = vector.load %arg2[%c4, %c0_26, %c0_27] : memref<9x128x128xbf16, #tpu.memory_space<vmem>>, vector<1x128x128xbf16>
    %30 = vector.shape_cast %29 : vector<1x128x128xbf16> to vector<128x128xbf16>
    %cst_28 = arith.constant dense<0.000000e+00> : vector<78x128xf32>
    %31 = tpu.matmul %28, %30, %cst_28 {dimension_numbers = #tpu.dot_dimension_numbers<[1], [0], [0], [1], [0, 0, 1, 1], [], []>} : vector<78x128xbf16>, vector<128x128xbf16>, vector<78x128xf32> -> vector<78x128xf32>
    %32 = arith.addf %26, %31 : vector<78x128xf32>
    %c0_29 = arith.constant 0 : index
    %c12 = arith.constant 12 : index
    %c0_30 = arith.constant 0 : index
    %33 = vector.load %arg1[%c0_29, %c12, %c0_30] : memref<1x100x128xbf16, #tpu.memory_space<vmem>>, vector<1x78x128xbf16>
    %34 = vector.shape_cast %33 : vector<1x78x128xbf16> to vector<78x128xbf16>
    %c5 = arith.constant 5 : index
    %c0_31 = arith.constant 0 : index
    %c0_32 = arith.constant 0 : index
    %35 = vector.load %arg2[%c5, %c0_31, %c0_32] : memref<9x128x128xbf16, #tpu.memory_space<vmem>>, vector<1x128x128xbf16>
    %36 = vector.shape_cast %35 : vector<1x128x128xbf16> to vector<128x128xbf16>
    %cst_33 = arith.constant dense<0.000000e+00> : vector<78x128xf32>
    %37 = tpu.matmul %34, %36, %cst_33 {dimension_numbers = #tpu.dot_dimension_numbers<[1], [0], [0], [1], [0, 0, 1, 1], [], []>} : vector<78x128xbf16>, vector<128x128xbf16>, vector<78x128xf32> -> vector<78x128xf32>
    %38 = arith.addf %32, %37 : vector<78x128xf32>
    %c0_34 = arith.constant 0 : index
    %c20 = arith.constant 20 : index
    %c0_35 = arith.constant 0 : index
    %39 = vector.load %arg1[%c0_34, %c20, %c0_35] : memref<1x100x128xbf16, #tpu.memory_space<vmem>>, vector<1x78x128xbf16>
    %40 = vector.shape_cast %39 : vector<1x78x128xbf16> to vector<78x128xbf16>
    %c6 = arith.constant 6 : index
    %c0_36 = arith.constant 0 : index
    %c0_37 = arith.constant 0 : index
    %41 = vector.load %arg2[%c6, %c0_36, %c0_37] : memref<9x128x128xbf16, #tpu.memory_space<vmem>>, vector<1x128x128xbf16>
    %42 = vector.shape_cast %41 : vector<1x128x128xbf16> to vector<128x128xbf16>
    %cst_38 = arith.constant dense<0.000000e+00> : vector<78x128xf32>
    %43 = tpu.matmul %40, %42, %cst_38 {dimension_numbers = #tpu.dot_dimension_numbers<[1], [0], [0], [1], [0, 0, 1, 1], [], []>} : vector<78x128xbf16>, vector<128x128xbf16>, vector<78x128xf32> -> vector<78x128xf32>
    %44 = arith.addf %38, %43 : vector<78x128xf32>
    %c0_39 = arith.constant 0 : index
    %c21 = arith.constant 21 : index
    %c0_40 = arith.constant 0 : index
    %45 = vector.load %arg1[%c0_39, %c21, %c0_40] : memref<1x100x128xbf16, #tpu.memory_space<vmem>>, vector<1x78x128xbf16>
    %46 = vector.shape_cast %45 : vector<1x78x128xbf16> to vector<78x128xbf16>
    %c7 = arith.constant 7 : index
    %c0_41 = arith.constant 0 : index
    %c0_42 = arith.constant 0 : index
    %47 = vector.load %arg2[%c7, %c0_41, %c0_42] : memref<9x128x128xbf16, #tpu.memory_space<vmem>>, vector<1x128x128xbf16>
    %48 = vector.shape_cast %47 : vector<1x128x128xbf16> to vector<128x128xbf16>
    %cst_43 = arith.constant dense<0.000000e+00> : vector<78x128xf32>
    %49 = tpu.matmul %46, %48, %cst_43 {dimension_numbers = #tpu.dot_dimension_numbers<[1], [0], [0], [1], [0, 0, 1, 1], [], []>} : vector<78x128xbf16>, vector<128x128xbf16>, vector<78x128xf32> -> vector<78x128xf32>
    %50 = arith.addf %44, %49 : vector<78x128xf32>
    %c0_44 = arith.constant 0 : index
    %c22 = arith.constant 22 : index
    %c0_45 = arith.constant 0 : index
    %51 = vector.load %arg1[%c0_44, %c22, %c0_45] : memref<1x100x128xbf16, #tpu.memory_space<vmem>>, vector<1x78x128xbf16>
    %52 = vector.shape_cast %51 : vector<1x78x128xbf16> to vector<78x128xbf16>
    %c8 = arith.constant 8 : index
    %c0_46 = arith.constant 0 : index
    %c0_47 = arith.constant 0 : index
    %53 = vector.load %arg2[%c8, %c0_46, %c0_47] : memref<9x128x128xbf16, #tpu.memory_space<vmem>>, vector<1x128x128xbf16>
    %54 = vector.shape_cast %53 : vector<1x128x128xbf16> to vector<128x128xbf16>
    %cst_48 = arith.constant dense<0.000000e+00> : vector<78x128xf32>
    %55 = tpu.matmul %52, %54, %cst_48 {dimension_numbers = #tpu.dot_dimension_numbers<[1], [0], [0], [1], [0, 0, 1, 1], [], []>} : vector<78x128xbf16>, vector<128x128xbf16>, vector<78x128xf32> -> vector<78x128xf32>
    %56 = arith.addf %50, %55 : vector<78x128xf32>
    %57 = vector.extract_strided_slice %56 {offsets = [0, 0], sizes = [8, 128], strides = [1, 1]} : vector<78x128xf32> to vector<8x128xf32>
    %c0_49 = arith.constant 0 : index
    %c0_50 = arith.constant 0 : index
    %c0_51 = arith.constant 0 : index
    %c0_52 = arith.constant 0 : index
    %58 = vector.load %arg4[%c0_49, %c0_50, %c0_51, %c0_52] : memref<1x8x8x128xf32, #tpu.memory_space<vmem>>, vector<1x1x8x128xf32>
    %59 = vector.shape_cast %58 : vector<1x1x8x128xf32> to vector<8x128xf32>
    %60 = arith.addf %57, %59 : vector<8x128xf32>
    %c0_53 = arith.constant 0 : index
    %c0_54 = arith.constant 0 : index
    %c0_55 = arith.constant 0 : index
    %c0_56 = arith.constant 0 : index
    %61 = vector.load %arg5[%c0_53, %c0_54, %c0_55, %c0_56] : memref<1x8x8x128xf32, #tpu.memory_space<vmem>>, vector<1x1x8x128xf32>
    %62 = vector.shape_cast %61 : vector<1x1x8x128xf32> to vector<8x128xf32>
    %63 = vector.shape_cast %60 : vector<8x128xf32> to vector<1x1x8x128xf32>
    tpu.vector_store %arg5[%c0_53, %c0_54, %c0_55, %c0_56], %63 {strides = array<i32>} : memref<1x8x8x128xf32, #tpu.memory_space<vmem>>, vector<1x1x8x128xf32>,
    %64 = vector.extract_strided_slice %56 {offsets = [10, 0], sizes = [8, 128], strides = [1, 1]} : vector<78x128xf32> to vector<8x128xf32>
    %c0_57 = arith.constant 0 : index
    %c1_58 = arith.constant 1 : index
    %c0_59 = arith.constant 0 : index
    %c0_60 = arith.constant 0 : index
    %65 = vector.load %arg4[%c0_57, %c1_58, %c0_59, %c0_60] : memref<1x8x8x128xf32, #tpu.memory_space<vmem>>, vector<1x1x8x128xf32>
    %66 = vector.shape_cast %65 : vector<1x1x8x128xf32> to vector<8x128xf32>
    %67 = arith.addf %64, %66 : vector<8x128xf32>
    %c0_61 = arith.constant 0 : index
    %c1_62 = arith.constant 1 : index
    %c0_63 = arith.constant 0 : index
    %c0_64 = arith.constant 0 : index
    %68 = vector.load %arg5[%c0_61, %c1_62, %c0_63, %c0_64] : memref<1x8x8x128xf32, #tpu.memory_space<vmem>>, vector<1x1x8x128xf32>
    %69 = vector.shape_cast %68 : vector<1x1x8x128xf32> to vector<8x128xf32>
    %70 = vector.shape_cast %67 : vector<8x128xf32> to vector<1x1x8x128xf32>
    tpu.vector_store %arg5[%c0_61, %c1_62, %c0_63, %c0_64], %70 {strides = array<i32>} : memref<1x8x8x128xf32, #tpu.memory_space<vmem>>, vector<1x1x8x128xf32>,
    %71 = vector.extract_strided_slice %56 {offsets = [20, 0], sizes = [8, 128], strides = [1, 1]} : vector<78x128xf32> to vector<8x128xf32>
    %c0_65 = arith.constant 0 : index
    %c2_66 = arith.constant 2 : index
    %c0_67 = arith.constant 0 : index
    %c0_68 = arith.constant 0 : index
    %72 = vector.load %arg4[%c0_65, %c2_66, %c0_67, %c0_68] : memref<1x8x8x128xf32, #tpu.memory_space<vmem>>, vector<1x1x8x128xf32>
    %73 = vector.shape_cast %72 : vector<1x1x8x128xf32> to vector<8x128xf32>
    %74 = arith.addf %71, %73 : vector<8x128xf32>
    %c0_69 = arith.constant 0 : index
    %c2_70 = arith.constant 2 : index
    %c0_71 = arith.constant 0 : index
    %c0_72 = arith.constant 0 : index
    %75 = vector.load %arg5[%c0_69, %c2_70, %c0_71, %c0_72] : memref<1x8x8x128xf32, #tpu.memory_space<vmem>>, vector<1x1x8x128xf32>
    %76 = vector.shape_cast %75 : vector<1x1x8x128xf32> to vector<8x128xf32>
    %77 = vector.shape_cast %74 : vector<8x128xf32> to vector<1x1x8x128xf32>
    tpu.vector_store %arg5[%c0_69, %c2_70, %c0_71, %c0_72], %77 {strides = array<i32>} : memref<1x8x8x128xf32, #tpu.memory_space<vmem>>, vector<1x1x8x128xf32>,
    %78 = vector.extract_strided_slice %56 {offsets = [30, 0], sizes = [8, 128], strides = [1, 1]} : vector<78x128xf32> to vector<8x128xf32>
    %c0_73 = arith.constant 0 : index
    %c3_74 = arith.constant 3 : index
    %c0_75 = arith.constant 0 : index
    %c0_76 = arith.constant 0 : index
    %79 = vector.load %arg4[%c0_73, %c3_74, %c0_75, %c0_76] : memref<1x8x8x128xf32, #tpu.memory_space<vmem>>, vector<1x1x8x128xf32>
    %80 = vector.shape_cast %79 : vector<1x1x8x128xf32> to vector<8x128xf32>
    %81 = arith.addf %78, %80 : vector<8x128xf32>
    %c0_77 = arith.constant 0 : index
    %c3_78 = arith.constant 3 : index
    %c0_79 = arith.constant 0 : index
    %c0_80 = arith.constant 0 : index
    %82 = vector.load %arg5[%c0_77, %c3_78, %c0_79, %c0_80] : memref<1x8x8x128xf32, #tpu.memory_space<vmem>>, vector<1x1x8x128xf32>
    %83 = vector.shape_cast %82 : vector<1x1x8x128xf32> to vector<8x128xf32>
    %84 = vector.shape_cast %81 : vector<8x128xf32> to vector<1x1x8x128xf32>
    tpu.vector_store %arg5[%c0_77, %c3_78, %c0_79, %c0_80], %84 {strides = array<i32>} : memref<1x8x8x128xf32, #tpu.memory_space<vmem>>, vector<1x1x8x128xf32>,
    %85 = vector.extract_strided_slice %56 {offsets = [40, 0], sizes = [8, 128], strides = [1, 1]} : vector<78x128xf32> to vector<8x128xf32>
    %c0_81 = arith.constant 0 : index
    %c4_82 = arith.constant 4 : index
    %c0_83 = arith.constant 0 : index
    %c0_84 = arith.constant 0 : index
    %86 = vector.load %arg4[%c0_81, %c4_82, %c0_83, %c0_84] : memref<1x8x8x128xf32, #tpu.memory_space<vmem>>, vector<1x1x8x128xf32>
    %87 = vector.shape_cast %86 : vector<1x1x8x128xf32> to vector<8x128xf32>
    %88 = arith.addf %85, %87 : vector<8x128xf32>
    %c0_85 = arith.constant 0 : index
    %c4_86 = arith.constant 4 : index
    %c0_87 = arith.constant 0 : index
    %c0_88 = arith.constant 0 : index
    %89 = vector.load %arg5[%c0_85, %c4_86, %c0_87, %c0_88] : memref<1x8x8x128xf32, #tpu.memory_space<vmem>>, vector<1x1x8x128xf32>
    %90 = vector.shape_cast %89 : vector<1x1x8x128xf32> to vector<8x128xf32>
    %91 = vector.shape_cast %88 : vector<8x128xf32> to vector<1x1x8x128xf32>
    tpu.vector_store %arg5[%c0_85, %c4_86, %c0_87, %c0_88], %91 {strides = array<i32>} : memref<1x8x8x128xf32, #tpu.memory_space<vmem>>, vector<1x1x8x128xf32>,
    %92 = vector.extract_strided_slice %56 {offsets = [50, 0], sizes = [8, 128], strides = [1, 1]} : vector<78x128xf32> to vector<8x128xf32>
    %c0_89 = arith.constant 0 : index
    %c5_90 = arith.constant 5 : index
    %c0_91 = arith.constant 0 : index
    %c0_92 = arith.constant 0 : index
    %93 = vector.load %arg4[%c0_89, %c5_90, %c0_91, %c0_92] : memref<1x8x8x128xf32, #tpu.memory_space<vmem>>, vector<1x1x8x128xf32>
    %94 = vector.shape_cast %93 : vector<1x1x8x128xf32> to vector<8x128xf32>
    %95 = arith.addf %92, %94 : vector<8x128xf32>
    %c0_93 = arith.constant 0 : index
    %c5_94 = arith.constant 5 : index
    %c0_95 = arith.constant 0 : index
    %c0_96 = arith.constant 0 : index
    %96 = vector.load %arg5[%c0_93, %c5_94, %c0_95, %c0_96] : memref<1x8x8x128xf32, #tpu.memory_space<vmem>>, vector<1x1x8x128xf32>
    %97 = vector.shape_cast %96 : vector<1x1x8x128xf32> to vector<8x128xf32>
    %98 = vector.shape_cast %95 : vector<8x128xf32> to vector<1x1x8x128xf32>
    tpu.vector_store %arg5[%c0_93, %c5_94, %c0_95, %c0_96], %98 {strides = array<i32>} : memref<1x8x8x128xf32, #tpu.memory_space<vmem>>, vector<1x1x8x128xf32>,
    %99 = vector.extract_strided_slice %56 {offsets = [60, 0], sizes = [8, 128], strides = [1, 1]} : vector<78x128xf32> to vector<8x128xf32>
    %c0_97 = arith.constant 0 : index
    %c6_98 = arith.constant 6 : index
    %c0_99 = arith.constant 0 : index
    %c0_100 = arith.constant 0 : index
    %100 = vector.load %arg4[%c0_97, %c6_98, %c0_99, %c0_100] : memref<1x8x8x128xf32, #tpu.memory_space<vmem>>, vector<1x1x8x128xf32>
    %101 = vector.shape_cast %100 : vector<1x1x8x128xf32> to vector<8x128xf32>
    %102 = arith.addf %99, %101 : vector<8x128xf32>
    %c0_101 = arith.constant 0 : index
    %c6_102 = arith.constant 6 : index
    %c0_103 = arith.constant 0 : index
    %c0_104 = arith.constant 0 : index
    %103 = vector.load %arg5[%c0_101, %c6_102, %c0_103, %c0_104] : memref<1x8x8x128xf32, #tpu.memory_space<vmem>>, vector<1x1x8x128xf32>
    %104 = vector.shape_cast %103 : vector<1x1x8x128xf32> to vector<8x128xf32>
    %105 = vector.shape_cast %102 : vector<8x128xf32> to vector<1x1x8x128xf32>
    tpu.vector_store %arg5[%c0_101, %c6_102, %c0_103, %c0_104], %105 {strides = array<i32>} : memref<1x8x8x128xf32, #tpu.memory_space<vmem>>, vector<1x1x8x128xf32>,
    %106 = vector.extract_strided_slice %56 {offsets = [70, 0], sizes = [8, 128], strides = [1, 1]} : vector<78x128xf32> to vector<8x128xf32>
    %c0_105 = arith.constant 0 : index
    %c7_106 = arith.constant 7 : index
    %c0_107 = arith.constant 0 : index
    %c0_108 = arith.constant 0 : index
    %107 = vector.load %arg4[%c0_105, %c7_106, %c0_107, %c0_108] : memref<1x8x8x128xf32, #tpu.memory_space<vmem>>, vector<1x1x8x128xf32>
    %108 = vector.shape_cast %107 : vector<1x1x8x128xf32> to vector<8x128xf32>
    %109 = arith.addf %106, %108 : vector<8x128xf32>
    %c0_109 = arith.constant 0 : index
    %c7_110 = arith.constant 7 : index
    %c0_111 = arith.constant 0 : index
    %c0_112 = arith.constant 0 : index
    %110 = vector.load %arg5[%c0_109, %c7_110, %c0_111, %c0_112] : memref<1x8x8x128xf32, #tpu.memory_space<vmem>>, vector<1x1x8x128xf32>
    %111 = vector.shape_cast %110 : vector<1x1x8x128xf32> to vector<8x128xf32>
    %112 = vector.shape_cast %109 : vector<8x128xf32> to vector<1x1x8x128xf32>
    tpu.vector_store %arg5[%c0_109, %c7_110, %c0_111, %c0_112], %112 {strides = array<i32>} : memref<1x8x8x128xf32, #tpu.memory_space<vmem>>, vector<1x1x8x128xf32>,
    return
  }
  func.func @transform_0(%arg0: i32) -> (i32, i32, i32) {
    %c0_i32 = arith.constant 0 : i32
    %c0_i32_0 = arith.constant 0 : i32
    %c0_i32_1 = arith.constant 0 : i32
    return %arg0, %c0_i32, %c0_i32_0 : i32, i32, i32
  }
  func.func @transform_1(%arg0: i32) -> (i32, i32, i32) {
    %c0_i32 = arith.constant 0 : i32
    %c0_i32_0 = arith.constant 0 : i32
    %c0_i32_1 = arith.constant 0 : i32
    %c0_i32_2 = arith.constant 0 : i32
    return %c0_i32, %c0_i32_0, %c0_i32_1 : i32, i32, i32
  }
  func.func @transform_2(%arg0: i32) -> (i32, i32) {
    %c0_i32 = arith.constant 0 : i32
    %c0_i32_0 = arith.constant 0 : i32
    %c0_i32_1 = arith.constant 0 : i32
    return %c0_i32, %c0_i32_0 : i32, i32
  }
  func.func @transform_3(%arg0: i32) -> (i32, i32, i32, i32) {
    %c0_i32 = arith.constant 0 : i32
    %c0_i32_0 = arith.constant 0 : i32
    %c0_i32_1 = arith.constant 0 : i32
    %c0_i32_2 = arith.constant 0 : i32
    return %arg0, %c0_i32, %c0_i32_0, %c0_i32_1 : i32, i32, i32, i32
  }
  func.func @transform_4(%arg0: i32) -> (i32, i32, i32, i32) {
    %c0_i32 = arith.constant 0 : i32
    %c0_i32_0 = arith.constant 0 : i32
    %c0_i32_1 = arith.constant 0 : i32
    %c0_i32_2 = arith.constant 0 : i32
    return %arg0, %c0_i32, %c0_i32_0, %c0_i32_1 : i32, i32, i32, i32
  }
}

</mosaic_0001>

<llo_original>
// kernel: _lambda_.4
$region0: #{_lambda_.4}
  #allocation0 [shape = 'u32[]', space=smem, size = 0x4, offset = 0x4, fixed_abs, tag = 'smem constant byte address 0x4 - core index']
  #allocation1 [shape = 'u32[72,128]{1,0:T(1,128)}', space=vmem, size = 0x9000, scoped, tag = 'internal scratch']
  %s0 = inlined_call_operand.vmem [shape: f32[512,128], index: 0, kind: input, shape index: {}]
  %s1 = inlined_call_operand.vmem [shape: f32[1,128], index: 1, kind: input, shape index: {}]
  %s2 = inlined_call_operand.vmem [shape: f32[1,128], index: 2, kind: input, shape index: {}]
  %s3 = inlined_call_operand.vmem [shape: bf16[512,128], index: 3, kind: output, shape index: {}]
  %s4 = sld [smem:[#allocation0]]
  $region45: #{_lambda_.4} parent=0
    _
  %s6 = ssub.s32 1, %s4
  %s7 = scalar_select 0, %s6, %s4
  loop: start=0, step=1, limit=4
  $region2: #{_lambda_.4} parent=0 // loop_pre_header
    _
  $region3: #{_lambda_.4} parent=0 // loop_header
    %s9 = sphi 0, %s13
    %p10 = scmp.ge.s32.totalorder %s9, 4
    %s19 = sphi 0, %s21
    %s22 = sphi 0, %s19
    %s23 = sphi 0, %s22
    %s39 = sphi 0, %s23
    %s43 = sphi 0, %s43
    %s45 = sphi 0, %s43
    %s46 = sphi 0, %s45
    %s60 = sphi 0, %s46
    %s64 = sphi 0, %s64
    %s66 = sphi 0, %s64
    %s67 = sphi 0, %s66
    %s81 = sphi 0, %s67
    %s87 = sphi 0, %s89
    %s90 = sphi 0, %s87
    %s91 = sphi 0, %s90
    %s107 = sphi 0, %s91
  $region4: #{_lambda_.4} parent=0 // loop_header_branch
    %12 = sbr.rel (%p10) target = $region8
  $region5: #{_lambda_.4} parent=0 // loop_body
    %s14 = ssub.s32 %s9, 1
    %s15 = ssub.s32 %s9, 2
    %s16 = sadd.s32 %s9, 1
    %s17 = ssub.s32 %s9, %s16
    %p18 = scmp.eq.s32.totalorder %s17, 0
    %s20 = sadd.s32 %s19, 1
    %s21 = scalar_select %p18, %s19, %s20
    %p24 = pneg %p18
    %p25 = scmp.eq.s32.totalorder %s9, 1
    %p26 = por %p24, %p25
    %p27 = scmp.ne.s32.totalorder %s19, %s22
    %p28 = scmp.eq.s32.totalorder %s9, 0
    %p29 = por %p27, %p28
    %p30 = scmp.ne.s32.totalorder %s19, %s22
    %p31 = scmp.eq.s32.totalorder %s14, 1
    %p32 = por %p30, %p31
    %p33 = scmp.ne.s32.totalorder %s22, %s23
    %p34 = scmp.eq.s32.totalorder %s14, 0
    %p35 = por %p33, %p34
    %p36 = scmp.ne.s32.totalorder %s22, %s23
    %p37 = scmp.eq.s32.totalorder %s15, 1
    %p38 = por %p36, %p37
    %p40 = scmp.ne.s32.totalorder %s23, %s39
    %p41 = scmp.eq.s32.totalorder %s15, 0
    %p42 = por %p40, %p41
    %s44 = sadd.s32 %s43, 1
    %p47 = scmp.eq.s32.totalorder %s9, 1
    %p48 = scmp.ne.s32.totalorder %s43, %s45
    %p49 = scmp.eq.s32.totalorder %s9, 0
    %p50 = por %p48, %p49
    %p51 = scmp.ne.s32.totalorder %s43, %s45
    %p52 = scmp.eq.s32.totalorder %s14, 1
    %p53 = por %p51, %p52
    %p54 = scmp.ne.s32.totalorder %s45, %s46
    %p55 = scmp.eq.s32.totalorder %s14, 0
    %p56 = por %p54, %p55
    %p57 = scmp.ne.s32.totalorder %s45, %s46
    %p58 = scmp.eq.s32.totalorder %s15, 1
    %p59 = por %p57, %p58
    %p61 = scmp.ne.s32.totalorder %s46, %s60
    %p62 = scmp.eq.s32.totalorder %s15, 0
    %p63 = por %p61, %p62
    %s65 = sadd.s32 %s64, 1
    %p68 = scmp.eq.s32.totalorder %s9, 1
    %p69 = scmp.ne.s32.totalorder %s64, %s66
    %p70 = scmp.eq.s32.totalorder %s9, 0
    %p71 = por %p69, %p70
    %p72 = scmp.ne.s32.totalorder %s64, %s66
    %p73 = scmp.eq.s32.totalorder %s14, 1
    %p74 = por %p72, %p73
    %p75 = scmp.ne.s32.totalorder %s66, %s67
    %p76 = scmp.eq.s32.totalorder %s14, 0
    %p77 = por %p75, %p76
    %p78 = scmp.ne.s32.totalorder %s66, %s67
    %p79 = scmp.eq.s32.totalorder %s15, 1
    %p80 = por %p78, %p79
    %p82 = scmp.ne.s32.totalorder %s67, %s81
    %p83 = scmp.eq.s32.totalorder %s15, 0
    %p84 = por %p82, %p83
    %s85 = ssub.s32 %s9, %s16
    %p86 = scmp.eq.s32.totalorder %s85, 0
    %s88 = sadd.s32 %s87, 1
    %s89 = scalar_select %p86, %s87, %s88
    %p92 = pneg %p86
    %p93 = scmp.eq.s32.totalorder %s9, 1
    %p94 = por %p92, %p93
    %p95 = scmp.ne.s32.totalorder %s87, %s90
    %p96 = scmp.eq.s32.totalorder %s9, 0
    %p97 = por %p95, %p96
    %p98 = scmp.ne.s32.totalorder %s87, %s90
    %p99 = scmp.eq.s32.totalorder %s14, 1
    %p100 = por %p98, %p99
    %p101 = scmp.ne.s32.totalorder %s90, %s91
    %p102 = scmp.eq.s32.totalorder %s14, 0
    %p103 = por %p101, %p102
    %p104 = scmp.ne.s32.totalorder %s90, %s91
    %p105 = scmp.eq.s32.totalorder %s15, 1
    %p106 = por %p104, %p105
    %p108 = scmp.ne.s32.totalorder %s91, %s107
    %p109 = scmp.eq.s32.totalorder %s15, 0
    %p110 = por %p108, %p109
    %p111 = scmp.le.s32.totalorder 1, %s9
    %p112 = scmp.lt.s32.totalorder %s9, 3
    %p113 = pnand %p111, %p112
    %p114 = pneg %p113
    // Predicated region
    $region9: #{_lambda_.4} parent=5 // pred_check
      _
    $region10: #{_lambda_.4} parent=5 // pred_check_branch
      %116 = sbr.rel (%p113) target = $region12
    $region11: #{_lambda_.4} parent=5 // pred_region
      %s117 = ssub.s32 %s9, 1
      // Predicated region
      $region13: #{_lambda_.4} parent=11 // pred_check
        %p118 = pneg %p56
      $region14: #{_lambda_.4} parent=11 // pred_check_branch
        %120 = sbr.rel (%p118) target = $region16
      $region15: #{_lambda_.4} parent=11 // pred_region
        _
      $region16: #{_lambda_.4} parent=11 // pred_fallthru
        _
      // Predicated region
      $region17: #{_lambda_.4} parent=11 // pred_check
        %p121 = pneg %p77
      $region18: #{_lambda_.4} parent=11 // pred_check_branch
        %123 = sbr.rel (%p121) target = $region20
      $region19: #{_lambda_.4} parent=11 // pred_region
        _
      $region20: #{_lambda_.4} parent=11 // pred_fallthru
        _
    $region12: #{_lambda_.4} parent=5 // pred_fallthru
      _
    %p124 = scmp.lt.s32.totalorder %s9, 2
    // Predicated region
    $region21: #{_lambda_.4} parent=5 // pred_check
      %p125 = pneg %p124
    $region22: #{_lambda_.4} parent=5 // pred_check_branch
      %127 = sbr.rel (%p125) target = $region24
    $region23: #{_lambda_.4} parent=5 // pred_region
      // Predicated region
      $region25: #{_lambda_.4} parent=23 // pred_check
        %p128 = pneg %p29
      $region26: #{_lambda_.4} parent=23 // pred_check_branch
        %130 = sbr.rel (%p128) target = $region28
      $region27: #{_lambda_.4} parent=23 // pred_region
        %s131 = smul.u32 32, %s9
        %p132 = scmp.lt.s32.totalorder %s131, 63
        %s133 = scalar_select %p132, %s131, 63
        %s134 = smul.addr %s133, 8
        %s135 = scalar_lea.vmem %s0, %s134
        %s136 = smul.u32 32, %s9
      $region28: #{_lambda_.4} parent=23 // pred_fallthru
        _
    $region24: #{_lambda_.4} parent=5 // pred_fallthru
      _
    %p137 = scmp.le.s32.totalorder 1, %s9
    %p138 = scmp.lt.s32.totalorder %s9, 3
    %p139 = pnand %p137, %p138
    %p140 = pneg %p139
    // Predicated region
    $region29: #{_lambda_.4} parent=5 // pred_check
      _
    $region30: #{_lambda_.4} parent=5 // pred_check_branch
      %142 = sbr.rel (%p139) target = $region32
    $region31: #{_lambda_.4} parent=5 // pred_region
      %s143 = ssub.s32 %s9, 1
      %s144 = smul.u32 32, %s14
      %p145 = scmp.lt.s32.totalorder %s144, 63
      %s146 = scalar_select %p145, %s144, 63
      %s147 = smul.addr %s146, 8
      %s148 = scalar_lea.vmem %s0, %s147
      %p149 = pneg %p35
      %p150 = pneg %p32
      %p151 = pneg %p56
      %p152 = pneg %p53
      %p153 = pneg %p77
      %p154 = pneg %p74
      %p155 = pneg %p103
      %p156 = pneg %p100
      %s157 = smul.u32 32, %s14
      %p158 = scmp.lt.s32.totalorder %s157, 63
      %s159 = scalar_select %p158, %s157, 63
      %s160 = smul.addr %s159, 4
      %s161 = scalar_lea.vmem %s3, %s160
      %s162 = smul.u32 32, %s14
      %p163 = scmp.lt.s32.totalorder %s162, 63
      %s164 = scalar_select %p163, %s162, 63
      %s165 = smul.addr %s164, 8
      %s166 = scalar_lea.vmem %s0, %s165
      %s167 = smul.u32 32, %s14
      %s168 = smul.u32 32, %s14
      %p169 = scmp.lt.s32.totalorder %s168, 63
      %s170 = scalar_select %p169, %s168, 63
      %s171 = smul.addr %s170, 4
      %s172 = scalar_lea.vmem %s3, %s171
      %s173 = smul.u32 32, %s14
      %v174 = vld [vmem:[%s166] sm:$0xff]
      %v175 = vld [vmem:[%s166 + $0x8] sm:$0xff]
      %v176 = vld [vmem:[%s166 + $0x10] sm:$0xff]
      %v177 = vld [vmem:[%s166 + $0x18] sm:$0xff]
      %v178 = vld [vmem:[%s166 + $0x20] sm:$0xff]
      %v179 = vld [vmem:[%s166 + $0x28] sm:$0xff]
      %v180 = vld [vmem:[%s166 + $0x30] sm:$0xff]
      %v181 = vld [vmem:[%s166 + $0x38] sm:$0xff]
      %v182 = vld [vmem:[%s166 + $0x40] sm:$0xff]
      %v183 = vld [vmem:[%s166 + $0x48] sm:$0xff]
      %v184 = vld [vmem:[%s166 + $0x50] sm:$0xff]
      %v185 = vld [vmem:[%s166 + $0x58] sm:$0xff]
      %v186 = vld [vmem:[%s166 + $0x60] sm:$0xff]
      %v187 = vld [vmem:[%s166 + $0x68] sm:$0xff]
      %v188 = vld [vmem:[%s166 + $0x70] sm:$0xff]
      %v189 = vld [vmem:[%s166 + $0x78] sm:$0xff]
      %v190 = vld [vmem:[%s166 + $0x80] sm:$0xff]
      %v191 = vld [vmem:[%s166 + $0x88] sm:$0xff]
      %v192 = vld [vmem:[%s166 + $0x90] sm:$0xff]
      %v193 = vld [vmem:[%s166 + $0x98] sm:$0xff]
      %v194 = vld [vmem:[%s166 + $0xa0] sm:$0xff]
      %v195 = vld [vmem:[%s166 + $0xa8] sm:$0xff]
      %v196 = vld [vmem:[%s166 + $0xb0] sm:$0xff]
      %v197 = vld [vmem:[%s166 + $0xb8] sm:$0xff]
      %v198 = vld [vmem:[%s166 + $0xc0] sm:$0xff]
      %v199 = vld [vmem:[%s166 + $0xc8] sm:$0xff]
      %v200 = vld [vmem:[%s166 + $0xd0] sm:$0xff]
      %v201 = vld [vmem:[%s166 + $0xd8] sm:$0xff]
      %v202 = vld [vmem:[%s166 + $0xe0] sm:$0xff]
      %v203 = vld [vmem:[%s166 + $0xe8] sm:$0xff]
      %v204 = vld [vmem:[%s166 + $0xf0] sm:$0xff]
      %v205 = vld [vmem:[%s166 + $0xf8] sm:$0xff]
      %v206 = vld [vmem:[%s1] sm:$0x1]
      %v208 = vperm.slane %v206, 0
      %v210 = vmul.f32 %v174, %v208
      %v211 = vmul.f32 %v175, %v208
      %v212 = vmul.f32 %v176, %v208
      %v213 = vmul.f32 %v177, %v208
      %v214 = vmul.f32 %v178, %v208
      %v215 = vmul.f32 %v179, %v208
      %v216 = vmul.f32 %v180, %v208
      %v217 = vmul.f32 %v181, %v208
      %v218 = vmul.f32 %v182, %v208
      %v219 = vmul.f32 %v183, %v208
      %v220 = vmul.f32 %v184, %v208
      %v221 = vmul.f32 %v185, %v208
      %v222 = vmul.f32 %v186, %v208
      %v223 = vmul.f32 %v187, %v208
      %v224 = vmul.f32 %v188, %v208
      %v225 = vmul.f32 %v189, %v208
      %v226 = vmul.f32 %v190, %v208
      %v227 = vmul.f32 %v191, %v208
      %v228 = vmul.f32 %v192, %v208
      %v229 = vmul.f32 %v193, %v208
      %v230 = vmul.f32 %v194, %v208
      %v231 = vmul.f32 %v195, %v208
      %v232 = vmul.f32 %v196, %v208
      %v233 = vmul.f32 %v197, %v208
      %v234 = vmul.f32 %v198, %v208
      %v235 = vmul.f32 %v199, %v208
      %v236 = vmul.f32 %v200, %v208
      %v237 = vmul.f32 %v201, %v208
      %v238 = vmul.f32 %v202, %v208
      %v239 = vmul.f32 %v203, %v208
      %v240 = vmul.f32 %v204, %v208
      %v241 = vmul.f32 %v205, %v208
      %v242 = vld [vmem:[%s2] sm:$0x1]
      %v244 = vperm.slane %v242, 0
      %v246 = vadd.f32 %v210, %v244
      %v247 = vadd.f32 %v211, %v244
      %v248 = vadd.f32 %v212, %v244
      %v249 = vadd.f32 %v213, %v244
      %v250 = vadd.f32 %v214, %v244
      %v251 = vadd.f32 %v215, %v244
      %v252 = vadd.f32 %v216, %v244
      %v253 = vadd.f32 %v217, %v244
      %v254 = vadd.f32 %v218, %v244
      %v255 = vadd.f32 %v219, %v244
      %v256 = vadd.f32 %v220, %v244
      %v257 = vadd.f32 %v221, %v244
      %v258 = vadd.f32 %v222, %v244
      %v259 = vadd.f32 %v223, %v244
      %v260 = vadd.f32 %v224, %v244
      %v261 = vadd.f32 %v225, %v244
      %v262 = vadd.f32 %v226, %v244
      %v263 = vadd.f32 %v227, %v244
      %v264 = vadd.f32 %v228, %v244
      %v265 = vadd.f32 %v229, %v244
      %v266 = vadd.f32 %v230, %v244
      %v267 = vadd.f32 %v231, %v244
      %v268 = vadd.f32 %v232, %v244
      %v269 = vadd.f32 %v233, %v244
      %v270 = vadd.f32 %v234, %v244
      %v271 = vadd.f32 %v235, %v244
      %v272 = vadd.f32 %v236, %v244
      %v273 = vadd.f32 %v237, %v244
      %v274 = vadd.f32 %v238, %v244
      %v275 = vadd.f32 %v239, %v244
      %v276 = vadd.f32 %v240, %v244
      %v277 = vadd.f32 %v241, %v244
      %v278 = vmax.f32 %v246, 0.0
      %v279 = vmax.f32 %v247, 0.0
      %v280 = vmax.f32 %v248, 0.0
      %v281 = vmax.f32 %v249, 0.0
      %v282 = vmax.f32 %v250, 0.0
      %v283 = vmax.f32 %v251, 0.0
      %v284 = vmax.f32 %v252, 0.0
      %v285 = vmax.f32 %v253, 0.0
      %v286 = vmax.f32 %v254, 0.0
      %v287 = vmax.f32 %v255, 0.0
      %v288 = vmax.f32 %v256, 0.0
      %v289 = vmax.f32 %v257, 0.0
      %v290 = vmax.f32 %v258, 0.0
      %v291 = vmax.f32 %v259, 0.0
      %v292 = vmax.f32 %v260, 0.0
      %v293 = vmax.f32 %v261, 0.0
      %v294 = vmax.f32 %v262, 0.0
      %v295 = vmax.f32 %v263, 0.0
      %v296 = vmax.f32 %v264, 0.0
      %v297 = vmax.f32 %v265, 0.0
      %v298 = vmax.f32 %v266, 0.0
      %v299 = vmax.f32 %v267, 0.0
      %v300 = vmax.f32 %v268, 0.0
      %v301 = vmax.f32 %v269, 0.0
      %v302 = vmax.f32 %v270, 0.0
      %v303 = vmax.f32 %v271, 0.0
      %v304 = vmax.f32 %v272, 0.0
      %v305 = vmax.f32 %v273, 0.0
      %v306 = vmax.f32 %v274, 0.0
      %v307 = vmax.f32 %v275, 0.0
      %v308 = vmax.f32 %v276, 0.0
      %v309 = vmax.f32 %v277, 0.0
      %v310 = vpack.c.bf16 %v278, %v278
      %v311 = vpack.c.bf16 %v279, %v279
      %v312 = vpack.c.bf16 %v280, %v280
      %v313 = vpack.c.bf16 %v281, %v281
      %v314 = vpack.c.bf16 %v282, %v282
      %v315 = vpack.c.bf16 %v283, %v283
      %v316 = vpack.c.bf16 %v284, %v284
      %v317 = vpack.c.bf16 %v285, %v285
      %v318 = vpack.c.bf16 %v286, %v286
      %v319 = vpack.c.bf16 %v287, %v287
      %v320 = vpack.c.bf16 %v288, %v288
      %v321 = vpack.c.bf16 %v289, %v289
      %v322 = vpack.c.bf16 %v290, %v290
      %v323 = vpack.c.bf16 %v291, %v291
      %v324 = vpack.c.bf16 %v292, %v292
      %v325 = vpack.c.bf16 %v293, %v293
      %v326 = vpack.c.bf16 %v294, %v294
      %v327 = vpack.c.bf16 %v295, %v295
      %v328 = vpack.c.bf16 %v296, %v296
      %v329 = vpack.c.bf16 %v297, %v297
      %v330 = vpack.c.bf16 %v298, %v298
      %v331 = vpack.c.bf16 %v299, %v299
      %v332 = vpack.c.bf16 %v300, %v300
      %v333 = vpack.c.bf16 %v301, %v301
      %v334 = vpack.c.bf16 %v302, %v302
      %v335 = vpack.c.bf16 %v303, %v303
      %v336 = vpack.c.bf16 %v304, %v304
      %v337 = vpack.c.bf16 %v305, %v305
      %v338 = vpack.c.bf16 %v306, %v306
      %v339 = vpack.c.bf16 %v307, %v307
      %v340 = vpack.c.bf16 %v308, %v308
      %v341 = vpack.c.bf16 %v309, %v309
      %342 = vst [vmem:[%s172] sm:$0xf] %v310
      %343 = vst [vmem:[%s172 + $0x4] sm:$0xf] %v311
      %344 = vst [vmem:[%s172 + $0x8] sm:$0xf] %v312
      %345 = vst [vmem:[%s172 + $0xc] sm:$0xf] %v313
      %346 = vst [vmem:[%s172 + $0x10] sm:$0xf] %v314
      %347 = vst [vmem:[%s172 + $0x14] sm:$0xf] %v315
      %348 = vst [vmem:[%s172 + $0x18] sm:$0xf] %v316
      %349 = vst [vmem:[%s172 + $0x1c] sm:$0xf] %v317
      %350 = vst [vmem:[%s172 + $0x20] sm:$0xf] %v318
      %351 = vst [vmem:[%s172 + $0x24] sm:$0xf] %v319
      %352 = vst [vmem:[%s172 + $0x28] sm:$0xf] %v320
      %353 = vst [vmem:[%s172 + $0x2c] sm:$0xf] %v321
      %354 = vst [vmem:[%s172 + $0x30] sm:$0xf] %v322
      %355 = vst [vmem:[%s172 + $0x34] sm:$0xf] %v323
      %356 = vst [vmem:[%s172 + $0x38] sm:$0xf] %v324
      %357 = vst [vmem:[%s172 + $0x3c] sm:$0xf] %v325
      %358 = vst [vmem:[%s172 + $0x40] sm:$0xf] %v326
      %359 = vst [vmem:[%s172 + $0x44] sm:$0xf] %v327
      %360 = vst [vmem:[%s172 + $0x48] sm:$0xf] %v328
      %361 = vst [vmem:[%s172 + $0x4c] sm:$0xf] %v329
      %362 = vst [vmem:[%s172 + $0x50] sm:$0xf] %v330
      %363 = vst [vmem:[%s172 + $0x54] sm:$0xf] %v331
      %364 = vst [vmem:[%s172 + $0x58] sm:$0xf] %v332
      %365 = vst [vmem:[%s172 + $0x5c] sm:$0xf] %v333
      %366 = vst [vmem:[%s172 + $0x60] sm:$0xf] %v334
      %367 = vst [vmem:[%s172 + $0x64] sm:$0xf] %v335
      %368 = vst [vmem:[%s172 + $0x68] sm:$0xf] %v336
      %369 = vst [vmem:[%s172 + $0x6c] sm:$0xf] %v337
      %370 = vst [vmem:[%s172 + $0x70] sm:$0xf] %v338
      %371 = vst [vmem:[%s172 + $0x74] sm:$0xf] %v339
      %372 = vst [vmem:[%s172 + $0x78] sm:$0xf] %v340
      %373 = vst [vmem:[%s172 + $0x7c] sm:$0xf] %v341
      %s374 = smul.u32 32, %s14
      %p375 = scmp.lt.s32.totalorder %s374, 63
      %s376 = scalar_select %p375, %s374, 63
      %s377 = smul.addr %s376, 4
      %s378 = scalar_lea.vmem %s3, %s377
      // Predicated region
      $region33: #{_lambda_.4} parent=31 // pred_check
        %p379 = pneg %p100
      $region34: #{_lambda_.4} parent=31 // pred_check_branch
        %381 = sbr.rel (%p379) target = $region36
      $region35: #{_lambda_.4} parent=31 // pred_region
        %s382 = smul.u32 32, %s14
      $region36: #{_lambda_.4} parent=31 // pred_fallthru
        _
    $region32: #{_lambda_.4} parent=5 // pred_fallthru
      _
    %p383 = scmp.le.s32.totalorder 2, %s9
    // Predicated region
    $region37: #{_lambda_.4} parent=5 // pred_check
      %p384 = pneg %p383
    $region38: #{_lambda_.4} parent=5 // pred_check_branch
      %386 = sbr.rel (%p384) target = $region40
    $region39: #{_lambda_.4} parent=5 // pred_region
      %s387 = ssub.s32 %s9, 2
      // Predicated region
      $region41: #{_lambda_.4} parent=39 // pred_check
        %p388 = pneg %p106
      $region42: #{_lambda_.4} parent=39 // pred_check_branch
        %390 = sbr.rel (%p388) target = $region44
      $region43: #{_lambda_.4} parent=39 // pred_region
        %s391 = smul.u32 32, %s15
        %p392 = scmp.lt.s32.totalorder %s391, 63
        %s393 = scalar_select %p392, %s391, 63
        %s394 = smul.addr %s393, 4
        %s395 = scalar_lea.vmem %s3, %s394
      $region44: #{_lambda_.4} parent=39 // pred_fallthru
        _
    $region40: #{_lambda_.4} parent=5 // pred_fallthru
      _
  $region6: #{_lambda_.4} parent=0 // loop_footer
    %s13 = sadd.s32 1, %s9
  $region7: #{_lambda_.4} parent=0 // loop_footer_branch
    %8 = sbr.rel target = $region3
  $region8: #{_lambda_.4} parent=0 // loop_exit
    _

// kernel: _lambda_.6
$region0: #{_lambda_.6}
  #allocation0 [shape = 'u32[]', space=smem, size = 0x4, offset = 0x4, fixed_abs, tag = 'smem constant byte address 0x4 - core index']
  #allocation1 [shape = 'u32[72,128]{1,0:T(1,128)}', space=vmem, size = 0x9000, scoped, tag = 'internal scratch']
  %s0 = inlined_call_operand.vmem [shape: bf16[128,128], index: 0, kind: input, shape index: {}]
  %s1 = inlined_call_operand.vmem [shape: bf16[128,128], index: 1, kind: input, shape index: {}]
  %s2 = inlined_call_operand.vmem [shape: f32[1,128], index: 2, kind: input, shape index: {}]
  %s3 = inlined_call_operand.vmem [shape: f32[128,128], index: 3, kind: output, shape index: {}]
  %s4 = sld [smem:[#allocation0]]
  $region45: #{_lambda_.6} parent=0
    _
  %s6 = ssub.s32 1, %s4
  %s7 = scalar_select 0, %s6, %s4
  loop: start=0, step=1, limit=4
  $region2: #{_lambda_.6} parent=0 // loop_pre_header
    _
  $region3: #{_lambda_.6} parent=0 // loop_header
    %s9 = sphi 0, %s13
    %p10 = scmp.ge.s32.totalorder %s9, 4
    %s19 = sphi 0, %s21
    %s22 = sphi 0, %s19
    %s23 = sphi 0, %s22
    %s39 = sphi 0, %s23
    %s43 = sphi 0, %s43
    %s45 = sphi 0, %s43
    %s46 = sphi 0, %s45
    %s60 = sphi 0, %s46
    %s64 = sphi 0, %s64
    %s66 = sphi 0, %s64
    %s67 = sphi 0, %s66
    %s81 = sphi 0, %s67
    %s87 = sphi 0, %s89
    %s90 = sphi 0, %s87
    %s91 = sphi 0, %s90
    %s107 = sphi 0, %s91
  $region4: #{_lambda_.6} parent=0 // loop_header_branch
    %12 = sbr.rel (%p10) target = $region8
  $region5: #{_lambda_.6} parent=0 // loop_body
    %s14 = ssub.s32 %s9, 1
    %s15 = ssub.s32 %s9, 2
    %s16 = sadd.s32 %s9, 1
    %s17 = ssub.s32 %s9, %s16
    %p18 = scmp.eq.s32.totalorder %s17, 0
    %s20 = sadd.s32 %s19, 1
    %s21 = scalar_select %p18, %s19, %s20
    %p24 = pneg %p18
    %p25 = scmp.eq.s32.totalorder %s9, 1
    %p26 = por %p24, %p25
    %p27 = scmp.ne.s32.totalorder %s19, %s22
    %p28 = scmp.eq.s32.totalorder %s9, 0
    %p29 = por %p27, %p28
    %p30 = scmp.ne.s32.totalorder %s19, %s22
    %p31 = scmp.eq.s32.totalorder %s14, 1
    %p32 = por %p30, %p31
    %p33 = scmp.ne.s32.totalorder %s22, %s23
    %p34 = scmp.eq.s32.totalorder %s14, 0
    %p35 = por %p33, %p34
    %p36 = scmp.ne.s32.totalorder %s22, %s23
    %p37 = scmp.eq.s32.totalorder %s15, 1
    %p38 = por %p36, %p37
    %p40 = scmp.ne.s32.totalorder %s23, %s39
    %p41 = scmp.eq.s32.totalorder %s15, 0
    %p42 = por %p40, %p41
    %s44 = sadd.s32 %s43, 1
    %p47 = scmp.eq.s32.totalorder %s9, 1
    %p48 = scmp.ne.s32.totalorder %s43, %s45
    %p49 = scmp.eq.s32.totalorder %s9, 0
    %p50 = por %p48, %p49
    %p51 = scmp.ne.s32.totalorder %s43, %s45
    %p52 = scmp.eq.s32.totalorder %s14, 1
    %p53 = por %p51, %p52
    %p54 = scmp.ne.s32.totalorder %s45, %s46
    %p55 = scmp.eq.s32.totalorder %s14, 0
    %p56 = por %p54, %p55
    %p57 = scmp.ne.s32.totalorder %s45, %s46
    %p58 = scmp.eq.s32.totalorder %s15, 1
    %p59 = por %p57, %p58
    %p61 = scmp.ne.s32.totalorder %s46, %s60
    %p62 = scmp.eq.s32.totalorder %s15, 0
    %p63 = por %p61, %p62
    %s65 = sadd.s32 %s64, 1
    %p68 = scmp.eq.s32.totalorder %s9, 1
    %p69 = scmp.ne.s32.totalorder %s64, %s66
    %p70 = scmp.eq.s32.totalorder %s9, 0
    %p71 = por %p69, %p70
    %p72 = scmp.ne.s32.totalorder %s64, %s66
    %p73 = scmp.eq.s32.totalorder %s14, 1
    %p74 = por %p72, %p73
    %p75 = scmp.ne.s32.totalorder %s66, %s67
    %p76 = scmp.eq.s32.totalorder %s14, 0
    %p77 = por %p75, %p76
    %p78 = scmp.ne.s32.totalorder %s66, %s67
    %p79 = scmp.eq.s32.totalorder %s15, 1
    %p80 = por %p78, %p79
    %p82 = scmp.ne.s32.totalorder %s67, %s81
    %p83 = scmp.eq.s32.totalorder %s15, 0
    %p84 = por %p82, %p83
    %s85 = ssub.s32 %s9, %s16
    %p86 = scmp.eq.s32.totalorder %s85, 0
    %s88 = sadd.s32 %s87, 1
    %s89 = scalar_select %p86, %s87, %s88
    %p92 = pneg %p86
    %p93 = scmp.eq.s32.totalorder %s9, 1
    %p94 = por %p92, %p93
    %p95 = scmp.ne.s32.totalorder %s87, %s90
    %p96 = scmp.eq.s32.totalorder %s9, 0
    %p97 = por %p95, %p96
    %p98 = scmp.ne.s32.totalorder %s87, %s90
    %p99 = scmp.eq.s32.totalorder %s14, 1
    %p100 = por %p98, %p99
    %p101 = scmp.ne.s32.totalorder %s90, %s91
    %p102 = scmp.eq.s32.totalorder %s14, 0
    %p103 = por %p101, %p102
    %p104 = scmp.ne.s32.totalorder %s90, %s91
    %p105 = scmp.eq.s32.totalorder %s15, 1
    %p106 = por %p104, %p105
    %p108 = scmp.ne.s32.totalorder %s91, %s107
    %p109 = scmp.eq.s32.totalorder %s15, 0
    %p110 = por %p108, %p109
    %p111 = scmp.le.s32.totalorder 1, %s9
    %p112 = scmp.lt.s32.totalorder %s9, 3
    %p113 = pnand %p111, %p112
    %p114 = pneg %p113
    // Predicated region
    $region9: #{_lambda_.6} parent=5 // pred_check
      _
    $region10: #{_lambda_.6} parent=5 // pred_check_branch
      %116 = sbr.rel (%p113) target = $region12
    $region11: #{_lambda_.6} parent=5 // pred_region
      %s117 = ssub.s32 %s9, 1
      // Predicated region
      $region13: #{_lambda_.6} parent=11 // pred_check
        %p118 = pneg %p56
      $region14: #{_lambda_.6} parent=11 // pred_check_branch
        %120 = sbr.rel (%p118) target = $region16
      $region15: #{_lambda_.6} parent=11 // pred_region
        _
      $region16: #{_lambda_.6} parent=11 // pred_fallthru
        _
      // Predicated region
      $region17: #{_lambda_.6} parent=11 // pred_check
        %p121 = pneg %p77
      $region18: #{_lambda_.6} parent=11 // pred_check_branch
        %123 = sbr.rel (%p121) target = $region20
      $region19: #{_lambda_.6} parent=11 // pred_region
        _
      $region20: #{_lambda_.6} parent=11 // pred_fallthru
        _
    $region12: #{_lambda_.6} parent=5 // pred_fallthru
      _
    %p124 = scmp.lt.s32.totalorder %s9, 2
    // Predicated region
    $region21: #{_lambda_.6} parent=5 // pred_check
      %p125 = pneg %p124
    $region22: #{_lambda_.6} parent=5 // pred_check_branch
      %127 = sbr.rel (%p125) target = $region24
    $region23: #{_lambda_.6} parent=5 // pred_region
      // Predicated region
      $region25: #{_lambda_.6} parent=23 // pred_check
        %p128 = pneg %p29
      $region26: #{_lambda_.6} parent=23 // pred_check_branch
        %130 = sbr.rel (%p128) target = $region28
      $region27: #{_lambda_.6} parent=23 // pred_region
        %s131 = smul.u32 8, %s9
        %p132 = scmp.lt.s32.totalorder %s131, 15
        %s133 = scalar_select %p132, %s131, 15
        %s134 = smul.addr %s133, 4
        %s135 = scalar_lea.vmem %s0, %s134
        %s136 = smul.u32 8, %s9
      $region28: #{_lambda_.6} parent=23 // pred_fallthru
        _
    $region24: #{_lambda_.6} parent=5 // pred_fallthru
      _
    %p137 = scmp.le.s32.totalorder 1, %s9
    %p138 = scmp.lt.s32.totalorder %s9, 3
    %p139 = pnand %p137, %p138
    %p140 = pneg %p139
    // Predicated region
    $region29: #{_lambda_.6} parent=5 // pred_check
      _
    $region30: #{_lambda_.6} parent=5 // pred_check_branch
      %142 = sbr.rel (%p139) target = $region32
    $region31: #{_lambda_.6} parent=5 // pred_region
      %s143 = ssub.s32 %s9, 1
      %s144 = smul.u32 8, %s14
      %p145 = scmp.lt.s32.totalorder %s144, 15
      %s146 = scalar_select %p145, %s144, 15
      %s147 = smul.addr %s146, 4
      %s148 = scalar_lea.vmem %s0, %s147
      %p149 = pneg %p35
      %p150 = pneg %p32
      %p151 = pneg %p56
      %p152 = pneg %p53
      %p153 = pneg %p77
      %p154 = pneg %p74
      %p155 = pneg %p103
      %p156 = pneg %p100
      %s157 = smul.u32 8, %s14
      %p158 = scmp.lt.s32.totalorder %s157, 15
      %s159 = scalar_select %p158, %s157, 15
      %s160 = smul.addr %s159, 8
      %s161 = scalar_lea.vmem %s3, %s160
      %s162 = smul.u32 8, %s14
      %p163 = scmp.lt.s32.totalorder %s162, 15
      %s164 = scalar_select %p163, %s162, 15
      %s165 = smul.addr %s164, 4
      %s166 = scalar_lea.vmem %s0, %s165
      %s167 = smul.u32 8, %s14
      %s168 = smul.u32 8, %s14
      %p169 = scmp.lt.s32.totalorder %s168, 15
      %s170 = scalar_select %p169, %s168, 15
      %s171 = smul.addr %s170, 8
      %s172 = scalar_lea.vmem %s3, %s171
      %s173 = smul.u32 8, %s14
      %v174 = vld [vmem:[%s166] sm:$0xf]
      %v175 = vld [vmem:[%s166 + $0x4] sm:$0xf]
      %v176 = vld [vmem:[%s166 + $0x8] sm:$0xf]
      %v177 = vld [vmem:[%s166 + $0xc] sm:$0xf]
      %v178 = vld [vmem:[%s166 + $0x10] sm:$0xf]
      %v179 = vld [vmem:[%s166 + $0x14] sm:$0xf]
      %v180 = vld [vmem:[%s166 + $0x18] sm:$0xf]
      %v181 = vld [vmem:[%s166 + $0x1c] sm:$0xf]
      %v182 = vld [vmem:[%s1] sm:$0xf]
      %v183 = vld [vmem:[%s1 + $0x4] sm:$0xf]
      %v184 = vld [vmem:[%s1 + $0x8] sm:$0xf]
      %v185 = vld [vmem:[%s1 + $0xc] sm:$0xf]
      %v186 = vld [vmem:[%s1 + $0x10] sm:$0xf]
      %v187 = vld [vmem:[%s1 + $0x14] sm:$0xf]
      %v188 = vld [vmem:[%s1 + $0x18] sm:$0xf]
      %v189 = vld [vmem:[%s1 + $0x1c] sm:$0xf]
      %v190 = vld [vmem:[%s1 + $0x20] sm:$0xf]
      %v191 = vld [vmem:[%s1 + $0x24] sm:$0xf]
      %v192 = vld [vmem:[%s1 + $0x28] sm:$0xf]
      %v193 = vld [vmem:[%s1 + $0x2c] sm:$0xf]
      %v194 = vld [vmem:[%s1 + $0x30] sm:$0xf]
      %v195 = vld [vmem:[%s1 + $0x34] sm:$0xf]
      %v196 = vld [vmem:[%s1 + $0x38] sm:$0xf]
      %v197 = vld [vmem:[%s1 + $0x3c] sm:$0xf]
      %v198 = vld [vmem:[%s2] sm:$0x1]
      %v200 = vperm.slane %v198, 0
      %v210 = vunpack.c.l.b16 %v174
      %v211 = vunpack.c.l.b16 %v175
      %v212 = vunpack.c.l.b16 %v176
      %v213 = vunpack.c.l.b16 %v177
      %v214 = vunpack.c.l.b16 %v178
      %v215 = vunpack.c.l.b16 %v179
      %v216 = vunpack.c.l.b16 %v180
      %v217 = vunpack.c.l.b16 %v181
      %v218 = vpack.c.b16 %v211, %v210
      %v219 = vpack.c.b16 %v213, %v212
      %v220 = vpack.c.b16 %v215, %v214
      %v221 = vpack.c.b16 %v217, %v216
      %v242 = vunpack.c.l.b16 %v182
      %v243 = vunpack.c.l.b16 %v183
      %v244 = vunpack.c.l.b16 %v184
      %v245 = vunpack.c.l.b16 %v185
      %v246 = vunpack.c.l.b16 %v186
      %v247 = vunpack.c.l.b16 %v187
      %v248 = vunpack.c.l.b16 %v188
      %v249 = vunpack.c.l.b16 %v189
      %v250 = vunpack.c.l.b16 %v190
      %v251 = vunpack.c.l.b16 %v191
      %v252 = vunpack.c.l.b16 %v192
      %v253 = vunpack.c.l.b16 %v193
      %v254 = vunpack.c.l.b16 %v194
      %v255 = vunpack.c.l.b16 %v195
      %v256 = vunpack.c.l.b16 %v196
      %v257 = vunpack.c.l.b16 %v197
      %v258 = vpack.c.b16 %v243, %v242
      %v259 = vpack.c.b16 %v245, %v244
      %v260 = vpack.c.b16 %v247, %v246
      %v261 = vpack.c.b16 %v249, %v248
      %v262 = vpack.c.b16 %v251, %v250
      %v263 = vpack.c.b16 %v253, %v252
      %v264 = vpack.c.b16 %v255, %v254
      %v265 = vpack.c.b16 %v257, %v256
      %274 = vmatpush.bf16.msra.mxu0 %v265
      %275 = vmatpush.bf16.msra.mxu0 %v264
      %276 = vmatpush.bf16.msra.mxu0 %v263
      %277 = vmatpush.bf16.msra.mxu0 %v262
      %278 = vmatpush.bf16.msra.mxu0 %v261
      %279 = vmatpush.bf16.msra.mxu0 %v260
      %280 = vmatpush.bf16.msra.mxu0 %v259
      %281 = vmatpush.bf16.msra.mxu0 %v258
      %282 = vmatmul.bf16.gmra.mxu0 %v218
      %v283 = vpop.f32.mrf.mxu0
      %v284 = vadd.f32 %v200, %v283
      %v285 = vpop.f32.mrf.mxu0
      %v286 = vadd.f32 %v200, %v285
      %287 = vmatmul.bf16.gmra.mxu0 %v219
      %v288 = vpop.f32.mrf.mxu0
      %v289 = vadd.f32 %v200, %v288
      %v290 = vpop.f32.mrf.mxu0
      %v291 = vadd.f32 %v200, %v290
      %292 = vmatmul.bf16.gmra.mxu0 %v220
      %v293 = vpop.f32.mrf.mxu0
      %v294 = vadd.f32 %v200, %v293
      %v295 = vpop.f32.mrf.mxu0
      %v296 = vadd.f32 %v200, %v295
      %297 = vmatmul.bf16.gmra.mxu0 %v221
      %v298 = vpop.f32.mrf.mxu0
      %v299 = vadd.f32 %v200, %v298
      %v300 = vpop.f32.mrf.mxu0
      %v301 = vadd.f32 %v200, %v300
      %302 = vdwg.mxu0
      %303 = vst [vmem:[%s172] sm:$0xff] %v284
      %304 = vst [vmem:[%s172 + $0x8] sm:$0xff] %v286
      %305 = vst [vmem:[%s172 + $0x10] sm:$0xff] %v289
      %306 = vst [vmem:[%s172 + $0x18] sm:$0xff] %v291
      %307 = vst [vmem:[%s172 + $0x20] sm:$0xff] %v294
      %308 = vst [vmem:[%s172 + $0x28] sm:$0xff] %v296
      %309 = vst [vmem:[%s172 + $0x30] sm:$0xff] %v299
      %310 = vst [vmem:[%s172 + $0x38] sm:$0xff] %v301
      %s311 = smul.u32 8, %s14
      %p312 = scmp.lt.s32.totalorder %s311, 15
      %s313 = scalar_select %p312, %s311, 15
      %s314 = smul.addr %s313, 8
      %s315 = scalar_lea.vmem %s3, %s314
      // Predicated region
      $region33: #{_lambda_.6} parent=31 // pred_check
        %p316 = pneg %p100
      $region34: #{_lambda_.6} parent=31 // pred_check_branch
        %318 = sbr.rel (%p316) target = $region36
      $region35: #{_lambda_.6} parent=31 // pred_region
        %s319 = smul.u32 8, %s14
      $region36: #{_lambda_.6} parent=31 // pred_fallthru
        _
    $region32: #{_lambda_.6} parent=5 // pred_fallthru
      _
    %p320 = scmp.le.s32.totalorder 2, %s9
    // Predicated region
    $region37: #{_lambda_.6} parent=5 // pred_check
      %p321 = pneg %p320
    $region38: #{_lambda_.6} parent=5 // pred_check_branch
      %323 = sbr.rel (%p321) target = $region40
    $region39: #{_lambda_.6} parent=5 // pred_region
      %s324 = ssub.s32 %s9, 2
      // Predicated region
      $region41: #{_lambda_.6} parent=39 // pred_check
        %p325 = pneg %p106
      $region42: #{_lambda_.6} parent=39 // pred_check_branch
        %327 = sbr.rel (%p325) target = $region44
      $region43: #{_lambda_.6} parent=39 // pred_region
        %s328 = smul.u32 8, %s15
        %p329 = scmp.lt.s32.totalorder %s328, 15
        %s330 = scalar_select %p329, %s328, 15
        %s331 = smul.addr %s330, 8
        %s332 = scalar_lea.vmem %s3, %s331
      $region44: #{_lambda_.6} parent=39 // pred_fallthru
        _
    $region40: #{_lambda_.6} parent=5 // pred_fallthru
      _
  $region6: #{_lambda_.6} parent=0 // loop_footer
    %s13 = sadd.s32 1, %s9
  $region7: #{_lambda_.6} parent=0 // loop_footer_branch
    %8 = sbr.rel target = $region3
  $region8: #{_lambda_.6} parent=0 // loop_exit
    _

// kernel: _lambda_.5
$region0: #{_lambda_.5}
  #allocation0 [shape = 'u32[]', space=smem, size = 0x4, offset = 0x4, fixed_abs, tag = 'smem constant byte address 0x4 - core index']
  #allocation1 [shape = 'u32[72,128]{1,0:T(1,128)}', space=vmem, size = 0x9000, scoped, tag = 'internal scratch']
  %s0 = inlined_call_operand.vmem [shape: bf16[2,324,128], index: 0, kind: input, shape index: {}]
  %s1 = inlined_call_operand.vmem [shape: bf16[9,128,128], index: 1, kind: input, shape index: {}]
  %s2 = inlined_call_operand.vmem [shape: f32[1,128], index: 2, kind: input, shape index: {}]
  %s3 = inlined_call_operand.vmem [shape: f32[1,128], index: 3, kind: input, shape index: {}]
  %s4 = inlined_call_operand.vmem [shape: f32[1,128], index: 4, kind: input, shape index: {}]
  %s5 = inlined_call_operand.vmem [shape: bf16[2,8,8,128], index: 5, kind: output, shape index: {}]
  %s6 = sld [smem:[#allocation0]]
  $region53: #{_lambda_.5} parent=0
    _
  %s8 = ssub.s32 1, %s6
  %s9 = scalar_select 0, %s8, %s6
  loop: start=0, step=1, limit=4
  $region2: #{_lambda_.5} parent=0 // loop_pre_header
    _
  $region3: #{_lambda_.5} parent=0 // loop_header
    %s11 = sphi 0, %s15
    %p12 = scmp.ge.s32.totalorder %s11, 4
    %s21 = sphi 0, %s23
    %s24 = sphi 0, %s21
    %s25 = sphi 0, %s24
    %s41 = sphi 0, %s25
    %s45 = sphi 0, %s45
    %s47 = sphi 0, %s45
    %s48 = sphi 0, %s47
    %s62 = sphi 0, %s48
    %s66 = sphi 0, %s66
    %s68 = sphi 0, %s66
    %s69 = sphi 0, %s68
    %s83 = sphi 0, %s69
    %s87 = sphi 0, %s87
    %s89 = sphi 0, %s87
    %s90 = sphi 0, %s89
    %s104 = sphi 0, %s90
    %s108 = sphi 0, %s108
    %s110 = sphi 0, %s108
    %s111 = sphi 0, %s110
    %s125 = sphi 0, %s111
    %s131 = sphi 0, %s133
    %s134 = sphi 0, %s131
    %s135 = sphi 0, %s134
    %s151 = sphi 0, %s135
  $region4: #{_lambda_.5} parent=0 // loop_header_branch
    %14 = sbr.rel (%p12) target = $region8
  $region5: #{_lambda_.5} parent=0 // loop_body
    %s16 = ssub.s32 %s11, 1
    %s17 = ssub.s32 %s11, 2
    %s18 = sadd.s32 %s11, 1
    %s19 = ssub.s32 %s11, %s18
    %p20 = scmp.eq.s32.totalorder %s19, 0
    %s22 = sadd.s32 %s21, 1
    %s23 = scalar_select %p20, %s21, %s22
    %p26 = pneg %p20
    %p27 = scmp.eq.s32.totalorder %s11, 1
    %p28 = por %p26, %p27
    %p29 = scmp.ne.s32.totalorder %s21, %s24
    %p30 = scmp.eq.s32.totalorder %s11, 0
    %p31 = por %p29, %p30
    %p32 = scmp.ne.s32.totalorder %s21, %s24
    %p33 = scmp.eq.s32.totalorder %s16, 1
    %p34 = por %p32, %p33
    %p35 = scmp.ne.s32.totalorder %s24, %s25
    %p36 = scmp.eq.s32.totalorder %s16, 0
    %p37 = por %p35, %p36
    %p38 = scmp.ne.s32.totalorder %s24, %s25
    %p39 = scmp.eq.s32.totalorder %s17, 1
    %p40 = por %p38, %p39
    %p42 = scmp.ne.s32.totalorder %s25, %s41
    %p43 = scmp.eq.s32.totalorder %s17, 0
    %p44 = por %p42, %p43
    %s46 = sadd.s32 %s45, 1
    %p49 = scmp.eq.s32.totalorder %s11, 1
    %p50 = scmp.ne.s32.totalorder %s45, %s47
    %p51 = scmp.eq.s32.totalorder %s11, 0
    %p52 = por %p50, %p51
    %p53 = scmp.ne.s32.totalorder %s45, %s47
    %p54 = scmp.eq.s32.totalorder %s16, 1
    %p55 = por %p53, %p54
    %p56 = scmp.ne.s32.totalorder %s47, %s48
    %p57 = scmp.eq.s32.totalorder %s16, 0
    %p58 = por %p56, %p57
    %p59 = scmp.ne.s32.totalorder %s47, %s48
    %p60 = scmp.eq.s32.totalorder %s17, 1
    %p61 = por %p59, %p60
    %p63 = scmp.ne.s32.totalorder %s48, %s62
    %p64 = scmp.eq.s32.totalorder %s17, 0
    %p65 = por %p63, %p64
    %s67 = sadd.s32 %s66, 1
    %p70 = scmp.eq.s32.totalorder %s11, 1
    %p71 = scmp.ne.s32.totalorder %s66, %s68
    %p72 = scmp.eq.s32.totalorder %s11, 0
    %p73 = por %p71, %p72
    %p74 = scmp.ne.s32.totalorder %s66, %s68
    %p75 = scmp.eq.s32.totalorder %s16, 1
    %p76 = por %p74, %p75
    %p77 = scmp.ne.s32.totalorder %s68, %s69
    %p78 = scmp.eq.s32.totalorder %s16, 0
    %p79 = por %p77, %p78
    %p80 = scmp.ne.s32.totalorder %s68, %s69
    %p81 = scmp.eq.s32.totalorder %s17, 1
    %p82 = por %p80, %p81
    %p84 = scmp.ne.s32.totalorder %s69, %s83
    %p85 = scmp.eq.s32.totalorder %s17, 0
    %p86 = por %p84, %p85
    %s88 = sadd.s32 %s87, 1
    %p91 = scmp.eq.s32.totalorder %s11, 1
    %p92 = scmp.ne.s32.totalorder %s87, %s89
    %p93 = scmp.eq.s32.totalorder %s11, 0
    %p94 = por %p92, %p93
    %p95 = scmp.ne.s32.totalorder %s87, %s89
    %p96 = scmp.eq.s32.totalorder %s16, 1
    %p97 = por %p95, %p96
    %p98 = scmp.ne.s32.totalorder %s89, %s90
    %p99 = scmp.eq.s32.totalorder %s16, 0
    %p100 = por %p98, %p99
    %p101 = scmp.ne.s32.totalorder %s89, %s90
    %p102 = scmp.eq.s32.totalorder %s17, 1
    %p103 = por %p101, %p102
    %p105 = scmp.ne.s32.totalorder %s90, %s104
    %p106 = scmp.eq.s32.totalorder %s17, 0
    %p107 = por %p105, %p106
    %s109 = sadd.s32 %s108, 1
    %p112 = scmp.eq.s32.totalorder %s11, 1
    %p113 = scmp.ne.s32.totalorder %s108, %s110
    %p114 = scmp.eq.s32.totalorder %s11, 0
    %p115 = por %p113, %p114
    %p116 = scmp.ne.s32.totalorder %s108, %s110
    %p117 = scmp.eq.s32.totalorder %s16, 1
    %p118 = por %p116, %p117
    %p119 = scmp.ne.s32.totalorder %s110, %s111
    %p120 = scmp.eq.s32.totalorder %s16, 0
    %p121 = por %p119, %p120
    %p122 = scmp.ne.s32.totalorder %s110, %s111
    %p123 = scmp.eq.s32.totalorder %s17, 1
    %p124 = por %p122, %p123
    %p126 = scmp.ne.s32.totalorder %s111, %s125
    %p127 = scmp.eq.s32.totalorder %s17, 0
    %p128 = por %p126, %p127
    %s129 = ssub.s32 %s11, %s18
    %p130 = scmp.eq.s32.totalorder %s129, 0
    %s132 = sadd.s32 %s131, 1
    %s133 = scalar_select %p130, %s131, %s132
    %p136 = pneg %p130
    %p137 = scmp.eq.s32.totalorder %s11, 1
    %p138 = por %p136, %p137
    %p139 = scmp.ne.s32.totalorder %s131, %s134
    %p140 = scmp.eq.s32.totalorder %s11, 0
    %p141 = por %p139, %p140
    %p142 = scmp.ne.s32.totalorder %s131, %s134
    %p143 = scmp.eq.s32.totalorder %s16, 1
    %p144 = por %p142, %p143
    %p145 = scmp.ne.s32.totalorder %s134, %s135
    %p146 = scmp.eq.s32.totalorder %s16, 0
    %p147 = por %p145, %p146
    %p148 = scmp.ne.s32.totalorder %s134, %s135
    %p149 = scmp.eq.s32.totalorder %s17, 1
    %p150 = por %p148, %p149
    %p152 = scmp.ne.s32.totalorder %s135, %s151
    %p153 = scmp.eq.s32.totalorder %s17, 0
    %p154 = por %p152, %p153
    %p155 = scmp.le.s32.totalorder 1, %s11
    %p156 = scmp.lt.s32.totalorder %s11, 3
    %p157 = pnand %p155, %p156
    %p158 = pneg %p157
    // Predicated region
    $region9: #{_lambda_.5} parent=5 // pred_check
      _
    $region10: #{_lambda_.5} parent=5 // pred_check_branch
      %160 = sbr.rel (%p157) target = $region12
    $region11: #{_lambda_.5} parent=5 // pred_region
      %s161 = ssub.s32 %s11, 1
      // Predicated region
      $region13: #{_lambda_.5} parent=11 // pred_check
        %p162 = pneg %p58
      $region14: #{_lambda_.5} parent=11 // pred_check_branch
        %164 = sbr.rel (%p162) target = $region16
      $region15: #{_lambda_.5} parent=11 // pred_region
        _
      $region16: #{_lambda_.5} parent=11 // pred_fallthru
        _
      // Predicated region
      $region17: #{_lambda_.5} parent=11 // pred_check
        %p165 = pneg %p79
      $region18: #{_lambda_.5} parent=11 // pred_check_branch
        %167 = sbr.rel (%p165) target = $region20
      $region19: #{_lambda_.5} parent=11 // pred_region
        _
      $region20: #{_lambda_.5} parent=11 // pred_fallthru
        _
      // Predicated region
      $region21: #{_lambda_.5} parent=11 // pred_check
        %p168 = pneg %p100
      $region22: #{_lambda_.5} parent=11 // pred_check_branch
        %170 = sbr.rel (%p168) target = $region24
      $region23: #{_lambda_.5} parent=11 // pred_region
        _
      $region24: #{_lambda_.5} parent=11 // pred_fallthru
        _
      // Predicated region
      $region25: #{_lambda_.5} parent=11 // pred_check
        %p171 = pneg %p121
      $region26: #{_lambda_.5} parent=11 // pred_check_branch
        %173 = sbr.rel (%p171) target = $region28
      $region27: #{_lambda_.5} parent=11 // pred_region
        _
      $region28: #{_lambda_.5} parent=11 // pred_fallthru
        _
    $region12: #{_lambda_.5} parent=5 // pred_fallthru
      _
    %p174 = scmp.lt.s32.totalorder %s11, 2
    // Predicated region
    $region29: #{_lambda_.5} parent=5 // pred_check
      %p175 = pneg %p174
    $region30: #{_lambda_.5} parent=5 // pred_check_branch
      %177 = sbr.rel (%p175) target = $region32
    $region31: #{_lambda_.5} parent=5 // pred_region
      // Predicated region
      $region33: #{_lambda_.5} parent=31 // pred_check
        %p178 = pneg %p31
      $region34: #{_lambda_.5} parent=31 // pred_check_branch
        %180 = sbr.rel (%p178) target = $region36
      $region35: #{_lambda_.5} parent=31 // pred_region
        %p181 = scmp.lt.s32.totalorder %s11, 1
        %s182 = scalar_select %p181, %s11, 1
        %s183 = smul.addr %s182, 41
        %s184 = smul.addr %s183, 4
        %s185 = scalar_lea.vmem %s0, %s184
      $region36: #{_lambda_.5} parent=31 // pred_fallthru
        _
    $region32: #{_lambda_.5} parent=5 // pred_fallthru
      _
    %p186 = scmp.le.s32.totalorder 1, %s11
    %p187 = scmp.lt.s32.totalorder %s11, 3
    %p188 = pnand %p186, %p187
    %p189 = pneg %p188
    // Predicated region
    $region37: #{_lambda_.5} parent=5 // pred_check
      _
    $region38: #{_lambda_.5} parent=5 // pred_check_branch
      %191 = sbr.rel (%p188) target = $region40
    $region39: #{_lambda_.5} parent=5 // pred_region
      %s192 = ssub.s32 %s11, 1
      %p193 = scmp.lt.s32.totalorder %s16, 1
      %s194 = scalar_select %p193, %s16, 1
      %s195 = smul.addr %s194, 41
      %s196 = smul.addr %s195, 4
      %s197 = scalar_lea.vmem %s0, %s196
      %p198 = pneg %p37
      %p199 = pneg %p34
      %p200 = pneg %p58
      %p201 = pneg %p55
      %p202 = pneg %p79
      %p203 = pneg %p76
      %p204 = pneg %p100
      %p205 = pneg %p97
      %p206 = pneg %p121
      %p207 = pneg %p118
      %p208 = pneg %p147
      %p209 = pneg %p144
      %p210 = scmp.lt.s32.totalorder %s16, 1
      %s211 = scalar_select %p210, %s16, 1
      %s212 = smul.addr %s211, 8
      %s213 = smul.addr %s212, 4
      %s214 = scalar_lea.vmem %s5, %s213
      %p215 = scmp.lt.s32.totalorder %s16, 1
      %s216 = scalar_select %p215, %s16, 1
      %s217 = smul.addr %s216, 41
      %s218 = smul.addr %s217, 4
      %s219 = scalar_lea.vmem %s0, %s218
      %p220 = scmp.lt.s32.totalorder %s16, 1
      %s221 = scalar_select %p220, %s16, 1
      %s222 = smul.addr %s221, 8
      %s223 = smul.addr %s222, 4
      %s224 = scalar_lea.vmem %s5, %s223
      %v225 = vld [vmem:[%s2] sm:$0x1]
      %v227 = vperm.slane %v225, 0
      %v229 = vld [vmem:[%s219] sm:$0xf]
      %v230 = vld [vmem:[%s219 + $0x4] sm:$0xf]
      %v231 = vld [vmem:[%s219 + $0x8] sm:$0xf]
      %v232 = vld [vmem:[%s219 + $0xc] sm:$0xf]
      %v233 = vld [vmem:[%s219 + $0x10] sm:$0xf]
      %v234 = vld [vmem:[%s219 + $0x14] sm:$0xf]
      %v235 = vld [vmem:[%s219 + $0x18] sm:$0xf]
      %v236 = vld [vmem:[%s219 + $0x1c] sm:$0xf]
      %v237 = vld [vmem:[%s219 + $0x20] sm:$0xf]
      %v238 = vld [vmem:[%s1] sm:$0xf]
      %v239 = vld [vmem:[%s1 + $0x4] sm:$0xf]
      %v240 = vld [vmem:[%s1 + $0x8] sm:$0xf]
      %v241 = vld [vmem:[%s1 + $0xc] sm:$0xf]
      %v242 = vld [vmem:[%s1 + $0x10] sm:$0xf]
      %v243 = vld [vmem:[%s1 + $0x14] sm:$0xf]
      %v244 = vld [vmem:[%s1 + $0x18] sm:$0xf]
      %v245 = vld [vmem:[%s1 + $0x1c] sm:$0xf]
      %v246 = vld [vmem:[%s1 + $0x20] sm:$0xf]
      %v247 = vld [vmem:[%s1 + $0x24] sm:$0xf]
      %v248 = vld [vmem:[%s1 + $0x28] sm:$0xf]
      %v249 = vld [vmem:[%s1 + $0x2c] sm:$0xf]
      %v250 = vld [vmem:[%s1 + $0x30] sm:$0xf]
      %v251 = vld [vmem:[%s1 + $0x34] sm:$0xf]
      %v252 = vld [vmem:[%s1 + $0x38] sm:$0xf]
      %v253 = vld [vmem:[%s1 + $0x3c] sm:$0xf]
      %v263 = vunpack.c.l.b16 %v229
      %v264 = vunpack.c.l.b16 %v230
      %v265 = vunpack.c.l.b16 %v231
      %v266 = vunpack.c.l.b16 %v232
      %v267 = vunpack.c.l.b16 %v233
      %v268 = vunpack.c.l.b16 %v234
      %v269 = vunpack.c.l.b16 %v235
      %v270 = vunpack.c.l.b16 %v236
      %v271 = vunpack.c.l.b16 %v237
      %v272 = vpack.c.b16 %v264, %v263
      %v273 = vpack.c.b16 %v266, %v265
      %v274 = vpack.c.b16 %v268, %v267
      %v275 = vpack.c.b16 %v270, %v269
      %v276 = vpack.c.b16 %v271, %v271
      %v298 = vunpack.c.l.b16 %v238
      %v299 = vunpack.c.l.b16 %v239
      %v300 = vunpack.c.l.b16 %v240
      %v301 = vunpack.c.l.b16 %v241
      %v302 = vunpack.c.l.b16 %v242
      %v303 = vunpack.c.l.b16 %v243
      %v304 = vunpack.c.l.b16 %v244
      %v305 = vunpack.c.l.b16 %v245
      %v306 = vunpack.c.l.b16 %v246
      %v307 = vunpack.c.l.b16 %v247
      %v308 = vunpack.c.l.b16 %v248
      %v309 = vunpack.c.l.b16 %v249
      %v310 = vunpack.c.l.b16 %v250
      %v311 = vunpack.c.l.b16 %v251
      %v312 = vunpack.c.l.b16 %v252
      %v313 = vunpack.c.l.b16 %v253
      %v314 = vpack.c.b16 %v299, %v298
      %v315 = vpack.c.b16 %v301, %v300
      %v316 = vpack.c.b16 %v303, %v302
      %v317 = vpack.c.b16 %v305, %v304
      %v318 = vpack.c.b16 %v307, %v306
      %v319 = vpack.c.b16 %v309, %v308
      %v320 = vpack.c.b16 %v311, %v310
      %v321 = vpack.c.b16 %v313, %v312
      %330 = vmatpush.bf16.msra.mxu0 %v321
      %331 = vmatpush.bf16.msra.mxu0 %v320
      %332 = vmatpush.bf16.msra.mxu0 %v319
      %333 = vmatpush.bf16.msra.mxu0 %v318
      %334 = vmatpush.bf16.msra.mxu0 %v317
      %335 = vmatpush.bf16.msra.mxu0 %v316
      %336 = vmatpush.bf16.msra.mxu0 %v315
      %337 = vmatpush.bf16.msra.mxu0 %v314
      %338 = vmatmul.bf16.gmra.mxu0 %v272
      %v339 = vpop.f32.mrf.mxu0
      %v340 = vadd.f32 0.0, %v339
      %v341 = vpop.f32.mrf.mxu0
      %v342 = vadd.f32 0.0, %v341
      %343 = vmatmul.bf16.gmra.mxu0 %v273
      %v344 = vpop.f32.mrf.mxu0
      %v345 = vadd.f32 0.0, %v344
      %v346 = vpop.f32.mrf.mxu0
      %v347 = vadd.f32 0.0, %v346
      %348 = vmatmul.bf16.gmra.mxu0 %v274
      %v349 = vpop.f32.mrf.mxu0
      %v350 = vadd.f32 0.0, %v349
      %v351 = vpop.f32.mrf.mxu0
      %v352 = vadd.f32 0.0, %v351
      %353 = vmatmul.bf16.gmra.mxu0 %v275
      %v354 = vpop.f32.mrf.mxu0
      %v355 = vadd.f32 0.0, %v354
      %v356 = vpop.f32.mrf.mxu0
      %v357 = vadd.f32 0.0, %v356
      %358 = vmatmul.bf16.gmra.mxu0 %v276
      %v359 = vpop.f32.mrf.mxu0
      %v360 = vadd.f32 0.0, %v359
      %v361 = vpop.f32.mrf.mxu0
      %362 = vdwg.mxu0
      %v363 = vadd.f32 %v227, %v340
      %v364 = vadd.f32 %v227, %v342
      %v365 = vadd.f32 %v227, %v345
      %v366 = vadd.f32 %v227, %v347
      %v367 = vadd.f32 %v227, %v350
      %v368 = vadd.f32 %v227, %v352
      %v369 = vadd.f32 %v227, %v355
      %v370 = vadd.f32 %v227, %v357
      %v371 = vadd.f32 %v227, %v360
      %v372 = vld [vmem:[%s219 + $0x28] sm:$0xf]
      %v373 = vld [vmem:[%s219 + $0x2c] sm:$0xf]
      %v374 = vld [vmem:[%s219 + $0x30] sm:$0xf]
      %v375 = vld [vmem:[%s219 + $0x34] sm:$0xf]
      %v376 = vld [vmem:[%s219 + $0x38] sm:$0xf]
      %v377 = vld [vmem:[%s219 + $0x3c] sm:$0xf]
      %v378 = vld [vmem:[%s219 + $0x40] sm:$0xf]
      %v379 = vld [vmem:[%s219 + $0x44] sm:$0xf]
      %v380 = vld [vmem:[%s219 + $0x48] sm:$0xf]
      %s381 = scalar_lea.vmem %s1, 64
      %v382 = vld [vmem:[%s381] sm:$0xf]
      %v383 = vld [vmem:[%s381 + $0x4] sm:$0xf]
      %v384 = vld [vmem:[%s381 + $0x8] sm:$0xf]
      %v385 = vld [vmem:[%s381 + $0xc] sm:$0xf]
      %v386 = vld [vmem:[%s381 + $0x10] sm:$0xf]
      %v387 = vld [vmem:[%s381 + $0x14] sm:$0xf]
      %v388 = vld [vmem:[%s381 + $0x18] sm:$0xf]
      %v389 = vld [vmem:[%s381 + $0x1c] sm:$0xf]
      %v390 = vld [vmem:[%s381 + $0x20] sm:$0xf]
      %v391 = vld [vmem:[%s381 + $0x24] sm:$0xf]
      %v392 = vld [vmem:[%s381 + $0x28] sm:$0xf]
      %v393 = vld [vmem:[%s381 + $0x2c] sm:$0xf]
      %v394 = vld [vmem:[%s381 + $0x30] sm:$0xf]
      %v395 = vld [vmem:[%s381 + $0x34] sm:$0xf]
      %v396 = vld [vmem:[%s381 + $0x38] sm:$0xf]
      %v397 = vld [vmem:[%s381 + $0x3c] sm:$0xf]
      %v407 = vunpack.c.l.b16 %v372
      %v408 = vunpack.c.l.b16 %v373
      %v409 = vunpack.c.l.b16 %v374
      %v410 = vunpack.c.l.b16 %v375
      %v411 = vunpack.c.l.b16 %v376
      %v412 = vunpack.c.l.b16 %v377
      %v413 = vunpack.c.l.b16 %v378
      %v414 = vunpack.c.l.b16 %v379
      %v415 = vunpack.c.l.b16 %v380
      %v416 = vpack.c.b16 %v408, %v407
      %v417 = vpack.c.b16 %v410, %v409
      %v418 = vpack.c.b16 %v412, %v411
      %v419 = vpack.c.b16 %v414, %v413
      %v420 = vpack.c.b16 %v415, %v415
      %vm421 = vsmask.f32 7424
      %v423 = vshrl.u32 %v416, 16
      %v425 = vshll.u32 %v416, 16
      %v427 = vrot.slane %v425, 1
      %v428 = vor.u32 %v423, %v427
      %v430 = vshll.u32 %v417, 16
      %v432 = vrot.slane %v430, 1
      %v433 = vsel %vm421, %v428, %v432
      %v434 = vshrl.u32 %v417, 16
      %v436 = vor.u32 %v434, %v432
      %v438 = vshll.u32 %v418, 16
      %v440 = vrot.slane %v438, 1
      %v441 = vsel %vm421, %v436, %v440
      %v442 = vshrl.u32 %v418, 16
      %v444 = vor.u32 %v442, %v440
      %v446 = vshll.u32 %v419, 16
      %v448 = vrot.slane %v446, 1
      %v449 = vsel %vm421, %v444, %v448
      %v450 = vshrl.u32 %v419, 16
      %v452 = vor.u32 %v450, %v448
      %v454 = vshll.u32 %v420, 16
      %v456 = vrot.slane %v454, 1
      %v457 = vsel %vm421, %v452, %v456
      %v458 = vshrl.u32 %v420, 16
      %v460 = vor.u32 %v458, %v456
      %v482 = vunpack.c.l.b16 %v382
      %v483 = vunpack.c.l.b16 %v383
      %v484 = vunpack.c.l.b16 %v384
      %v485 = vunpack.c.l.b16 %v385
      %v486 = vunpack.c.l.b16 %v386
      %v487 = vunpack.c.l.b16 %v387
      %v488 = vunpack.c.l.b16 %v388
      %v489 = vunpack.c.l.b16 %v389
      %v490 = vunpack.c.l.b16 %v390
      %v491 = vunpack.c.l.b16 %v391
      %v492 = vunpack.c.l.b16 %v392
      %v493 = vunpack.c.l.b16 %v393
      %v494 = vunpack.c.l.b16 %v394
      %v495 = vunpack.c.l.b16 %v395
      %v496 = vunpack.c.l.b16 %v396
      %v497 = vunpack.c.l.b16 %v397
      %v498 = vpack.c.b16 %v483, %v482
      %v499 = vpack.c.b16 %v485, %v484
      %v500 = vpack.c.b16 %v487, %v486
      %v501 = vpack.c.b16 %v489, %v488
      %v502 = vpack.c.b16 %v491, %v490
      %v503 = vpack.c.b16 %v493, %v492
      %v504 = vpack.c.b16 %v495, %v494
      %v505 = vpack.c.b16 %v497, %v496
      %514 = vmatpush.bf16.msra.mxu0 %v505
      %515 = vmatpush.bf16.msra.mxu0 %v504
      %516 = vmatpush.bf16.msra.mxu0 %v503
      %517 = vmatpush.bf16.msra.mxu0 %v502
      %518 = vmatpush.bf16.msra.mxu0 %v501
      %519 = vmatpush.bf16.msra.mxu0 %v500
      %520 = vmatpush.bf16.msra.mxu0 %v499
      %521 = vmatpush.bf16.msra.mxu0 %v498
      %522 = vmatmul.bf16.gmra.mxu0 %v433
      %v523 = vpop.f32.mrf.mxu0
      %v524 = vadd.f32 0.0, %v523
      %v525 = vpop.f32.mrf.mxu0
      %v526 = vadd.f32 0.0, %v525
      %527 = vmatmul.bf16.gmra.mxu0 %v441
      %v528 = vpop.f32.mrf.mxu0
      %v529 = vadd.f32 0.0, %v528
      %v530 = vpop.f32.mrf.mxu0
      %v531 = vadd.f32 0.0, %v530
      %532 = vmatmul.bf16.gmra.mxu0 %v449
      %v533 = vpop.f32.mrf.mxu0
      %v534 = vadd.f32 0.0, %v533
      %v535 = vpop.f32.mrf.mxu0
      %v536 = vadd.f32 0.0, %v535
      %537 = vmatmul.bf16.gmra.mxu0 %v457
      %v538 = vpop.f32.mrf.mxu0
      %v539 = vadd.f32 0.0, %v538
      %v540 = vpop.f32.mrf.mxu0
      %v541 = vadd.f32 0.0, %v540
      %542 = vmatmul.bf16.gmra.mxu0 %v460
      %v543 = vpop.f32.mrf.mxu0
      %v544 = vadd.f32 0.0, %v543
      %v545 = vpop.f32.mrf.mxu0
      %546 = vdwg.mxu0
      %v547 = vadd.f32 %v363, %v524
      %v548 = vadd.f32 %v364, %v526
      %v549 = vadd.f32 %v365, %v529
      %v550 = vadd.f32 %v366, %v531
      %v551 = vadd.f32 %v367, %v534
      %v552 = vadd.f32 %v368, %v536
      %v553 = vadd.f32 %v369, %v539
      %v554 = vadd.f32 %v370, %v541
      %v555 = vadd.f32 %v371, %v544
      %s556 = scalar_lea.vmem %s1, 128
      %v557 = vld [vmem:[%s556] sm:$0xf]
      %v558 = vld [vmem:[%s556 + $0x4] sm:$0xf]
      %v559 = vld [vmem:[%s556 + $0x8] sm:$0xf]
      %v560 = vld [vmem:[%s556 + $0xc] sm:$0xf]
      %v561 = vld [vmem:[%s556 + $0x10] sm:$0xf]
      %v562 = vld [vmem:[%s556 + $0x14] sm:$0xf]
      %v563 = vld [vmem:[%s556 + $0x18] sm:$0xf]
      %v564 = vld [vmem:[%s556 + $0x1c] sm:$0xf]
      %v565 = vld [vmem:[%s556 + $0x20] sm:$0xf]
      %v566 = vld [vmem:[%s556 + $0x24] sm:$0xf]
      %v567 = vld [vmem:[%s556 + $0x28] sm:$0xf]
      %v568 = vld [vmem:[%s556 + $0x2c] sm:$0xf]
      %v569 = vld [vmem:[%s556 + $0x30] sm:$0xf]
      %v570 = vld [vmem:[%s556 + $0x34] sm:$0xf]
      %v571 = vld [vmem:[%s556 + $0x38] sm:$0xf]
      %v572 = vld [vmem:[%s556 + $0x3c] sm:$0xf]
      %v574 = vshrl.u32 %v272, 16
      %v576 = vshll.u32 %v272, 16
      %v578 = vrot.slane %v576, 1
      %v579 = vor.u32 %v574, %v578
      %v581 = vshll.u32 %v273, 16
      %v583 = vrot.slane %v581, 1
      %v584 = vsel %vm421, %v579, %v583
      %v585 = vshrl.u32 %v273, 16
      %v587 = vor.u32 %v585, %v583
      %v589 = vshll.u32 %v274, 16
      %v591 = vrot.slane %v589, 1
      %v592 = vsel %vm421, %v587, %v591
      %v593 = vshrl.u32 %v274, 16
      %v595 = vor.u32 %v593, %v591
      %v597 = vshll.u32 %v275, 16
      %v599 = vrot.slane %v597, 1
      %v600 = vsel %vm421, %v595, %v599
      %v601 = vshrl.u32 %v275, 16
      %v603 = vor.u32 %v601, %v599
      %v605 = vshll.u32 %v276, 16
      %v607 = vrot.slane %v605, 1
      %v608 = vsel %vm421, %v603, %v607
      %v609 = vshrl.u32 %v276, 16
      %v611 = vor.u32 %v609, %v607
      %v633 = vunpack.c.l.b16 %v557
      %v634 = vunpack.c.l.b16 %v558
      %v635 = vunpack.c.l.b16 %v559
      %v636 = vunpack.c.l.b16 %v560
      %v637 = vunpack.c.l.b16 %v561
      %v638 = vunpack.c.l.b16 %v562
      %v639 = vunpack.c.l.b16 %v563
      %v640 = vunpack.c.l.b16 %v564
      %v641 = vunpack.c.l.b16 %v565
      %v642 = vunpack.c.l.b16 %v566
      %v643 = vunpack.c.l.b16 %v567
      %v644 = vunpack.c.l.b16 %v568
      %v645 = vunpack.c.l.b16 %v569
      %v646 = vunpack.c.l.b16 %v570
      %v647 = vunpack.c.l.b16 %v571
      %v648 = vunpack.c.l.b16 %v572
      %v649 = vpack.c.b16 %v634, %v633
      %v650 = vpack.c.b16 %v636, %v635
      %v651 = vpack.c.b16 %v638, %v637
      %v652 = vpack.c.b16 %v640, %v639
      %v653 = vpack.c.b16 %v642, %v641
      %v654 = vpack.c.b16 %v644, %v643
      %v655 = vpack.c.b16 %v646, %v645
      %v656 = vpack.c.b16 %v648, %v647
      %665 = vmatpush.bf16.msra.mxu0 %v656
      %666 = vmatpush.bf16.msra.mxu0 %v655
      %667 = vmatpush.bf16.msra.mxu0 %v654
      %668 = vmatpush.bf16.msra.mxu0 %v653
      %669 = vmatpush.bf16.msra.mxu0 %v652
      %670 = vmatpush.bf16.msra.mxu0 %v651
      %671 = vmatpush.bf16.msra.mxu0 %v650
      %672 = vmatpush.bf16.msra.mxu0 %v649
      %673 = vmatmul.bf16.gmra.mxu0 %v584
      %v674 = vpop.f32.mrf.mxu0
      %v675 = vadd.f32 0.0, %v674
      %v676 = vpop.f32.mrf.mxu0
      %v677 = vadd.f32 0.0, %v676
      %678 = vmatmul.bf16.gmra.mxu0 %v592
      %v679 = vpop.f32.mrf.mxu0
      %v680 = vadd.f32 0.0, %v679
      %v681 = vpop.f32.mrf.mxu0
      %v682 = vadd.f32 0.0, %v681
      %683 = vmatmul.bf16.gmra.mxu0 %v600
      %v684 = vpop.f32.mrf.mxu0
      %v685 = vadd.f32 0.0, %v684
      %v686 = vpop.f32.mrf.mxu0
      %v687 = vadd.f32 0.0, %v686
      %688 = vmatmul.bf16.gmra.mxu0 %v608
      %v689 = vpop.f32.mrf.mxu0
      %v690 = vadd.f32 0.0, %v689
      %v691 = vpop.f32.mrf.mxu0
      %v692 = vadd.f32 0.0, %v691
      %693 = vmatmul.bf16.gmra.mxu0 %v611
      %v694 = vpop.f32.mrf.mxu0
      %v695 = vadd.f32 0.0, %v694
      %v696 = vpop.f32.mrf.mxu0
      %697 = vdwg.mxu0
      %v698 = vadd.f32 %v547, %v675
      %v699 = vadd.f32 %v548, %v677
      %v700 = vadd.f32 %v549, %v680
      %v701 = vadd.f32 %v550, %v682
      %v702 = vadd.f32 %v551, %v685
      %v703 = vadd.f32 %v552, %v687
      %v704 = vadd.f32 %v553, %v690
      %v705 = vadd.f32 %v554, %v692
      %v706 = vadd.f32 %v555, %v695
      %v707 = vld [vmem:[%s219 + $0x50] sm:$0xe]
      %v708 = vld [vmem:[%s219 + $0x54] sm:$0xf]
      %v709 = vld [vmem:[%s219 + $0x58] sm:$0xf]
      %v710 = vld [vmem:[%s219 + $0x5c] sm:$0xf]
      %v711 = vld [vmem:[%s219 + $0x60] sm:$0xf]
      %v712 = vld [vmem:[%s219 + $0x64] sm:$0xf]
      %v713 = vld [vmem:[%s219 + $0x68] sm:$0xf]
      %v714 = vld [vmem:[%s219 + $0x6c] sm:$0xf]
      %v715 = vld [vmem:[%s219 + $0x70] sm:$0xf]
      %v716 = vld [vmem:[%s219 + $0x74] sm:$0x1]
      %s717 = scalar_lea.vmem %s1, 192
      %v718 = vld [vmem:[%s717] sm:$0xf]
      %v719 = vld [vmem:[%s717 + $0x4] sm:$0xf]
      %v720 = vld [vmem:[%s717 + $0x8] sm:$0xf]
      %v721 = vld [vmem:[%s717 + $0xc] sm:$0xf]
      %v722 = vld [vmem:[%s717 + $0x10] sm:$0xf]
      %v723 = vld [vmem:[%s717 + $0x14] sm:$0xf]
      %v724 = vld [vmem:[%s717 + $0x18] sm:$0xf]
      %v725 = vld [vmem:[%s717 + $0x1c] sm:$0xf]
      %v726 = vld [vmem:[%s717 + $0x20] sm:$0xf]
      %v727 = vld [vmem:[%s717 + $0x24] sm:$0xf]
      %v728 = vld [vmem:[%s717 + $0x28] sm:$0xf]
      %v729 = vld [vmem:[%s717 + $0x2c] sm:$0xf]
      %v730 = vld [vmem:[%s717 + $0x30] sm:$0xf]
      %v731 = vld [vmem:[%s717 + $0x34] sm:$0xf]
      %v732 = vld [vmem:[%s717 + $0x38] sm:$0xf]
      %v733 = vld [vmem:[%s717 + $0x3c] sm:$0xf]
      %v744 = vunpack.c.l.b16 %v707
      %v745 = vunpack.c.l.b16 %v708
      %v746 = vunpack.c.l.b16 %v709
      %v747 = vunpack.c.l.b16 %v710
      %v748 = vunpack.c.l.b16 %v711
      %v749 = vunpack.c.l.b16 %v712
      %v750 = vunpack.c.l.b16 %v713
      %v751 = vunpack.c.l.b16 %v714
      %v752 = vunpack.c.l.b16 %v715
      %v753 = vunpack.c.l.b16 %v716
      %v754 = vpack.c.b16 %v745, %v744
      %v755 = vpack.c.b16 %v747, %v746
      %v756 = vpack.c.b16 %v749, %v748
      %v757 = vpack.c.b16 %v751, %v750
      %v758 = vpack.c.b16 %v753, %v752
      %vm759 = vcmask 1046528
      %v760 = vrot.slane %v754, 1
      %v761 = vrot.slane %v755, 1
      %v762 = vsel %vm759, %v760, %v761
      %v763 = vrot.slane %v756, 1
      %v764 = vsel %vm759, %v761, %v763
      %v765 = vrot.slane %v757, 1
      %v766 = vsel %vm759, %v763, %v765
      %v767 = vrot.slane %v758, 1
      %v768 = vsel %vm759, %v765, %v767
      %v790 = vunpack.c.l.b16 %v718
      %v791 = vunpack.c.l.b16 %v719
      %v792 = vunpack.c.l.b16 %v720
      %v793 = vunpack.c.l.b16 %v721
      %v794 = vunpack.c.l.b16 %v722
      %v795 = vunpack.c.l.b16 %v723
      %v796 = vunpack.c.l.b16 %v724
      %v797 = vunpack.c.l.b16 %v725
      %v798 = vunpack.c.l.b16 %v726
      %v799 = vunpack.c.l.b16 %v727
      %v800 = vunpack.c.l.b16 %v728
      %v801 = vunpack.c.l.b16 %v729
      %v802 = vunpack.c.l.b16 %v730
      %v803 = vunpack.c.l.b16 %v731
      %v804 = vunpack.c.l.b16 %v732
      %v805 = vunpack.c.l.b16 %v733
      %v806 = vpack.c.b16 %v791, %v790
      %v807 = vpack.c.b16 %v793, %v792
      %v808 = vpack.c.b16 %v795, %v794
      %v809 = vpack.c.b16 %v797, %v796
      %v810 = vpack.c.b16 %v799, %v798
      %v811 = vpack.c.b16 %v801, %v800
      %v812 = vpack.c.b16 %v803, %v802
      %v813 = vpack.c.b16 %v805, %v804
      %822 = vmatpush.bf16.msra.mxu0 %v813
      %823 = vmatpush.bf16.msra.mxu0 %v812
      %824 = vmatpush.bf16.msra.mxu0 %v811
      %825 = vmatpush.bf16.msra.mxu0 %v810
      %826 = vmatpush.bf16.msra.mxu0 %v809
      %827 = vmatpush.bf16.msra.mxu0 %v808
      %828 = vmatpush.bf16.msra.mxu0 %v807
      %829 = vmatpush.bf16.msra.mxu0 %v806
      %830 = vmatmul.bf16.gmra.mxu0 %v762
      %v831 = vpop.f32.mrf.mxu0
      %v832 = vadd.f32 0.0, %v831
      %v833 = vpop.f32.mrf.mxu0
      %v834 = vadd.f32 0.0, %v833
      %835 = vmatmul.bf16.gmra.mxu0 %v764
      %v836 = vpop.f32.mrf.mxu0
      %v837 = vadd.f32 0.0, %v836
      %v838 = vpop.f32.mrf.mxu0
      %v839 = vadd.f32 0.0, %v838
      %840 = vmatmul.bf16.gmra.mxu0 %v766
      %v841 = vpop.f32.mrf.mxu0
      %v842 = vadd.f32 0.0, %v841
      %v843 = vpop.f32.mrf.mxu0
      %v844 = vadd.f32 0.0, %v843
      %845 = vmatmul.bf16.gmra.mxu0 %v768
      %v846 = vpop.f32.mrf.mxu0
      %v847 = vadd.f32 0.0, %v846
      %v848 = vpop.f32.mrf.mxu0
      %v849 = vadd.f32 0.0, %v848
      %850 = vmatmul.bf16.gmra.mxu0 %v767
      %v851 = vpop.f32.mrf.mxu0
      %v852 = vadd.f32 0.0, %v851
      %v853 = vpop.f32.mrf.mxu0
      %854 = vdwg.mxu0
      %v855 = vadd.f32 %v698, %v832
      %v856 = vadd.f32 %v699, %v834
      %v857 = vadd.f32 %v700, %v837
      %v858 = vadd.f32 %v701, %v839
      %v859 = vadd.f32 %v702, %v842
      %v860 = vadd.f32 %v703, %v844
      %v861 = vadd.f32 %v704, %v847
      %v862 = vadd.f32 %v705, %v849
      %v863 = vadd.f32 %v706, %v852
      %v864 = vld [vmem:[%s219 + $0x78] sm:$0xe]
      %v865 = vld [vmem:[%s219 + $0x7c] sm:$0xf]
      %v866 = vld [vmem:[%s219 + $0x80] sm:$0xf]
      %v867 = vld [vmem:[%s219 + $0x84] sm:$0xf]
      %v868 = vld [vmem:[%s219 + $0x88] sm:$0xf]
      %v869 = vld [vmem:[%s219 + $0x8c] sm:$0xf]
      %v870 = vld [vmem:[%s219 + $0x90] sm:$0xf]
      %v871 = vld [vmem:[%s219 + $0x94] sm:$0xf]
      %v872 = vld [vmem:[%s219 + $0x98] sm:$0xf]
      %v873 = vld [vmem:[%s219 + $0x9c] sm:$0x1]
      %s874 = scalar_lea.vmem %s1, 256
      %v875 = vld [vmem:[%s874] sm:$0xf]
      %v876 = vld [vmem:[%s874 + $0x4] sm:$0xf]
      %v877 = vld [vmem:[%s874 + $0x8] sm:$0xf]
      %v878 = vld [vmem:[%s874 + $0xc] sm:$0xf]
      %v879 = vld [vmem:[%s874 + $0x10] sm:$0xf]
      %v880 = vld [vmem:[%s874 + $0x14] sm:$0xf]
      %v881 = vld [vmem:[%s874 + $0x18] sm:$0xf]
      %v882 = vld [vmem:[%s874 + $0x1c] sm:$0xf]
      %v883 = vld [vmem:[%s874 + $0x20] sm:$0xf]
      %v884 = vld [vmem:[%s874 + $0x24] sm:$0xf]
      %v885 = vld [vmem:[%s874 + $0x28] sm:$0xf]
      %v886 = vld [vmem:[%s874 + $0x2c] sm:$0xf]
      %v887 = vld [vmem:[%s874 + $0x30] sm:$0xf]
      %v888 = vld [vmem:[%s874 + $0x34] sm:$0xf]
      %v889 = vld [vmem:[%s874 + $0x38] sm:$0xf]
      %v890 = vld [vmem:[%s874 + $0x3c] sm:$0xf]
      %v901 = vunpack.c.l.b16 %v864
      %v902 = vunpack.c.l.b16 %v865
      %v903 = vunpack.c.l.b16 %v866
      %v904 = vunpack.c.l.b16 %v867
      %v905 = vunpack.c.l.b16 %v868
      %v906 = vunpack.c.l.b16 %v869
      %v907 = vunpack.c.l.b16 %v870
      %v908 = vunpack.c.l.b16 %v871
      %v909 = vunpack.c.l.b16 %v872
      %v910 = vunpack.c.l.b16 %v873
      %v911 = vpack.c.b16 %v902, %v901
      %v912 = vpack.c.b16 %v904, %v903
      %v913 = vpack.c.b16 %v906, %v905
      %v914 = vpack.c.b16 %v908, %v907
      %v915 = vpack.c.b16 %v910, %v909
      %vm916 = vsmask.f32 6400
      %v918 = vshrl.u32 %v911, 16
      %v920 = vrot.slane %v918, 1
      %v921 = vshll.u32 %v911, 16
      %v923 = vrot.slane %v921, 2
      %v924 = vor.u32 %v920, %v923
      %v926 = vshrl.u32 %v912, 16
      %v928 = vrot.slane %v926, 1
      %v929 = vshll.u32 %v912, 16
      %v931 = vrot.slane %v929, 2
      %v932 = vor.u32 %v928, %v931
      %v933 = vsel %vm916, %v924, %v932
      %v935 = vshrl.u32 %v913, 16
      %v937 = vrot.slane %v935, 1
      %v938 = vshll.u32 %v913, 16
      %v940 = vrot.slane %v938, 2
      %v941 = vor.u32 %v937, %v940
      %v942 = vsel %vm916, %v932, %v941
      %v944 = vshrl.u32 %v914, 16
      %v946 = vrot.slane %v944, 1
      %v947 = vshll.u32 %v914, 16
      %v949 = vrot.slane %v947, 2
      %v950 = vor.u32 %v946, %v949
      %v951 = vsel %vm916, %v941, %v950
      %v953 = vshrl.u32 %v915, 16
      %v955 = vrot.slane %v953, 1
      %v956 = vshll.u32 %v915, 16
      %v958 = vrot.slane %v956, 2
      %v959 = vor.u32 %v955, %v958
      %v960 = vsel %vm916, %v950, %v959
      %v982 = vunpack.c.l.b16 %v875
      %v983 = vunpack.c.l.b16 %v876
      %v984 = vunpack.c.l.b16 %v877
      %v985 = vunpack.c.l.b16 %v878
      %v986 = vunpack.c.l.b16 %v879
      %v987 = vunpack.c.l.b16 %v880
      %v988 = vunpack.c.l.b16 %v881
      %v989 = vunpack.c.l.b16 %v882
      %v990 = vunpack.c.l.b16 %v883
      %v991 = vunpack.c.l.b16 %v884
      %v992 = vunpack.c.l.b16 %v885
      %v993 = vunpack.c.l.b16 %v886
      %v994 = vunpack.c.l.b16 %v887
      %v995 = vunpack.c.l.b16 %v888
      %v996 = vunpack.c.l.b16 %v889
      %v997 = vunpack.c.l.b16 %v890
      %v998 = vpack.c.b16 %v983, %v982
      %v999 = vpack.c.b16 %v985, %v984
      %v1000 = vpack.c.b16 %v987, %v986
      %v1001 = vpack.c.b16 %v989, %v988
      %v1002 = vpack.c.b16 %v991, %v990
      %v1003 = vpack.c.b16 %v993, %v992
      %v1004 = vpack.c.b16 %v995, %v994
      %v1005 = vpack.c.b16 %v997, %v996
      %1014 = vmatpush.bf16.msra.mxu0 %v1005
      %1015 = vmatpush.bf16.msra.mxu0 %v1004
      %1016 = vmatpush.bf16.msra.mxu0 %v1003
      %1017 = vmatpush.bf16.msra.mxu0 %v1002
      %1018 = vmatpush.bf16.msra.mxu0 %v1001
      %1019 = vmatpush.bf16.msra.mxu0 %v1000
      %1020 = vmatpush.bf16.msra.mxu0 %v999
      %1021 = vmatpush.bf16.msra.mxu0 %v998
      %1022 = vmatmul.bf16.gmra.mxu0 %v933
      %v1023 = vpop.f32.mrf.mxu0
      %v1024 = vadd.f32 0.0, %v1023
      %v1025 = vpop.f32.mrf.mxu0
      %v1026 = vadd.f32 0.0, %v1025
      %1027 = vmatmul.bf16.gmra.mxu0 %v942
      %v1028 = vpop.f32.mrf.mxu0
      %v1029 = vadd.f32 0.0, %v1028
      %v1030 = vpop.f32.mrf.mxu0
      %v1031 = vadd.f32 0.0, %v1030
      %1032 = vmatmul.bf16.gmra.mxu0 %v951
      %v1033 = vpop.f32.mrf.mxu0
      %v1034 = vadd.f32 0.0, %v1033
      %v1035 = vpop.f32.mrf.mxu0
      %v1036 = vadd.f32 0.0, %v1035
      %1037 = vmatmul.bf16.gmra.mxu0 %v960
      %v1038 = vpop.f32.mrf.mxu0
      %v1039 = vadd.f32 0.0, %v1038
      %v1040 = vpop.f32.mrf.mxu0
      %v1041 = vadd.f32 0.0, %v1040
      %1042 = vmatmul.bf16.gmra.mxu0 %v959
      %v1043 = vpop.f32.mrf.mxu0
      %v1044 = vadd.f32 0.0, %v1043
      %v1045 = vpop.f32.mrf.mxu0
      %1046 = vdwg.mxu0
      %v1047 = vadd.f32 %v855, %v1024
      %v1048 = vadd.f32 %v856, %v1026
      %v1049 = vadd.f32 %v857, %v1029
      %v1050 = vadd.f32 %v858, %v1031
      %v1051 = vadd.f32 %v859, %v1034
      %v1052 = vadd.f32 %v860, %v1036
      %v1053 = vadd.f32 %v861, %v1039
      %v1054 = vadd.f32 %v862, %v1041
      %v1055 = vadd.f32 %v863, %v1044
      %s1056 = scalar_lea.vmem %s1, 320
      %v1057 = vld [vmem:[%s1056] sm:$0xf]
      %v1058 = vld [vmem:[%s1056 + $0x4] sm:$0xf]
      %v1059 = vld [vmem:[%s1056 + $0x8] sm:$0xf]
      %v1060 = vld [vmem:[%s1056 + $0xc] sm:$0xf]
      %v1061 = vld [vmem:[%s1056 + $0x10] sm:$0xf]
      %v1062 = vld [vmem:[%s1056 + $0x14] sm:$0xf]
      %v1063 = vld [vmem:[%s1056 + $0x18] sm:$0xf]
      %v1064 = vld [vmem:[%s1056 + $0x1c] sm:$0xf]
      %v1065 = vld [vmem:[%s1056 + $0x20] sm:$0xf]
      %v1066 = vld [vmem:[%s1056 + $0x24] sm:$0xf]
      %v1067 = vld [vmem:[%s1056 + $0x28] sm:$0xf]
      %v1068 = vld [vmem:[%s1056 + $0x2c] sm:$0xf]
      %v1069 = vld [vmem:[%s1056 + $0x30] sm:$0xf]
      %v1070 = vld [vmem:[%s1056 + $0x34] sm:$0xf]
      %v1071 = vld [vmem:[%s1056 + $0x38] sm:$0xf]
      %v1072 = vld [vmem:[%s1056 + $0x3c] sm:$0xf]
      %v1074 = vshrl.u32 %v754, 16
      %v1076 = vrot.slane %v1074, 1
      %v1077 = vshll.u32 %v754, 16
      %v1079 = vrot.slane %v1077, 2
      %v1080 = vor.u32 %v1076, %v1079
      %v1082 = vshrl.u32 %v755, 16
      %v1084 = vrot.slane %v1082, 1
      %v1085 = vshll.u32 %v755, 16
      %v1087 = vrot.slane %v1085, 2
      %v1088 = vor.u32 %v1084, %v1087
      %v1089 = vsel %vm916, %v1080, %v1088
      %v1091 = vshrl.u32 %v756, 16
      %v1093 = vrot.slane %v1091, 1
      %v1094 = vshll.u32 %v756, 16
      %v1096 = vrot.slane %v1094, 2
      %v1097 = vor.u32 %v1093, %v1096
      %v1098 = vsel %vm916, %v1088, %v1097
      %v1100 = vshrl.u32 %v757, 16
      %v1102 = vrot.slane %v1100, 1
      %v1103 = vshll.u32 %v757, 16
      %v1105 = vrot.slane %v1103, 2
      %v1106 = vor.u32 %v1102, %v1105
      %v1107 = vsel %vm916, %v1097, %v1106
      %v1109 = vshrl.u32 %v758, 16
      %v1111 = vrot.slane %v1109, 1
      %v1112 = vshll.u32 %v758, 16
      %v1114 = vrot.slane %v1112, 2
      %v1115 = vor.u32 %v1111, %v1114
      %v1116 = vsel %vm916, %v1106, %v1115
      %v1138 = vunpack.c.l.b16 %v1057
      %v1139 = vunpack.c.l.b16 %v1058
      %v1140 = vunpack.c.l.b16 %v1059
      %v1141 = vunpack.c.l.b16 %v1060
      %v1142 = vunpack.c.l.b16 %v1061
      %v1143 = vunpack.c.l.b16 %v1062
      %v1144 = vunpack.c.l.b16 %v1063
      %v1145 = vunpack.c.l.b16 %v1064
      %v1146 = vunpack.c.l.b16 %v1065
      %v1147 = vunpack.c.l.b16 %v1066
      %v1148 = vunpack.c.l.b16 %v1067
      %v1149 = vunpack.c.l.b16 %v1068
      %v1150 = vunpack.c.l.b16 %v1069
      %v1151 = vunpack.c.l.b16 %v1070
      %v1152 = vunpack.c.l.b16 %v1071
      %v1153 = vunpack.c.l.b16 %v1072
      %v1154 = vpack.c.b16 %v1139, %v1138
      %v1155 = vpack.c.b16 %v1141, %v1140
      %v1156 = vpack.c.b16 %v1143, %v1142
      %v1157 = vpack.c.b16 %v1145, %v1144
      %v1158 = vpack.c.b16 %v1147, %v1146
      %v1159 = vpack.c.b16 %v1149, %v1148
      %v1160 = vpack.c.b16 %v1151, %v1150
      %v1161 = vpack.c.b16 %v1153, %v1152
      %1170 = vmatpush.bf16.msra.mxu0 %v1161
      %1171 = vmatpush.bf16.msra.mxu0 %v1160
      %1172 = vmatpush.bf16.msra.mxu0 %v1159
      %1173 = vmatpush.bf16.msra.mxu0 %v1158
      %1174 = vmatpush.bf16.msra.mxu0 %v1157
      %1175 = vmatpush.bf16.msra.mxu0 %v1156
      %1176 = vmatpush.bf16.msra.mxu0 %v1155
      %1177 = vmatpush.bf16.msra.mxu0 %v1154
      %1178 = vmatmul.bf16.gmra.mxu0 %v1089
      %v1179 = vpop.f32.mrf.mxu0
      %v1180 = vadd.f32 0.0, %v1179
      %v1181 = vpop.f32.mrf.mxu0
      %v1182 = vadd.f32 0.0, %v1181
      %1183 = vmatmul.bf16.gmra.mxu0 %v1098
      %v1184 = vpop.f32.mrf.mxu0
      %v1185 = vadd.f32 0.0, %v1184
      %v1186 = vpop.f32.mrf.mxu0
      %v1187 = vadd.f32 0.0, %v1186
      %1188 = vmatmul.bf16.gmra.mxu0 %v1107
      %v1189 = vpop.f32.mrf.mxu0
      %v1190 = vadd.f32 0.0, %v1189
      %v1191 = vpop.f32.mrf.mxu0
      %v1192 = vadd.f32 0.0, %v1191
      %1193 = vmatmul.bf16.gmra.mxu0 %v1116
      %v1194 = vpop.f32.mrf.mxu0
      %v1195 = vadd.f32 0.0, %v1194
      %v1196 = vpop.f32.mrf.mxu0
      %v1197 = vadd.f32 0.0, %v1196
      %1198 = vmatmul.bf16.gmra.mxu0 %v1115
      %v1199 = vpop.f32.mrf.mxu0
      %v1200 = vadd.f32 0.0, %v1199
      %v1201 = vpop.f32.mrf.mxu0
      %1202 = vdwg.mxu0
      %v1203 = vadd.f32 %v1047, %v1180
      %v1204 = vadd.f32 %v1048, %v1182
      %v1205 = vadd.f32 %v1049, %v1185
      %v1206 = vadd.f32 %v1050, %v1187
      %v1207 = vadd.f32 %v1051, %v1190
      %v1208 = vadd.f32 %v1052, %v1192
      %v1209 = vadd.f32 %v1053, %v1195
      %v1210 = vadd.f32 %v1054, %v1197
      %v1211 = vadd.f32 %v1055, %v1200
      %v1212 = vld [vmem:[%s219 + $0x4] sm:$0xf]
      %v1213 = vld [vmem:[%s219 + $0x8] sm:$0xf]
      %v1214 = vld [vmem:[%s219 + $0xc] sm:$0xf]
      %v1215 = vld [vmem:[%s219 + $0x10] sm:$0xf]
      %v1216 = vld [vmem:[%s219 + $0x14] sm:$0xf]
      %v1217 = vld [vmem:[%s219 + $0x18] sm:$0xf]
      %v1218 = vld [vmem:[%s219 + $0x1c] sm:$0xf]
      %v1219 = vld [vmem:[%s219 + $0x20] sm:$0xf]
      %v1220 = vld [vmem:[%s219 + $0x24] sm:$0xf]
      %s1221 = scalar_lea.vmem %s1, 384
      %v1222 = vld [vmem:[%s1221] sm:$0xf]
      %v1223 = vld [vmem:[%s1221 + $0x4] sm:$0xf]
      %v1224 = vld [vmem:[%s1221 + $0x8] sm:$0xf]
      %v1225 = vld [vmem:[%s1221 + $0xc] sm:$0xf]
      %v1226 = vld [vmem:[%s1221 + $0x10] sm:$0xf]
      %v1227 = vld [vmem:[%s1221 + $0x14] sm:$0xf]
      %v1228 = vld [vmem:[%s1221 + $0x18] sm:$0xf]
      %v1229 = vld [vmem:[%s1221 + $0x1c] sm:$0xf]
      %v1230 = vld [vmem:[%s1221 + $0x20] sm:$0xf]
      %v1231 = vld [vmem:[%s1221 + $0x24] sm:$0xf]
      %v1232 = vld [vmem:[%s1221 + $0x28] sm:$0xf]
      %v1233 = vld [vmem:[%s1221 + $0x2c] sm:$0xf]
      %v1234 = vld [vmem:[%s1221 + $0x30] sm:$0xf]
      %v1235 = vld [vmem:[%s1221 + $0x34] sm:$0xf]
      %v1236 = vld [vmem:[%s1221 + $0x38] sm:$0xf]
      %v1237 = vld [vmem:[%s1221 + $0x3c] sm:$0xf]
      %v1247 = vunpack.c.l.b16 %v1212
      %v1248 = vunpack.c.l.b16 %v1213
      %v1249 = vunpack.c.l.b16 %v1214
      %v1250 = vunpack.c.l.b16 %v1215
      %v1251 = vunpack.c.l.b16 %v1216
      %v1252 = vunpack.c.l.b16 %v1217
      %v1253 = vunpack.c.l.b16 %v1218
      %v1254 = vunpack.c.l.b16 %v1219
      %v1255 = vunpack.c.l.b16 %v1220
      %v1256 = vpack.c.b16 %v1248, %v1247
      %v1257 = vpack.c.b16 %v1250, %v1249
      %v1258 = vpack.c.b16 %v1252, %v1251
      %v1259 = vpack.c.b16 %v1254, %v1253
      %v1260 = vpack.c.b16 %v1255, %v1255
      %v1262 = vshrl.u32 %v1256, 16
      %v1264 = vshll.u32 %v1256, 16
      %v1266 = vrot.slane %v1264, 1
      %v1267 = vor.u32 %v1262, %v1266
      %v1269 = vshll.u32 %v1257, 16
      %v1271 = vrot.slane %v1269, 1
      %v1272 = vsel %vm421, %v1267, %v1271
      %v1273 = vshrl.u32 %v1257, 16
      %v1275 = vor.u32 %v1273, %v1271
      %v1277 = vshll.u32 %v1258, 16
      %v1279 = vrot.slane %v1277, 1
      %v1280 = vsel %vm421, %v1275, %v1279
      %v1281 = vshrl.u32 %v1258, 16
      %v1283 = vor.u32 %v1281, %v1279
      %v1285 = vshll.u32 %v1259, 16
      %v1287 = vrot.slane %v1285, 1
      %v1288 = vsel %vm421, %v1283, %v1287
      %v1289 = vshrl.u32 %v1259, 16
      %v1291 = vor.u32 %v1289, %v1287
      %v1293 = vshll.u32 %v1260, 16
      %v1295 = vrot.slane %v1293, 1
      %v1296 = vsel %vm421, %v1291, %v1295
      %v1297 = vshrl.u32 %v1260, 16
      %v1299 = vor.u32 %v1297, %v1295
      %v1321 = vunpack.c.l.b16 %v1222
      %v1322 = vunpack.c.l.b16 %v1223
      %v1323 = vunpack.c.l.b16 %v1224
      %v1324 = vunpack.c.l.b16 %v1225
      %v1325 = vunpack.c.l.b16 %v1226
      %v1326 = vunpack.c.l.b16 %v1227
      %v1327 = vunpack.c.l.b16 %v1228
      %v1328 = vunpack.c.l.b16 %v1229
      %v1329 = vunpack.c.l.b16 %v1230
      %v1330 = vunpack.c.l.b16 %v1231
      %v1331 = vunpack.c.l.b16 %v1232
      %v1332 = vunpack.c.l.b16 %v1233
      %v1333 = vunpack.c.l.b16 %v1234
      %v1334 = vunpack.c.l.b16 %v1235
      %v1335 = vunpack.c.l.b16 %v1236
      %v1336 = vunpack.c.l.b16 %v1237
      %v1337 = vpack.c.b16 %v1322, %v1321
      %v1338 = vpack.c.b16 %v1324, %v1323
      %v1339 = vpack.c.b16 %v1326, %v1325
      %v1340 = vpack.c.b16 %v1328, %v1327
      %v1341 = vpack.c.b16 %v1330, %v1329
      %v1342 = vpack.c.b16 %v1332, %v1331
      %v1343 = vpack.c.b16 %v1334, %v1333
      %v1344 = vpack.c.b16 %v1336, %v1335
      %1353 = vmatpush.bf16.msra.mxu0 %v1344
      %1354 = vmatpush.bf16.msra.mxu0 %v1343
      %1355 = vmatpush.bf16.msra.mxu0 %v1342
      %1356 = vmatpush.bf16.msra.mxu0 %v1341
      %1357 = vmatpush.bf16.msra.mxu0 %v1340
      %1358 = vmatpush.bf16.msra.mxu0 %v1339
      %1359 = vmatpush.bf16.msra.mxu0 %v1338
      %1360 = vmatpush.bf16.msra.mxu0 %v1337
      %1361 = vmatmul.bf16.gmra.mxu0 %v1272
      %v1362 = vpop.f32.mrf.mxu0
      %v1363 = vadd.f32 0.0, %v1362
      %v1364 = vpop.f32.mrf.mxu0
      %v1365 = vadd.f32 0.0, %v1364
      %1366 = vmatmul.bf16.gmra.mxu0 %v1280
      %v1367 = vpop.f32.mrf.mxu0
      %v1368 = vadd.f32 0.0, %v1367
      %v1369 = vpop.f32.mrf.mxu0
      %v1370 = vadd.f32 0.0, %v1369
      %1371 = vmatmul.bf16.gmra.mxu0 %v1288
      %v1372 = vpop.f32.mrf.mxu0
      %v1373 = vadd.f32 0.0, %v1372
      %v1374 = vpop.f32.mrf.mxu0
      %v1375 = vadd.f32 0.0, %v1374
      %1376 = vmatmul.bf16.gmra.mxu0 %v1296
      %v1377 = vpop.f32.mrf.mxu0
      %v1378 = vadd.f32 0.0, %v1377
      %v1379 = vpop.f32.mrf.mxu0
      %v1380 = vadd.f32 0.0, %v1379
      %1381 = vmatmul.bf16.gmra.mxu0 %v1299
      %v1382 = vpop.f32.mrf.mxu0
      %v1383 = vadd.f32 0.0, %v1382
      %v1384 = vpop.f32.mrf.mxu0
      %1385 = vdwg.mxu0
      %v1386 = vadd.f32 %v1203, %v1363
      %v1387 = vadd.f32 %v1204, %v1365
      %v1388 = vadd.f32 %v1205, %v1368
      %v1389 = vadd.f32 %v1206, %v1370
      %v1390 = vadd.f32 %v1207, %v1373
      %v1391 = vadd.f32 %v1208, %v1375
      %v1392 = vadd.f32 %v1209, %v1378
      %v1393 = vadd.f32 %v1210, %v1380
      %v1394 = vadd.f32 %v1211, %v1383
      %v1395 = vld [vmem:[%s219 + $0x2c] sm:$0xe]
      %v1396 = vld [vmem:[%s219 + $0x30] sm:$0xf]
      %v1397 = vld [vmem:[%s219 + $0x34] sm:$0xf]
      %v1398 = vld [vmem:[%s219 + $0x38] sm:$0xf]
      %v1399 = vld [vmem:[%s219 + $0x3c] sm:$0xf]
      %v1400 = vld [vmem:[%s219 + $0x40] sm:$0xf]
      %v1401 = vld [vmem:[%s219 + $0x44] sm:$0xf]
      %v1402 = vld [vmem:[%s219 + $0x48] sm:$0xf]
      %v1403 = vld [vmem:[%s219 + $0x4c] sm:$0xf]
      %v1404 = vld [vmem:[%s219 + $0x50] sm:$0x1]
      %s1405 = scalar_lea.vmem %s1, 448
      %v1406 = vld [vmem:[%s1405] sm:$0xf]
      %v1407 = vld [vmem:[%s1405 + $0x4] sm:$0xf]
      %v1408 = vld [vmem:[%s1405 + $0x8] sm:$0xf]
      %v1409 = vld [vmem:[%s1405 + $0xc] sm:$0xf]
      %v1410 = vld [vmem:[%s1405 + $0x10] sm:$0xf]
      %v1411 = vld [vmem:[%s1405 + $0x14] sm:$0xf]
      %v1412 = vld [vmem:[%s1405 + $0x18] sm:$0xf]
      %v1413 = vld [vmem:[%s1405 + $0x1c] sm:$0xf]
      %v1414 = vld [vmem:[%s1405 + $0x20] sm:$0xf]
      %v1415 = vld [vmem:[%s1405 + $0x24] sm:$0xf]
      %v1416 = vld [vmem:[%s1405 + $0x28] sm:$0xf]
      %v1417 = vld [vmem:[%s1405 + $0x2c] sm:$0xf]
      %v1418 = vld [vmem:[%s1405 + $0x30] sm:$0xf]
      %v1419 = vld [vmem:[%s1405 + $0x34] sm:$0xf]
      %v1420 = vld [vmem:[%s1405 + $0x38] sm:$0xf]
      %v1421 = vld [vmem:[%s1405 + $0x3c] sm:$0xf]
      %v1432 = vunpack.c.l.b16 %v1395
      %v1433 = vunpack.c.l.b16 %v1396
      %v1434 = vunpack.c.l.b16 %v1397
      %v1435 = vunpack.c.l.b16 %v1398
      %v1436 = vunpack.c.l.b16 %v1399
      %v1437 = vunpack.c.l.b16 %v1400
      %v1438 = vunpack.c.l.b16 %v1401
      %v1439 = vunpack.c.l.b16 %v1402
      %v1440 = vunpack.c.l.b16 %v1403
      %v1441 = vunpack.c.l.b16 %v1404
      %v1442 = vpack.c.b16 %v1433, %v1432
      %v1443 = vpack.c.b16 %v1435, %v1434
      %v1444 = vpack.c.b16 %v1437, %v1436
      %v1445 = vpack.c.b16 %v1439, %v1438
      %v1446 = vpack.c.b16 %v1441, %v1440
      %v1447 = vrot.slane %v1442, 1
      %v1448 = vrot.slane %v1443, 1
      %v1449 = vsel %vm759, %v1447, %v1448
      %v1450 = vrot.slane %v1444, 1
      %v1451 = vsel %vm759, %v1448, %v1450
      %v1452 = vrot.slane %v1445, 1
      %v1453 = vsel %vm759, %v1450, %v1452
      %v1454 = vrot.slane %v1446, 1
      %v1455 = vsel %vm759, %v1452, %v1454
      %v1477 = vunpack.c.l.b16 %v1406
      %v1478 = vunpack.c.l.b16 %v1407
      %v1479 = vunpack.c.l.b16 %v1408
      %v1480 = vunpack.c.l.b16 %v1409
      %v1481 = vunpack.c.l.b16 %v1410
      %v1482 = vunpack.c.l.b16 %v1411
      %v1483 = vunpack.c.l.b16 %v1412
      %v1484 = vunpack.c.l.b16 %v1413
      %v1485 = vunpack.c.l.b16 %v1414
      %v1486 = vunpack.c.l.b16 %v1415
      %v1487 = vunpack.c.l.b16 %v1416
      %v1488 = vunpack.c.l.b16 %v1417
      %v1489 = vunpack.c.l.b16 %v1418
      %v1490 = vunpack.c.l.b16 %v1419
      %v1491 = vunpack.c.l.b16 %v1420
      %v1492 = vunpack.c.l.b16 %v1421
      %v1493 = vpack.c.b16 %v1478, %v1477
      %v1494 = vpack.c.b16 %v1480, %v1479
      %v1495 = vpack.c.b16 %v1482, %v1481
      %v1496 = vpack.c.b16 %v1484, %v1483
      %v1497 = vpack.c.b16 %v1486, %v1485
      %v1498 = vpack.c.b16 %v1488, %v1487
      %v1499 = vpack.c.b16 %v1490, %v1489
      %v1500 = vpack.c.b16 %v1492, %v1491
      %1509 = vmatpush.bf16.msra.mxu0 %v1500
      %1510 = vmatpush.bf16.msra.mxu0 %v1499
      %1511 = vmatpush.bf16.msra.mxu0 %v1498
      %1512 = vmatpush.bf16.msra.mxu0 %v1497
      %1513 = vmatpush.bf16.msra.mxu0 %v1496
      %1514 = vmatpush.bf16.msra.mxu0 %v1495
      %1515 = vmatpush.bf16.msra.mxu0 %v1494
      %1516 = vmatpush.bf16.msra.mxu0 %v1493
      %1517 = vmatmul.bf16.gmra.mxu0 %v1449
      %v1518 = vpop.f32.mrf.mxu0
      %v1519 = vadd.f32 0.0, %v1518
      %v1520 = vpop.f32.mrf.mxu0
      %v1521 = vadd.f32 0.0, %v1520
      %1522 = vmatmul.bf16.gmra.mxu0 %v1451
      %v1523 = vpop.f32.mrf.mxu0
      %v1524 = vadd.f32 0.0, %v1523
      %v1525 = vpop.f32.mrf.mxu0
      %v1526 = vadd.f32 0.0, %v1525
      %1527 = vmatmul.bf16.gmra.mxu0 %v1453
      %v1528 = vpop.f32.mrf.mxu0
      %v1529 = vadd.f32 0.0, %v1528
      %v1530 = vpop.f32.mrf.mxu0
      %v1531 = vadd.f32 0.0, %v1530
      %1532 = vmatmul.bf16.gmra.mxu0 %v1455
      %v1533 = vpop.f32.mrf.mxu0
      %v1534 = vadd.f32 0.0, %v1533
      %v1535 = vpop.f32.mrf.mxu0
      %v1536 = vadd.f32 0.0, %v1535
      %1537 = vmatmul.bf16.gmra.mxu0 %v1454
      %v1538 = vpop.f32.mrf.mxu0
      %v1539 = vadd.f32 0.0, %v1538
      %v1540 = vpop.f32.mrf.mxu0
      %1541 = vdwg.mxu0
      %v1542 = vadd.f32 %v1386, %v1519
      %v1543 = vadd.f32 %v1387, %v1521
      %v1544 = vadd.f32 %v1388, %v1524
      %v1545 = vadd.f32 %v1389, %v1526
      %v1546 = vadd.f32 %v1390, %v1529
      %v1547 = vadd.f32 %v1391, %v1531
      %v1548 = vadd.f32 %v1392, %v1534
      %v1549 = vadd.f32 %v1393, %v1536
      %v1550 = vadd.f32 %v1394, %v1539
      %v1551 = vld [vmem:[%s219 + $0x4] sm:$0xe]
      %v1552 = vld [vmem:[%s219 + $0x8] sm:$0xf]
      %v1553 = vld [vmem:[%s219 + $0xc] sm:$0xf]
      %v1554 = vld [vmem:[%s219 + $0x10] sm:$0xf]
      %v1555 = vld [vmem:[%s219 + $0x14] sm:$0xf]
      %v1556 = vld [vmem:[%s219 + $0x18] sm:$0xf]
      %v1557 = vld [vmem:[%s219 + $0x1c] sm:$0xf]
      %v1558 = vld [vmem:[%s219 + $0x20] sm:$0xf]
      %v1559 = vld [vmem:[%s219 + $0x24] sm:$0xf]
      %v1560 = vld [vmem:[%s219 + $0x28] sm:$0x1]
      %s1561 = scalar_lea.vmem %s1, 512
      %v1562 = vld [vmem:[%s1561] sm:$0xf]
      %v1563 = vld [vmem:[%s1561 + $0x4] sm:$0xf]
      %v1564 = vld [vmem:[%s1561 + $0x8] sm:$0xf]
      %v1565 = vld [vmem:[%s1561 + $0xc] sm:$0xf]
      %v1566 = vld [vmem:[%s1561 + $0x10] sm:$0xf]
      %v1567 = vld [vmem:[%s1561 + $0x14] sm:$0xf]
      %v1568 = vld [vmem:[%s1561 + $0x18] sm:$0xf]
      %v1569 = vld [vmem:[%s1561 + $0x1c] sm:$0xf]
      %v1570 = vld [vmem:[%s1561 + $0x20] sm:$0xf]
      %v1571 = vld [vmem:[%s1561 + $0x24] sm:$0xf]
      %v1572 = vld [vmem:[%s1561 + $0x28] sm:$0xf]
      %v1573 = vld [vmem:[%s1561 + $0x2c] sm:$0xf]
      %v1574 = vld [vmem:[%s1561 + $0x30] sm:$0xf]
      %v1575 = vld [vmem:[%s1561 + $0x34] sm:$0xf]
      %v1576 = vld [vmem:[%s1561 + $0x38] sm:$0xf]
      %v1577 = vld [vmem:[%s1561 + $0x3c] sm:$0xf]
      %v1588 = vunpack.c.l.b16 %v1551
      %v1589 = vunpack.c.l.b16 %v1552
      %v1590 = vunpack.c.l.b16 %v1553
      %v1591 = vunpack.c.l.b16 %v1554
      %v1592 = vunpack.c.l.b16 %v1555
      %v1593 = vunpack.c.l.b16 %v1556
      %v1594 = vunpack.c.l.b16 %v1557
      %v1595 = vunpack.c.l.b16 %v1558
      %v1596 = vunpack.c.l.b16 %v1559
      %v1597 = vunpack.c.l.b16 %v1560
      %v1598 = vpack.c.b16 %v1589, %v1588
      %v1599 = vpack.c.b16 %v1591, %v1590
      %v1600 = vpack.c.b16 %v1593, %v1592
      %v1601 = vpack.c.b16 %v1595, %v1594
      %v1602 = vpack.c.b16 %v1597, %v1596
      %v1603 = vrot.slane %v1598, 1
      %v1604 = vrot.slane %v1599, 1
      %v1605 = vsel %vm759, %v1603, %v1604
      %v1606 = vrot.slane %v1600, 1
      %v1607 = vsel %vm759, %v1604, %v1606
      %v1608 = vrot.slane %v1601, 1
      %v1609 = vsel %vm759, %v1606, %v1608
      %v1610 = vrot.slane %v1602, 1
      %v1611 = vsel %vm759, %v1608, %v1610
      %v1633 = vunpack.c.l.b16 %v1562
      %v1634 = vunpack.c.l.b16 %v1563
      %v1635 = vunpack.c.l.b16 %v1564
      %v1636 = vunpack.c.l.b16 %v1565
      %v1637 = vunpack.c.l.b16 %v1566
      %v1638 = vunpack.c.l.b16 %v1567
      %v1639 = vunpack.c.l.b16 %v1568
      %v1640 = vunpack.c.l.b16 %v1569
      %v1641 = vunpack.c.l.b16 %v1570
      %v1642 = vunpack.c.l.b16 %v1571
      %v1643 = vunpack.c.l.b16 %v1572
      %v1644 = vunpack.c.l.b16 %v1573
      %v1645 = vunpack.c.l.b16 %v1574
      %v1646 = vunpack.c.l.b16 %v1575
      %v1647 = vunpack.c.l.b16 %v1576
      %v1648 = vunpack.c.l.b16 %v1577
      %v1649 = vpack.c.b16 %v1634, %v1633
      %v1650 = vpack.c.b16 %v1636, %v1635
      %v1651 = vpack.c.b16 %v1638, %v1637
      %v1652 = vpack.c.b16 %v1640, %v1639
      %v1653 = vpack.c.b16 %v1642, %v1641
      %v1654 = vpack.c.b16 %v1644, %v1643
      %v1655 = vpack.c.b16 %v1646, %v1645
      %v1656 = vpack.c.b16 %v1648, %v1647
      %1665 = vmatpush.bf16.msra.mxu0 %v1656
      %1666 = vmatpush.bf16.msra.mxu0 %v1655
      %1667 = vmatpush.bf16.msra.mxu0 %v1654
      %1668 = vmatpush.bf16.msra.mxu0 %v1653
      %1669 = vmatpush.bf16.msra.mxu0 %v1652
      %1670 = vmatpush.bf16.msra.mxu0 %v1651
      %1671 = vmatpush.bf16.msra.mxu0 %v1650
      %1672 = vmatpush.bf16.msra.mxu0 %v1649
      %1673 = vmatmul.bf16.gmra.mxu0 %v1605
      %v1674 = vpop.f32.mrf.mxu0
      %v1675 = vadd.f32 0.0, %v1674
      %v1676 = vpop.f32.mrf.mxu0
      %v1677 = vadd.f32 0.0, %v1676
      %1678 = vmatmul.bf16.gmra.mxu0 %v1607
      %v1679 = vpop.f32.mrf.mxu0
      %v1680 = vadd.f32 0.0, %v1679
      %v1681 = vpop.f32.mrf.mxu0
      %v1682 = vadd.f32 0.0, %v1681
      %1683 = vmatmul.bf16.gmra.mxu0 %v1609
      %v1684 = vpop.f32.mrf.mxu0
      %v1685 = vadd.f32 0.0, %v1684
      %v1686 = vpop.f32.mrf.mxu0
      %v1687 = vadd.f32 0.0, %v1686
      %1688 = vmatmul.bf16.gmra.mxu0 %v1611
      %v1689 = vpop.f32.mrf.mxu0
      %v1690 = vadd.f32 0.0, %v1689
      %v1691 = vpop.f32.mrf.mxu0
      %v1692 = vadd.f32 0.0, %v1691
      %1693 = vmatmul.bf16.gmra.mxu0 %v1610
      %v1694 = vpop.f32.mrf.mxu0
      %v1695 = vadd.f32 0.0, %v1694
      %v1696 = vpop.f32.mrf.mxu0
      %1697 = vdwg.mxu0
      %v1698 = vadd.f32 %v1542, %v1675
      %v1699 = vadd.f32 %v1543, %v1677
      %v1700 = vadd.f32 %v1544, %v1680
      %v1701 = vadd.f32 %v1545, %v1682
      %v1702 = vadd.f32 %v1546, %v1685
      %v1703 = vadd.f32 %v1547, %v1687
      %v1704 = vadd.f32 %v1548, %v1690
      %v1705 = vadd.f32 %v1549, %v1692
      %v1706 = vadd.f32 %v1550, %v1695
      %v1707 = vld [vmem:[%s3] sm:$0x1]
      %v1708 = vld [vmem:[%s4] sm:$0x1]
      %v1710 = vperm.slane %v1707, 0
      %v1712 = vmul.f32 %v1698, %v1710
      %v1714 = vperm.slane %v1708, 0
      %v1716 = vadd.f32 %v1712, %v1714
      %v1717 = vmax.f32 %v1716, 0.0
      %v1718 = vpack.c.bf16 %v1717, %v1717
      %1719 = vst [vmem:[%s224] sm:$0xf] %v1718
      %v1720 = vmul.f32 %v1699, %v1710
      %v1721 = vmul.f32 %v1700, %v1710
      %v1722 = vadd.f32 %v1720, %v1714
      %v1723 = vadd.f32 %v1721, %v1714
      %v1724 = vmax.f32 %v1722, 0.0
      %v1725 = vmax.f32 %v1723, 0.0
      %v1726 = vpack.c.bf16 %v1724, %v1724
      %v1727 = vpack.c.bf16 %v1725, %v1725
      %vm1728 = vsmask.f32 3328
      %vm1729 = vsmask.f32 7440
      %vm1730 = vmor %vm1728, %vm1729
      %v1732 = vshrl.u32 %v1726, 16
      %v1734 = vrot.slane %v1732, 4
      %v1735 = vshll.u32 %v1726, 16
      %v1737 = vrot.slane %v1735, 5
      %v1738 = vor.u32 %v1734, %v1737
      %v1739 = vrot.slane %v1738, 4
      %v1741 = vshll.u32 %v1727, 16
      %v1743 = vrot.slane %v1741, 5
      %v1744 = vsel %vm1730, %v1739, %v1743
      %s1746 = scalar_lea.vmem %s224, 4
      %1747 = vst [vmem:[%s1746] sm:$0xf] %v1744
      %v1748 = vmul.f32 %v1701, %v1710
      %v1749 = vadd.f32 %v1748, %v1714
      %v1750 = vmax.f32 %v1749, 0.0
      %v1751 = vpack.c.bf16 %v1750, %v1750
      %vm1754 = vcmask 1042432
      %vm1755 = vcmask 1046532
      %vm1756 = vmor %vm1754, %vm1755
      %v1757 = vrot.slane %v1727, 5
      %v1758 = vrot.slane %v1757, 4
      %v1759 = vrot.slane %v1751, 5
      %v1760 = vsel %vm1756, %v1758, %v1759
      %s1762 = scalar_lea.vmem %s224, 8
      %1763 = vst [vmem:[%s1762] sm:$0xf] %v1760
      %v1764 = vmul.f32 %v1702, %v1710
      %v1765 = vadd.f32 %v1764, %v1714
      %v1766 = vmax.f32 %v1765, 0.0
      %v1767 = vpack.c.bf16 %v1766, %v1766
      %vm1768 = vsmask.f32 2304
      %vm1769 = vsmask.f32 6416
      %vm1770 = vmor %vm1768, %vm1769
      %v1772 = vshrl.u32 %v1751, 16
      %v1774 = vrot.slane %v1772, 5
      %v1775 = vshll.u32 %v1751, 16
      %v1777 = vrot.slane %v1775, 6
      %v1778 = vor.u32 %v1774, %v1777
      %v1779 = vrot.slane %v1778, 4
      %v1781 = vshrl.u32 %v1767, 16
      %v1783 = vrot.slane %v1781, 5
      %v1784 = vshll.u32 %v1767, 16
      %v1786 = vrot.slane %v1784, 6
      %v1787 = vor.u32 %v1783, %v1786
      %v1788 = vsel %vm1770, %v1779, %v1787
      %s1790 = scalar_lea.vmem %s224, 12
      %1791 = vst [vmem:[%s1790] sm:$0xf] %v1788
      %v1792 = vmul.f32 %v1703, %v1710
      %v1793 = vadd.f32 %v1792, %v1714
      %v1794 = vmax.f32 %v1793, 0.0
      %v1795 = vpack.c.bf16 %v1794, %v1794
      %vm1798 = vcmask 1041408
      %vm1799 = vcmask 1045508
      %vm1800 = vmor %vm1798, %vm1799
      %v1801 = vrot.slane %v1767, 6
      %v1802 = vrot.slane %v1801, 4
      %v1803 = vrot.slane %v1795, 6
      %v1804 = vsel %vm1800, %v1802, %v1803
      %s1806 = scalar_lea.vmem %s224, 16
      %1807 = vst [vmem:[%s1806] sm:$0xf] %v1804
      %v1808 = vmul.f32 %v1704, %v1710
      %v1809 = vadd.f32 %v1808, %v1714
      %v1810 = vmax.f32 %v1809, 0.0
      %v1811 = vpack.c.bf16 %v1810, %v1810
      %vm1812 = vsmask.f32 1280
      %vm1813 = vsmask.f32 5392
      %vm1814 = vmor %vm1812, %vm1813
      %v1816 = vshrl.u32 %v1795, 16
      %v1818 = vrot.slane %v1816, 6
      %v1819 = vshll.u32 %v1795, 16
      %v1821 = vrot.slane %v1819, 7
      %v1822 = vor.u32 %v1818, %v1821
      %v1823 = vrot.slane %v1822, 4
      %v1825 = vshrl.u32 %v1811, 16
      %v1827 = vrot.slane %v1825, 6
      %v1828 = vshll.u32 %v1811, 16
      %v1830 = vrot.slane %v1828, 7
      %v1831 = vor.u32 %v1827, %v1830
      %v1832 = vsel %vm1814, %v1823, %v1831
      %s1834 = scalar_lea.vmem %s224, 20
      %1835 = vst [vmem:[%s1834] sm:$0xf] %v1832
      %v1836 = vmul.f32 %v1705, %v1710
      %v1837 = vadd.f32 %v1836, %v1714
      %v1838 = vmax.f32 %v1837, 0.0
      %v1839 = vpack.c.bf16 %v1838, %v1838
      %vm1842 = vcmask 1040384
      %vm1843 = vcmask 1044484
      %vm1844 = vmor %vm1842, %vm1843
      %v1845 = vrot.slane %v1811, 7
      %v1846 = vrot.slane %v1845, 4
      %v1847 = vrot.slane %v1839, 7
      %v1848 = vsel %vm1844, %v1846, %v1847
      %s1850 = scalar_lea.vmem %s224, 24
      %1851 = vst [vmem:[%s1850] sm:$0xf] %v1848
      %v1852 = vmul.f32 %v1706, %v1710
      %v1853 = vadd.f32 %v1852, %v1714
      %v1854 = vmax.f32 %v1853, 0.0
      %v1855 = vpack.c.bf16 %v1854, %v1854
      %vm1856 = vsmask.f32 256
      %vm1857 = vsmask.f32 4368
      %vm1858 = vmor %vm1856, %vm1857
      %v1860 = vshrl.u32 %v1839, 16
      %v1862 = vrot.slane %v1860, 7
      %v1863 = vrot.slane %v1862, 4
      %v1865 = vshrl.u32 %v1855, 16
      %v1867 = vrot.slane %v1865, 7
      %v1868 = vshll.u32 %v1855, 16
      %v1870 = vor.u32 %v1867, %v1868
      %v1871 = vsel %vm1858, %v1863, %v1870
      %s1873 = scalar_lea.vmem %s224, 28
      %1874 = vst [vmem:[%s1873] sm:$0xf] %v1871
      %p1875 = scmp.lt.s32.totalorder %s16, 1
      %s1876 = scalar_select %p1875, %s16, 1
      %s1877 = smul.addr %s1876, 8
      %s1878 = smul.addr %s1877, 4
      %s1879 = scalar_lea.vmem %s5, %s1878
      // Predicated region
      $region41: #{_lambda_.5} parent=39 // pred_check
        %p1880 = pneg %p144
      $region42: #{_lambda_.5} parent=39 // pred_check_branch
        %1882 = sbr.rel (%p1880) target = $region44
      $region43: #{_lambda_.5} parent=39 // pred_region
        _
      $region44: #{_lambda_.5} parent=39 // pred_fallthru
        _
    $region40: #{_lambda_.5} parent=5 // pred_fallthru
      _
    %p1883 = scmp.le.s32.totalorder 2, %s11
    // Predicated region
    $region45: #{_lambda_.5} parent=5 // pred_check
      %p1884 = pneg %p1883
    $region46: #{_lambda_.5} parent=5 // pred_check_branch
      %1886 = sbr.rel (%p1884) target = $region48
    $region47: #{_lambda_.5} parent=5 // pred_region
      %s1887 = ssub.s32 %s11, 2
      // Predicated region
      $region49: #{_lambda_.5} parent=47 // pred_check
        %p1888 = pneg %p150
      $region50: #{_lambda_.5} parent=47 // pred_check_branch
        %1890 = sbr.rel (%p1888) target = $region52
      $region51: #{_lambda_.5} parent=47 // pred_region
        %p1891 = scmp.lt.s32.totalorder %s17, 1
        %s1892 = scalar_select %p1891, %s17, 1
        %s1893 = smul.addr %s1892, 8
        %s1894 = smul.addr %s1893, 4
        %s1895 = scalar_lea.vmem %s5, %s1894
      $region52: #{_lambda_.5} parent=47 // pred_fallthru
        _
    $region48: #{_lambda_.5} parent=5 // pred_fallthru
      _
  $region6: #{_lambda_.5} parent=0 // loop_footer
    %s15 = sadd.s32 1, %s11
  $region7: #{_lambda_.5} parent=0 // loop_footer_branch
    %10 = sbr.rel target = $region3
  $region8: #{_lambda_.5} parent=0 // loop_exit
    _

// kernel: _lambda_.7
$region0: #{_lambda_.7}
  #allocation0 [shape = 'u32[]', space=smem, size = 0x4, offset = 0x4, fixed_abs, tag = 'smem constant byte address 0x4 - core index']
  #allocation1 [shape = 'u32[72,128]{1,0:T(1,128)}', space=vmem, size = 0x9000, scoped, tag = 'internal scratch']
  %s0 = inlined_call_operand.vmem [shape: bf16[2,100,128], index: 0, kind: input, shape index: {}]
  %s1 = inlined_call_operand.vmem [shape: bf16[9,128,128], index: 1, kind: input, shape index: {}]
  %s2 = inlined_call_operand.vmem [shape: f32[1,128], index: 2, kind: input, shape index: {}]
  %s3 = inlined_call_operand.vmem [shape: f32[2,8,8,128], index: 3, kind: input, shape index: {}]
  %s4 = inlined_call_operand.vmem [shape: f32[2,8,8,128], index: 4, kind: output, shape index: {}]
  %s5 = sld [smem:[#allocation0]]
  $region49: #{_lambda_.7} parent=0
    _
  %s7 = ssub.s32 1, %s5
  %s8 = scalar_select 0, %s7, %s5
  loop: start=0, step=1, limit=4
  $region2: #{_lambda_.7} parent=0 // loop_pre_header
    _
  $region3: #{_lambda_.7} parent=0 // loop_header
    %s10 = sphi 0, %s14
    %p11 = scmp.ge.s32.totalorder %s10, 4
    %s20 = sphi 0, %s22
    %s23 = sphi 0, %s20
    %s24 = sphi 0, %s23
    %s40 = sphi 0, %s24
    %s44 = sphi 0, %s44
    %s46 = sphi 0, %s44
    %s47 = sphi 0, %s46
    %s61 = sphi 0, %s47
    %s65 = sphi 0, %s65
    %s67 = sphi 0, %s65
    %s68 = sphi 0, %s67
    %s82 = sphi 0, %s68
    %s88 = sphi 0, %s90
    %s91 = sphi 0, %s88
    %s92 = sphi 0, %s91
    %s108 = sphi 0, %s92
    %s114 = sphi 0, %s116
    %s117 = sphi 0, %s114
    %s118 = sphi 0, %s117
    %s134 = sphi 0, %s118
  $region4: #{_lambda_.7} parent=0 // loop_header_branch
    %13 = sbr.rel (%p11) target = $region8
  $region5: #{_lambda_.7} parent=0 // loop_body
    %s15 = ssub.s32 %s10, 1
    %s16 = ssub.s32 %s10, 2
    %s17 = sadd.s32 %s10, 1
    %s18 = ssub.s32 %s10, %s17
    %p19 = scmp.eq.s32.totalorder %s18, 0
    %s21 = sadd.s32 %s20, 1
    %s22 = scalar_select %p19, %s20, %s21
    %p25 = pneg %p19
    %p26 = scmp.eq.s32.totalorder %s10, 1
    %p27 = por %p25, %p26
    %p28 = scmp.ne.s32.totalorder %s20, %s23
    %p29 = scmp.eq.s32.totalorder %s10, 0
    %p30 = por %p28, %p29
    %p31 = scmp.ne.s32.totalorder %s20, %s23
    %p32 = scmp.eq.s32.totalorder %s15, 1
    %p33 = por %p31, %p32
    %p34 = scmp.ne.s32.totalorder %s23, %s24
    %p35 = scmp.eq.s32.totalorder %s15, 0
    %p36 = por %p34, %p35
    %p37 = scmp.ne.s32.totalorder %s23, %s24
    %p38 = scmp.eq.s32.totalorder %s16, 1
    %p39 = por %p37, %p38
    %p41 = scmp.ne.s32.totalorder %s24, %s40
    %p42 = scmp.eq.s32.totalorder %s16, 0
    %p43 = por %p41, %p42
    %s45 = sadd.s32 %s44, 1
    %p48 = scmp.eq.s32.totalorder %s10, 1
    %p49 = scmp.ne.s32.totalorder %s44, %s46
    %p50 = scmp.eq.s32.totalorder %s10, 0
    %p51 = por %p49, %p50
    %p52 = scmp.ne.s32.totalorder %s44, %s46
    %p53 = scmp.eq.s32.totalorder %s15, 1
    %p54 = por %p52, %p53
    %p55 = scmp.ne.s32.totalorder %s46, %s47
    %p56 = scmp.eq.s32.totalorder %s15, 0
    %p57 = por %p55, %p56
    %p58 = scmp.ne.s32.totalorder %s46, %s47
    %p59 = scmp.eq.s32.totalorder %s16, 1
    %p60 = por %p58, %p59
    %p62 = scmp.ne.s32.totalorder %s47, %s61
    %p63 = scmp.eq.s32.totalorder %s16, 0
    %p64 = por %p62, %p63
    %s66 = sadd.s32 %s65, 1
    %p69 = scmp.eq.s32.totalorder %s10, 1
    %p70 = scmp.ne.s32.totalorder %s65, %s67
    %p71 = scmp.eq.s32.totalorder %s10, 0
    %p72 = por %p70, %p71
    %p73 = scmp.ne.s32.totalorder %s65, %s67
    %p74 = scmp.eq.s32.totalorder %s15, 1
    %p75 = por %p73, %p74
    %p76 = scmp.ne.s32.totalorder %s67, %s68
    %p77 = scmp.eq.s32.totalorder %s15, 0
    %p78 = por %p76, %p77
    %p79 = scmp.ne.s32.totalorder %s67, %s68
    %p80 = scmp.eq.s32.totalorder %s16, 1
    %p81 = por %p79, %p80
    %p83 = scmp.ne.s32.totalorder %s68, %s82
    %p84 = scmp.eq.s32.totalorder %s16, 0
    %p85 = por %p83, %p84
    %s86 = ssub.s32 %s10, %s17
    %p87 = scmp.eq.s32.totalorder %s86, 0
    %s89 = sadd.s32 %s88, 1
    %s90 = scalar_select %p87, %s88, %s89
    %p93 = pneg %p87
    %p94 = scmp.eq.s32.totalorder %s10, 1
    %p95 = por %p93, %p94
    %p96 = scmp.ne.s32.totalorder %s88, %s91
    %p97 = scmp.eq.s32.totalorder %s10, 0
    %p98 = por %p96, %p97
    %p99 = scmp.ne.s32.totalorder %s88, %s91
    %p100 = scmp.eq.s32.totalorder %s15, 1
    %p101 = por %p99, %p100
    %p102 = scmp.ne.s32.totalorder %s91, %s92
    %p103 = scmp.eq.s32.totalorder %s15, 0
    %p104 = por %p102, %p103
    %p105 = scmp.ne.s32.totalorder %s91, %s92
    %p106 = scmp.eq.s32.totalorder %s16, 1
    %p107 = por %p105, %p106
    %p109 = scmp.ne.s32.totalorder %s92, %s108
    %p110 = scmp.eq.s32.totalorder %s16, 0
    %p111 = por %p109, %p110
    %s112 = ssub.s32 %s10, %s17
    %p113 = scmp.eq.s32.totalorder %s112, 0
    %s115 = sadd.s32 %s114, 1
    %s116 = scalar_select %p113, %s114, %s115
    %p119 = pneg %p113
    %p120 = scmp.eq.s32.totalorder %s10, 1
    %p121 = por %p119, %p120
    %p122 = scmp.ne.s32.totalorder %s114, %s117
    %p123 = scmp.eq.s32.totalorder %s10, 0
    %p124 = por %p122, %p123
    %p125 = scmp.ne.s32.totalorder %s114, %s117
    %p126 = scmp.eq.s32.totalorder %s15, 1
    %p127 = por %p125, %p126
    %p128 = scmp.ne.s32.totalorder %s117, %s118
    %p129 = scmp.eq.s32.totalorder %s15, 0
    %p130 = por %p128, %p129
    %p131 = scmp.ne.s32.totalorder %s117, %s118
    %p132 = scmp.eq.s32.totalorder %s16, 1
    %p133 = por %p131, %p132
    %p135 = scmp.ne.s32.totalorder %s118, %s134
    %p136 = scmp.eq.s32.totalorder %s16, 0
    %p137 = por %p135, %p136
    %p138 = scmp.le.s32.totalorder 1, %s10
    %p139 = scmp.lt.s32.totalorder %s10, 3
    %p140 = pnand %p138, %p139
    %p141 = pneg %p140
    // Predicated region
    $region9: #{_lambda_.7} parent=5 // pred_check
      _
    $region10: #{_lambda_.7} parent=5 // pred_check_branch
      %143 = sbr.rel (%p140) target = $region12
    $region11: #{_lambda_.7} parent=5 // pred_region
      %s144 = ssub.s32 %s10, 1
      // Predicated region
      $region13: #{_lambda_.7} parent=11 // pred_check
        %p145 = pneg %p57
      $region14: #{_lambda_.7} parent=11 // pred_check_branch
        %147 = sbr.rel (%p145) target = $region16
      $region15: #{_lambda_.7} parent=11 // pred_region
        _
      $region16: #{_lambda_.7} parent=11 // pred_fallthru
        _
      // Predicated region
      $region17: #{_lambda_.7} parent=11 // pred_check
        %p148 = pneg %p78
      $region18: #{_lambda_.7} parent=11 // pred_check_branch
        %150 = sbr.rel (%p148) target = $region20
      $region19: #{_lambda_.7} parent=11 // pred_region
        _
      $region20: #{_lambda_.7} parent=11 // pred_fallthru
        _
    $region12: #{_lambda_.7} parent=5 // pred_fallthru
      _
    %p151 = scmp.lt.s32.totalorder %s10, 2
    // Predicated region
    $region21: #{_lambda_.7} parent=5 // pred_check
      %p152 = pneg %p151
    $region22: #{_lambda_.7} parent=5 // pred_check_branch
      %154 = sbr.rel (%p152) target = $region24
    $region23: #{_lambda_.7} parent=5 // pred_region
      // Predicated region
      $region25: #{_lambda_.7} parent=23 // pred_check
        %p155 = pneg %p30
      $region26: #{_lambda_.7} parent=23 // pred_check_branch
        %157 = sbr.rel (%p155) target = $region28
      $region27: #{_lambda_.7} parent=23 // pred_region
        %p158 = scmp.lt.s32.totalorder %s10, 1
        %s159 = scalar_select %p158, %s10, 1
        %s160 = smul.addr %s159, 13
        %s161 = smul.addr %s160, 4
        %s162 = scalar_lea.vmem %s0, %s161
      $region28: #{_lambda_.7} parent=23 // pred_fallthru
        _
      // Predicated region
      $region29: #{_lambda_.7} parent=23 // pred_check
        %p163 = pneg %p98
      $region30: #{_lambda_.7} parent=23 // pred_check_branch
        %165 = sbr.rel (%p163) target = $region32
      $region31: #{_lambda_.7} parent=23 // pred_region
        %p166 = scmp.lt.s32.totalorder %s10, 1
        %s167 = scalar_select %p166, %s10, 1
        %s168 = smul.addr %s167, 8
        %s169 = smul.addr %s168, 8
        %s170 = scalar_lea.vmem %s3, %s169
      $region32: #{_lambda_.7} parent=23 // pred_fallthru
        _
    $region24: #{_lambda_.7} parent=5 // pred_fallthru
      _
    %p171 = scmp.le.s32.totalorder 1, %s10
    %p172 = scmp.lt.s32.totalorder %s10, 3
    %p173 = pnand %p171, %p172
    %p174 = pneg %p173
    // Predicated region
    $region33: #{_lambda_.7} parent=5 // pred_check
      _
    $region34: #{_lambda_.7} parent=5 // pred_check_branch
      %176 = sbr.rel (%p173) target = $region36
    $region35: #{_lambda_.7} parent=5 // pred_region
      %s177 = ssub.s32 %s10, 1
      %p178 = scmp.lt.s32.totalorder %s15, 1
      %s179 = scalar_select %p178, %s15, 1
      %s180 = smul.addr %s179, 13
      %s181 = smul.addr %s180, 4
      %s182 = scalar_lea.vmem %s0, %s181
      %p183 = pneg %p36
      %p184 = pneg %p33
      %p185 = pneg %p57
      %p186 = pneg %p54
      %p187 = pneg %p78
      %p188 = pneg %p75
      %p189 = scmp.lt.s32.totalorder %s15, 1
      %s190 = scalar_select %p189, %s15, 1
      %s191 = smul.addr %s190, 8
      %s192 = smul.addr %s191, 8
      %s193 = scalar_lea.vmem %s3, %s192
      %p194 = pneg %p104
      %p195 = pneg %p101
      %p196 = pneg %p130
      %p197 = pneg %p127
      %p198 = scmp.lt.s32.totalorder %s15, 1
      %s199 = scalar_select %p198, %s15, 1
      %s200 = smul.addr %s199, 8
      %s201 = smul.addr %s200, 8
      %s202 = scalar_lea.vmem %s4, %s201
      %p203 = scmp.lt.s32.totalorder %s15, 1
      %s204 = scalar_select %p203, %s15, 1
      %s205 = smul.addr %s204, 13
      %s206 = smul.addr %s205, 4
      %s207 = scalar_lea.vmem %s0, %s206
      %p208 = scmp.lt.s32.totalorder %s15, 1
      %s209 = scalar_select %p208, %s15, 1
      %s210 = smul.addr %s209, 8
      %s211 = smul.addr %s210, 8
      %s212 = scalar_lea.vmem %s3, %s211
      %p213 = scmp.lt.s32.totalorder %s15, 1
      %s214 = scalar_select %p213, %s15, 1
      %s215 = smul.addr %s214, 8
      %s216 = smul.addr %s215, 8
      %s217 = scalar_lea.vmem %s4, %s216
      %v218 = vld [vmem:[%s2] sm:$0x1]
      %v220 = vperm.slane %v218, 0
      %v222 = vld [vmem:[%s207] sm:$0xf]
      %v223 = vld [vmem:[%s207 + $0x4] sm:$0xf]
      %v224 = vld [vmem:[%s207 + $0x8] sm:$0xf]
      %v225 = vld [vmem:[%s207 + $0xc] sm:$0xf]
      %v226 = vld [vmem:[%s207 + $0x10] sm:$0xf]
      %v227 = vld [vmem:[%s207 + $0x14] sm:$0xf]
      %v228 = vld [vmem:[%s207 + $0x18] sm:$0xf]
      %v229 = vld [vmem:[%s207 + $0x1c] sm:$0xf]
      %v230 = vld [vmem:[%s207 + $0x20] sm:$0xf]
      %v231 = vld [vmem:[%s207 + $0x24] sm:$0x7]
      %v232 = vld [vmem:[%s1] sm:$0xf]
      %v233 = vld [vmem:[%s1 + $0x4] sm:$0xf]
      %v234 = vld [vmem:[%s1 + $0x8] sm:$0xf]
      %v235 = vld [vmem:[%s1 + $0xc] sm:$0xf]
      %v236 = vld [vmem:[%s1 + $0x10] sm:$0xf]
      %v237 = vld [vmem:[%s1 + $0x14] sm:$0xf]
      %v238 = vld [vmem:[%s1 + $0x18] sm:$0xf]
      %v239 = vld [vmem:[%s1 + $0x1c] sm:$0xf]
      %v240 = vld [vmem:[%s1 + $0x20] sm:$0xf]
      %v241 = vld [vmem:[%s1 + $0x24] sm:$0xf]
      %v242 = vld [vmem:[%s1 + $0x28] sm:$0xf]
      %v243 = vld [vmem:[%s1 + $0x2c] sm:$0xf]
      %v244 = vld [vmem:[%s1 + $0x30] sm:$0xf]
      %v245 = vld [vmem:[%s1 + $0x34] sm:$0xf]
      %v246 = vld [vmem:[%s1 + $0x38] sm:$0xf]
      %v247 = vld [vmem:[%s1 + $0x3c] sm:$0xf]
      %v258 = vunpack.c.l.b16 %v222
      %v259 = vunpack.c.l.b16 %v223
      %v260 = vunpack.c.l.b16 %v224
      %v261 = vunpack.c.l.b16 %v225
      %v262 = vunpack.c.l.b16 %v226
      %v263 = vunpack.c.l.b16 %v227
      %v264 = vunpack.c.l.b16 %v228
      %v265 = vunpack.c.l.b16 %v229
      %v266 = vunpack.c.l.b16 %v230
      %v267 = vunpack.c.l.b16 %v231
      %v268 = vpack.c.b16 %v259, %v258
      %v269 = vpack.c.b16 %v261, %v260
      %v270 = vpack.c.b16 %v263, %v262
      %v271 = vpack.c.b16 %v265, %v264
      %v272 = vpack.c.b16 %v267, %v266
      %v294 = vunpack.c.l.b16 %v232
      %v295 = vunpack.c.l.b16 %v233
      %v296 = vunpack.c.l.b16 %v234
      %v297 = vunpack.c.l.b16 %v235
      %v298 = vunpack.c.l.b16 %v236
      %v299 = vunpack.c.l.b16 %v237
      %v300 = vunpack.c.l.b16 %v238
      %v301 = vunpack.c.l.b16 %v239
      %v302 = vunpack.c.l.b16 %v240
      %v303 = vunpack.c.l.b16 %v241
      %v304 = vunpack.c.l.b16 %v242
      %v305 = vunpack.c.l.b16 %v243
      %v306 = vunpack.c.l.b16 %v244
      %v307 = vunpack.c.l.b16 %v245
      %v308 = vunpack.c.l.b16 %v246
      %v309 = vunpack.c.l.b16 %v247
      %v310 = vpack.c.b16 %v295, %v294
      %v311 = vpack.c.b16 %v297, %v296
      %v312 = vpack.c.b16 %v299, %v298
      %v313 = vpack.c.b16 %v301, %v300
      %v314 = vpack.c.b16 %v303, %v302
      %v315 = vpack.c.b16 %v305, %v304
      %v316 = vpack.c.b16 %v307, %v306
      %v317 = vpack.c.b16 %v309, %v308
      %326 = vmatpush.bf16.msra.mxu0 %v317
      %327 = vmatpush.bf16.msra.mxu0 %v316
      %328 = vmatpush.bf16.msra.mxu0 %v315
      %329 = vmatpush.bf16.msra.mxu0 %v314
      %330 = vmatpush.bf16.msra.mxu0 %v313
      %331 = vmatpush.bf16.msra.mxu0 %v312
      %332 = vmatpush.bf16.msra.mxu0 %v311
      %333 = vmatpush.bf16.msra.mxu0 %v310
      %334 = vmatmul.bf16.gmra.mxu0 %v268
      %v335 = vpop.f32.mrf.mxu0
      %v336 = vadd.f32 0.0, %v335
      %v337 = vpop.f32.mrf.mxu0
      %v338 = vadd.f32 0.0, %v337
      %339 = vmatmul.bf16.gmra.mxu0 %v269
      %v340 = vpop.f32.mrf.mxu0
      %v341 = vadd.f32 0.0, %v340
      %v342 = vpop.f32.mrf.mxu0
      %v343 = vadd.f32 0.0, %v342
      %344 = vmatmul.bf16.gmra.mxu0 %v270
      %v345 = vpop.f32.mrf.mxu0
      %v346 = vadd.f32 0.0, %v345
      %v347 = vpop.f32.mrf.mxu0
      %v348 = vadd.f32 0.0, %v347
      %349 = vmatmul.bf16.gmra.mxu0 %v271
      %v350 = vpop.f32.mrf.mxu0
      %v351 = vadd.f32 0.0, %v350
      %v352 = vpop.f32.mrf.mxu0
      %v353 = vadd.f32 0.0, %v352
      %354 = vmatmul.bf16.gmra.mxu0 %v272
      %v355 = vpop.f32.mrf.mxu0
      %v356 = vadd.f32 0.0, %v355
      %v357 = vpop.f32.mrf.mxu0
      %v358 = vadd.f32 0.0, %v357
      %359 = vdwg.mxu0
      %v360 = vadd.f32 %v220, %v336
      %v361 = vadd.f32 %v220, %v338
      %v362 = vadd.f32 %v220, %v341
      %v363 = vadd.f32 %v220, %v343
      %v364 = vadd.f32 %v220, %v346
      %v365 = vadd.f32 %v220, %v348
      %v366 = vadd.f32 %v220, %v351
      %v367 = vadd.f32 %v220, %v353
      %v368 = vadd.f32 %v220, %v356
      %v369 = vadd.f32 %v220, %v358
      %v370 = vld [vmem:[%s207 + $0x24] sm:$0xf]
      %s371 = scalar_lea.vmem %s1, 64
      %v372 = vld [vmem:[%s371] sm:$0xf]
      %v373 = vld [vmem:[%s371 + $0x4] sm:$0xf]
      %v374 = vld [vmem:[%s371 + $0x8] sm:$0xf]
      %v375 = vld [vmem:[%s371 + $0xc] sm:$0xf]
      %v376 = vld [vmem:[%s371 + $0x10] sm:$0xf]
      %v377 = vld [vmem:[%s371 + $0x14] sm:$0xf]
      %v378 = vld [vmem:[%s371 + $0x18] sm:$0xf]
      %v379 = vld [vmem:[%s371 + $0x1c] sm:$0xf]
      %v380 = vld [vmem:[%s371 + $0x20] sm:$0xf]
      %v381 = vld [vmem:[%s371 + $0x24] sm:$0xf]
      %v382 = vld [vmem:[%s371 + $0x28] sm:$0xf]
      %v383 = vld [vmem:[%s371 + $0x2c] sm:$0xf]
      %v384 = vld [vmem:[%s371 + $0x30] sm:$0xf]
      %v385 = vld [vmem:[%s371 + $0x34] sm:$0xf]
      %v386 = vld [vmem:[%s371 + $0x38] sm:$0xf]
      %v387 = vld [vmem:[%s371 + $0x3c] sm:$0xf]
      %v389 = vunpack.c.l.b16 %v370
      %v390 = vpack.c.b16 %v389, %v266
      %vm391 = vsmask.f32 7424
      %v393 = vshrl.u32 %v268, 16
      %v395 = vshll.u32 %v268, 16
      %v397 = vrot.slane %v395, 1
      %v398 = vor.u32 %v393, %v397
      %v400 = vshll.u32 %v269, 16
      %v402 = vrot.slane %v400, 1
      %v403 = vsel %vm391, %v398, %v402
      %v404 = vshrl.u32 %v269, 16
      %v406 = vor.u32 %v404, %v402
      %v408 = vshll.u32 %v270, 16
      %v410 = vrot.slane %v408, 1
      %v411 = vsel %vm391, %v406, %v410
      %v412 = vshrl.u32 %v270, 16
      %v414 = vor.u32 %v412, %v410
      %v416 = vshll.u32 %v271, 16
      %v418 = vrot.slane %v416, 1
      %v419 = vsel %vm391, %v414, %v418
      %v420 = vshrl.u32 %v271, 16
      %v422 = vor.u32 %v420, %v418
      %v424 = vshll.u32 %v390, 16
      %v426 = vrot.slane %v424, 1
      %v427 = vsel %vm391, %v422, %v426
      %v428 = vshrl.u32 %v390, 16
      %v430 = vor.u32 %v428, %v426
      %v452 = vunpack.c.l.b16 %v372
      %v453 = vunpack.c.l.b16 %v373
      %v454 = vunpack.c.l.b16 %v374
      %v455 = vunpack.c.l.b16 %v375
      %v456 = vunpack.c.l.b16 %v376
      %v457 = vunpack.c.l.b16 %v377
      %v458 = vunpack.c.l.b16 %v378
      %v459 = vunpack.c.l.b16 %v379
      %v460 = vunpack.c.l.b16 %v380
      %v461 = vunpack.c.l.b16 %v381
      %v462 = vunpack.c.l.b16 %v382
      %v463 = vunpack.c.l.b16 %v383
      %v464 = vunpack.c.l.b16 %v384
      %v465 = vunpack.c.l.b16 %v385
      %v466 = vunpack.c.l.b16 %v386
      %v467 = vunpack.c.l.b16 %v387
      %v468 = vpack.c.b16 %v453, %v452
      %v469 = vpack.c.b16 %v455, %v454
      %v470 = vpack.c.b16 %v457, %v456
      %v471 = vpack.c.b16 %v459, %v458
      %v472 = vpack.c.b16 %v461, %v460
      %v473 = vpack.c.b16 %v463, %v462
      %v474 = vpack.c.b16 %v465, %v464
      %v475 = vpack.c.b16 %v467, %v466
      %484 = vmatpush.bf16.msra.mxu0 %v475
      %485 = vmatpush.bf16.msra.mxu0 %v474
      %486 = vmatpush.bf16.msra.mxu0 %v473
      %487 = vmatpush.bf16.msra.mxu0 %v472
      %488 = vmatpush.bf16.msra.mxu0 %v471
      %489 = vmatpush.bf16.msra.mxu0 %v470
      %490 = vmatpush.bf16.msra.mxu0 %v469
      %491 = vmatpush.bf16.msra.mxu0 %v468
      %492 = vmatmul.bf16.gmra.mxu0 %v403
      %v493 = vpop.f32.mrf.mxu0
      %v494 = vadd.f32 0.0, %v493
      %v495 = vpop.f32.mrf.mxu0
      %v496 = vadd.f32 0.0, %v495
      %497 = vmatmul.bf16.gmra.mxu0 %v411
      %v498 = vpop.f32.mrf.mxu0
      %v499 = vadd.f32 0.0, %v498
      %v500 = vpop.f32.mrf.mxu0
      %v501 = vadd.f32 0.0, %v500
      %502 = vmatmul.bf16.gmra.mxu0 %v419
      %v503 = vpop.f32.mrf.mxu0
      %v504 = vadd.f32 0.0, %v503
      %v505 = vpop.f32.mrf.mxu0
      %v506 = vadd.f32 0.0, %v505
      %507 = vmatmul.bf16.gmra.mxu0 %v427
      %v508 = vpop.f32.mrf.mxu0
      %v509 = vadd.f32 0.0, %v508
      %v510 = vpop.f32.mrf.mxu0
      %v511 = vadd.f32 0.0, %v510
      %512 = vmatmul.bf16.gmra.mxu0 %v430
      %v513 = vpop.f32.mrf.mxu0
      %v514 = vadd.f32 0.0, %v513
      %v515 = vpop.f32.mrf.mxu0
      %v516 = vadd.f32 0.0, %v515
      %517 = vdwg.mxu0
      %v518 = vadd.f32 %v360, %v494
      %v519 = vadd.f32 %v361, %v496
      %v520 = vadd.f32 %v362, %v499
      %v521 = vadd.f32 %v363, %v501
      %v522 = vadd.f32 %v364, %v504
      %v523 = vadd.f32 %v365, %v506
      %v524 = vadd.f32 %v366, %v509
      %v525 = vadd.f32 %v367, %v511
      %v526 = vadd.f32 %v368, %v514
      %v527 = vadd.f32 %v369, %v516
      %v528 = vld [vmem:[%s207] sm:$0xe]
      %s529 = scalar_lea.vmem %s1, 128
      %v530 = vld [vmem:[%s529] sm:$0xf]
      %v531 = vld [vmem:[%s529 + $0x4] sm:$0xf]
      %v532 = vld [vmem:[%s529 + $0x8] sm:$0xf]
      %v533 = vld [vmem:[%s529 + $0xc] sm:$0xf]
      %v534 = vld [vmem:[%s529 + $0x10] sm:$0xf]
      %v535 = vld [vmem:[%s529 + $0x14] sm:$0xf]
      %v536 = vld [vmem:[%s529 + $0x18] sm:$0xf]
      %v537 = vld [vmem:[%s529 + $0x1c] sm:$0xf]
      %v538 = vld [vmem:[%s529 + $0x20] sm:$0xf]
      %v539 = vld [vmem:[%s529 + $0x24] sm:$0xf]
      %v540 = vld [vmem:[%s529 + $0x28] sm:$0xf]
      %v541 = vld [vmem:[%s529 + $0x2c] sm:$0xf]
      %v542 = vld [vmem:[%s529 + $0x30] sm:$0xf]
      %v543 = vld [vmem:[%s529 + $0x34] sm:$0xf]
      %v544 = vld [vmem:[%s529 + $0x38] sm:$0xf]
      %v545 = vld [vmem:[%s529 + $0x3c] sm:$0xf]
      %v547 = vunpack.c.l.b16 %v528
      %v548 = vpack.c.b16 %v259, %v547
      %vm549 = vcmask 1046528
      %v550 = vrot.slane %v548, 1
      %v551 = vrot.slane %v269, 1
      %v552 = vsel %vm549, %v550, %v551
      %v553 = vrot.slane %v270, 1
      %v554 = vsel %vm549, %v551, %v553
      %v555 = vrot.slane %v271, 1
      %v556 = vsel %vm549, %v553, %v555
      %v557 = vrot.slane %v390, 1
      %v558 = vsel %vm549, %v555, %v557
      %v580 = vunpack.c.l.b16 %v530
      %v581 = vunpack.c.l.b16 %v531
      %v582 = vunpack.c.l.b16 %v532
      %v583 = vunpack.c.l.b16 %v533
      %v584 = vunpack.c.l.b16 %v534
      %v585 = vunpack.c.l.b16 %v535
      %v586 = vunpack.c.l.b16 %v536
      %v587 = vunpack.c.l.b16 %v537
      %v588 = vunpack.c.l.b16 %v538
      %v589 = vunpack.c.l.b16 %v539
      %v590 = vunpack.c.l.b16 %v540
      %v591 = vunpack.c.l.b16 %v541
      %v592 = vunpack.c.l.b16 %v542
      %v593 = vunpack.c.l.b16 %v543
      %v594 = vunpack.c.l.b16 %v544
      %v595 = vunpack.c.l.b16 %v545
      %v596 = vpack.c.b16 %v581, %v580
      %v597 = vpack.c.b16 %v583, %v582
      %v598 = vpack.c.b16 %v585, %v584
      %v599 = vpack.c.b16 %v587, %v586
      %v600 = vpack.c.b16 %v589, %v588
      %v601 = vpack.c.b16 %v591, %v590
      %v602 = vpack.c.b16 %v593, %v592
      %v603 = vpack.c.b16 %v595, %v594
      %612 = vmatpush.bf16.msra.mxu0 %v603
      %613 = vmatpush.bf16.msra.mxu0 %v602
      %614 = vmatpush.bf16.msra.mxu0 %v601
      %615 = vmatpush.bf16.msra.mxu0 %v600
      %616 = vmatpush.bf16.msra.mxu0 %v599
      %617 = vmatpush.bf16.msra.mxu0 %v598
      %618 = vmatpush.bf16.msra.mxu0 %v597
      %619 = vmatpush.bf16.msra.mxu0 %v596
      %620 = vmatmul.bf16.gmra.mxu0 %v552
      %v621 = vpop.f32.mrf.mxu0
      %v622 = vadd.f32 0.0, %v621
      %v623 = vpop.f32.mrf.mxu0
      %v624 = vadd.f32 0.0, %v623
      %625 = vmatmul.bf16.gmra.mxu0 %v554
      %v626 = vpop.f32.mrf.mxu0
      %v627 = vadd.f32 0.0, %v626
      %v628 = vpop.f32.mrf.mxu0
      %v629 = vadd.f32 0.0, %v628
      %630 = vmatmul.bf16.gmra.mxu0 %v556
      %v631 = vpop.f32.mrf.mxu0
      %v632 = vadd.f32 0.0, %v631
      %v633 = vpop.f32.mrf.mxu0
      %v634 = vadd.f32 0.0, %v633
      %635 = vmatmul.bf16.gmra.mxu0 %v558
      %v636 = vpop.f32.mrf.mxu0
      %v637 = vadd.f32 0.0, %v636
      %v638 = vpop.f32.mrf.mxu0
      %v639 = vadd.f32 0.0, %v638
      %640 = vmatmul.bf16.gmra.mxu0 %v557
      %v641 = vpop.f32.mrf.mxu0
      %v642 = vadd.f32 0.0, %v641
      %v643 = vpop.f32.mrf.mxu0
      %v644 = vadd.f32 0.0, %v643
      %645 = vdwg.mxu0
      %v646 = vadd.f32 %v518, %v622
      %v647 = vadd.f32 %v519, %v624
      %v648 = vadd.f32 %v520, %v627
      %v649 = vadd.f32 %v521, %v629
      %v650 = vadd.f32 %v522, %v632
      %v651 = vadd.f32 %v523, %v634
      %v652 = vadd.f32 %v524, %v637
      %v653 = vadd.f32 %v525, %v639
      %v654 = vadd.f32 %v526, %v642
      %v655 = vadd.f32 %v527, %v644
      %v656 = vld [vmem:[%s207 + $0x4] sm:$0xe]
      %v657 = vld [vmem:[%s207 + $0x8] sm:$0xf]
      %v658 = vld [vmem:[%s207 + $0xc] sm:$0xf]
      %v659 = vld [vmem:[%s207 + $0x10] sm:$0xf]
      %v660 = vld [vmem:[%s207 + $0x14] sm:$0xf]
      %v661 = vld [vmem:[%s207 + $0x18] sm:$0xf]
      %v662 = vld [vmem:[%s207 + $0x1c] sm:$0xf]
      %v663 = vld [vmem:[%s207 + $0x20] sm:$0xf]
      %v664 = vld [vmem:[%s207 + $0x24] sm:$0xf]
      %v665 = vld [vmem:[%s207 + $0x28] sm:$0xf]
      %s666 = scalar_lea.vmem %s1, 192
      %v667 = vld [vmem:[%s666] sm:$0xf]
      %v668 = vld [vmem:[%s666 + $0x4] sm:$0xf]
      %v669 = vld [vmem:[%s666 + $0x8] sm:$0xf]
      %v670 = vld [vmem:[%s666 + $0xc] sm:$0xf]
      %v671 = vld [vmem:[%s666 + $0x10] sm:$0xf]
      %v672 = vld [vmem:[%s666 + $0x14] sm:$0xf]
      %v673 = vld [vmem:[%s666 + $0x18] sm:$0xf]
      %v674 = vld [vmem:[%s666 + $0x1c] sm:$0xf]
      %v675 = vld [vmem:[%s666 + $0x20] sm:$0xf]
      %v676 = vld [vmem:[%s666 + $0x24] sm:$0xf]
      %v677 = vld [vmem:[%s666 + $0x28] sm:$0xf]
      %v678 = vld [vmem:[%s666 + $0x2c] sm:$0xf]
      %v679 = vld [vmem:[%s666 + $0x30] sm:$0xf]
      %v680 = vld [vmem:[%s666 + $0x34] sm:$0xf]
      %v681 = vld [vmem:[%s666 + $0x38] sm:$0xf]
      %v682 = vld [vmem:[%s666 + $0x3c] sm:$0xf]
      %v693 = vunpack.c.l.b16 %v656
      %v694 = vunpack.c.l.b16 %v657
      %v695 = vunpack.c.l.b16 %v658
      %v696 = vunpack.c.l.b16 %v659
      %v697 = vunpack.c.l.b16 %v660
      %v698 = vunpack.c.l.b16 %v661
      %v699 = vunpack.c.l.b16 %v662
      %v700 = vunpack.c.l.b16 %v663
      %v701 = vunpack.c.l.b16 %v664
      %v702 = vunpack.c.l.b16 %v665
      %v703 = vpack.c.b16 %v694, %v693
      %v704 = vpack.c.b16 %v696, %v695
      %v705 = vpack.c.b16 %v698, %v697
      %v706 = vpack.c.b16 %v700, %v699
      %v707 = vpack.c.b16 %v702, %v701
      %v708 = vrot.slane %v703, 1
      %v709 = vrot.slane %v704, 1
      %v710 = vsel %vm549, %v708, %v709
      %v711 = vrot.slane %v705, 1
      %v712 = vsel %vm549, %v709, %v711
      %v713 = vrot.slane %v706, 1
      %v714 = vsel %vm549, %v711, %v713
      %v715 = vrot.slane %v707, 1
      %v716 = vsel %vm549, %v713, %v715
      %v738 = vunpack.c.l.b16 %v667
      %v739 = vunpack.c.l.b16 %v668
      %v740 = vunpack.c.l.b16 %v669
      %v741 = vunpack.c.l.b16 %v670
      %v742 = vunpack.c.l.b16 %v671
      %v743 = vunpack.c.l.b16 %v672
      %v744 = vunpack.c.l.b16 %v673
      %v745 = vunpack.c.l.b16 %v674
      %v746 = vunpack.c.l.b16 %v675
      %v747 = vunpack.c.l.b16 %v676
      %v748 = vunpack.c.l.b16 %v677
      %v749 = vunpack.c.l.b16 %v678
      %v750 = vunpack.c.l.b16 %v679
      %v751 = vunpack.c.l.b16 %v680
      %v752 = vunpack.c.l.b16 %v681
      %v753 = vunpack.c.l.b16 %v682
      %v754 = vpack.c.b16 %v739, %v738
      %v755 = vpack.c.b16 %v741, %v740
      %v756 = vpack.c.b16 %v743, %v742
      %v757 = vpack.c.b16 %v745, %v744
      %v758 = vpack.c.b16 %v747, %v746
      %v759 = vpack.c.b16 %v749, %v748
      %v760 = vpack.c.b16 %v751, %v750
      %v761 = vpack.c.b16 %v753, %v752
      %770 = vmatpush.bf16.msra.mxu0 %v761
      %771 = vmatpush.bf16.msra.mxu0 %v760
      %772 = vmatpush.bf16.msra.mxu0 %v759
      %773 = vmatpush.bf16.msra.mxu0 %v758
      %774 = vmatpush.bf16.msra.mxu0 %v757
      %775 = vmatpush.bf16.msra.mxu0 %v756
      %776 = vmatpush.bf16.msra.mxu0 %v755
      %777 = vmatpush.bf16.msra.mxu0 %v754
      %778 = vmatmul.bf16.gmra.mxu0 %v710
      %v779 = vpop.f32.mrf.mxu0
      %v780 = vadd.f32 0.0, %v779
      %v781 = vpop.f32.mrf.mxu0
      %v782 = vadd.f32 0.0, %v781
      %783 = vmatmul.bf16.gmra.mxu0 %v712
      %v784 = vpop.f32.mrf.mxu0
      %v785 = vadd.f32 0.0, %v784
      %v786 = vpop.f32.mrf.mxu0
      %v787 = vadd.f32 0.0, %v786
      %788 = vmatmul.bf16.gmra.mxu0 %v714
      %v789 = vpop.f32.mrf.mxu0
      %v790 = vadd.f32 0.0, %v789
      %v791 = vpop.f32.mrf.mxu0
      %v792 = vadd.f32 0.0, %v791
      %793 = vmatmul.bf16.gmra.mxu0 %v716
      %v794 = vpop.f32.mrf.mxu0
      %v795 = vadd.f32 0.0, %v794
      %v796 = vpop.f32.mrf.mxu0
      %v797 = vadd.f32 0.0, %v796
      %798 = vmatmul.bf16.gmra.mxu0 %v715
      %v799 = vpop.f32.mrf.mxu0
      %v800 = vadd.f32 0.0, %v799
      %v801 = vpop.f32.mrf.mxu0
      %v802 = vadd.f32 0.0, %v801
      %803 = vdwg.mxu0
      %v804 = vadd.f32 %v646, %v780
      %v805 = vadd.f32 %v647, %v782
      %v806 = vadd.f32 %v648, %v785
      %v807 = vadd.f32 %v649, %v787
      %v808 = vadd.f32 %v650, %v790
      %v809 = vadd.f32 %v651, %v792
      %v810 = vadd.f32 %v652, %v795
      %v811 = vadd.f32 %v653, %v797
      %v812 = vadd.f32 %v654, %v800
      %v813 = vadd.f32 %v655, %v802
      %v814 = vld [vmem:[%s207 + $0x4] sm:$0xe]
      %v815 = vld [vmem:[%s207 + $0x8] sm:$0xf]
      %v816 = vld [vmem:[%s207 + $0xc] sm:$0xf]
      %v817 = vld [vmem:[%s207 + $0x10] sm:$0xf]
      %v818 = vld [vmem:[%s207 + $0x14] sm:$0xf]
      %v819 = vld [vmem:[%s207 + $0x18] sm:$0xf]
      %v820 = vld [vmem:[%s207 + $0x1c] sm:$0xf]
      %v821 = vld [vmem:[%s207 + $0x20] sm:$0xf]
      %v822 = vld [vmem:[%s207 + $0x24] sm:$0xf]
      %v823 = vld [vmem:[%s207 + $0x28] sm:$0xf]
      %v824 = vld [vmem:[%s207 + $0x2c] sm:$0x1]
      %s825 = scalar_lea.vmem %s1, 256
      %v826 = vld [vmem:[%s825] sm:$0xf]
      %v827 = vld [vmem:[%s825 + $0x4] sm:$0xf]
      %v828 = vld [vmem:[%s825 + $0x8] sm:$0xf]
      %v829 = vld [vmem:[%s825 + $0xc] sm:$0xf]
      %v830 = vld [vmem:[%s825 + $0x10] sm:$0xf]
      %v831 = vld [vmem:[%s825 + $0x14] sm:$0xf]
      %v832 = vld [vmem:[%s825 + $0x18] sm:$0xf]
      %v833 = vld [vmem:[%s825 + $0x1c] sm:$0xf]
      %v834 = vld [vmem:[%s825 + $0x20] sm:$0xf]
      %v835 = vld [vmem:[%s825 + $0x24] sm:$0xf]
      %v836 = vld [vmem:[%s825 + $0x28] sm:$0xf]
      %v837 = vld [vmem:[%s825 + $0x2c] sm:$0xf]
      %v838 = vld [vmem:[%s825 + $0x30] sm:$0xf]
      %v839 = vld [vmem:[%s825 + $0x34] sm:$0xf]
      %v840 = vld [vmem:[%s825 + $0x38] sm:$0xf]
      %v841 = vld [vmem:[%s825 + $0x3c] sm:$0xf]
      %v853 = vunpack.c.l.b16 %v814
      %v854 = vunpack.c.l.b16 %v815
      %v855 = vunpack.c.l.b16 %v816
      %v856 = vunpack.c.l.b16 %v817
      %v857 = vunpack.c.l.b16 %v818
      %v858 = vunpack.c.l.b16 %v819
      %v859 = vunpack.c.l.b16 %v820
      %v860 = vunpack.c.l.b16 %v821
      %v861 = vunpack.c.l.b16 %v822
      %v862 = vunpack.c.l.b16 %v823
      %v863 = vunpack.c.l.b16 %v824
      %v864 = vpack.c.b16 %v854, %v853
      %v865 = vpack.c.b16 %v856, %v855
      %v866 = vpack.c.b16 %v858, %v857
      %v867 = vpack.c.b16 %v860, %v859
      %v868 = vpack.c.b16 %v862, %v861
      %v869 = vpack.c.b16 %v863, %v863
      %vm870 = vsmask.f32 6400
      %v872 = vshrl.u32 %v864, 16
      %v874 = vrot.slane %v872, 1
      %v875 = vshll.u32 %v864, 16
      %v877 = vrot.slane %v875, 2
      %v878 = vor.u32 %v874, %v877
      %v880 = vshrl.u32 %v865, 16
      %v882 = vrot.slane %v880, 1
      %v883 = vshll.u32 %v865, 16
      %v885 = vrot.slane %v883, 2
      %v886 = vor.u32 %v882, %v885
      %v887 = vsel %vm870, %v878, %v886
      %v889 = vshrl.u32 %v866, 16
      %v891 = vrot.slane %v889, 1
      %v892 = vshll.u32 %v866, 16
      %v894 = vrot.slane %v892, 2
      %v895 = vor.u32 %v891, %v894
      %v896 = vsel %vm870, %v886, %v895
      %v898 = vshrl.u32 %v867, 16
      %v900 = vrot.slane %v898, 1
      %v901 = vshll.u32 %v867, 16
      %v903 = vrot.slane %v901, 2
      %v904 = vor.u32 %v900, %v903
      %v905 = vsel %vm870, %v895, %v904
      %v907 = vshrl.u32 %v868, 16
      %v909 = vrot.slane %v907, 1
      %v910 = vshll.u32 %v868, 16
      %v912 = vrot.slane %v910, 2
      %v913 = vor.u32 %v909, %v912
      %v914 = vsel %vm870, %v904, %v913
      %v916 = vshll.u32 %v869, 16
      %v918 = vrot.slane %v916, 2
      %v919 = vsel %vm870, %v913, %v918
      %v941 = vunpack.c.l.b16 %v826
      %v942 = vunpack.c.l.b16 %v827
      %v943 = vunpack.c.l.b16 %v828
      %v944 = vunpack.c.l.b16 %v829
      %v945 = vunpack.c.l.b16 %v830
      %v946 = vunpack.c.l.b16 %v831
      %v947 = vunpack.c.l.b16 %v832
      %v948 = vunpack.c.l.b16 %v833
      %v949 = vunpack.c.l.b16 %v834
      %v950 = vunpack.c.l.b16 %v835
      %v951 = vunpack.c.l.b16 %v836
      %v952 = vunpack.c.l.b16 %v837
      %v953 = vunpack.c.l.b16 %v838
      %v954 = vunpack.c.l.b16 %v839
      %v955 = vunpack.c.l.b16 %v840
      %v956 = vunpack.c.l.b16 %v841
      %v957 = vpack.c.b16 %v942, %v941
      %v958 = vpack.c.b16 %v944, %v943
      %v959 = vpack.c.b16 %v946, %v945
      %v960 = vpack.c.b16 %v948, %v947
      %v961 = vpack.c.b16 %v950, %v949
      %v962 = vpack.c.b16 %v952, %v951
      %v963 = vpack.c.b16 %v954, %v953
      %v964 = vpack.c.b16 %v956, %v955
      %973 = vmatpush.bf16.msra.mxu0 %v964
      %974 = vmatpush.bf16.msra.mxu0 %v963
      %975 = vmatpush.bf16.msra.mxu0 %v962
      %976 = vmatpush.bf16.msra.mxu0 %v961
      %977 = vmatpush.bf16.msra.mxu0 %v960
      %978 = vmatpush.bf16.msra.mxu0 %v959
      %979 = vmatpush.bf16.msra.mxu0 %v958
      %980 = vmatpush.bf16.msra.mxu0 %v957
      %981 = vmatmul.bf16.gmra.mxu0 %v887
      %v982 = vpop.f32.mrf.mxu0
      %v983 = vadd.f32 0.0, %v982
      %v984 = vpop.f32.mrf.mxu0
      %v985 = vadd.f32 0.0, %v984
      %986 = vmatmul.bf16.gmra.mxu0 %v896
      %v987 = vpop.f32.mrf.mxu0
      %v988 = vadd.f32 0.0, %v987
      %v989 = vpop.f32.mrf.mxu0
      %v990 = vadd.f32 0.0, %v989
      %991 = vmatmul.bf16.gmra.mxu0 %v905
      %v992 = vpop.f32.mrf.mxu0
      %v993 = vadd.f32 0.0, %v992
      %v994 = vpop.f32.mrf.mxu0
      %v995 = vadd.f32 0.0, %v994
      %996 = vmatmul.bf16.gmra.mxu0 %v914
      %v997 = vpop.f32.mrf.mxu0
      %v998 = vadd.f32 0.0, %v997
      %v999 = vpop.f32.mrf.mxu0
      %v1000 = vadd.f32 0.0, %v999
      %1001 = vmatmul.bf16.gmra.mxu0 %v919
      %v1002 = vpop.f32.mrf.mxu0
      %v1003 = vadd.f32 0.0, %v1002
      %v1004 = vpop.f32.mrf.mxu0
      %v1005 = vadd.f32 0.0, %v1004
      %1006 = vdwg.mxu0
      %v1007 = vadd.f32 %v804, %v983
      %v1008 = vadd.f32 %v805, %v985
      %v1009 = vadd.f32 %v806, %v988
      %v1010 = vadd.f32 %v807, %v990
      %v1011 = vadd.f32 %v808, %v993
      %v1012 = vadd.f32 %v809, %v995
      %v1013 = vadd.f32 %v810, %v998
      %v1014 = vadd.f32 %v811, %v1000
      %v1015 = vadd.f32 %v812, %v1003
      %v1016 = vadd.f32 %v813, %v1005
      %v1017 = vld [vmem:[%s207 + $0x4] sm:$0xc]
      %s1018 = scalar_lea.vmem %s1, 320
      %v1019 = vld [vmem:[%s1018] sm:$0xf]
      %v1020 = vld [vmem:[%s1018 + $0x4] sm:$0xf]
      %v1021 = vld [vmem:[%s1018 + $0x8] sm:$0xf]
      %v1022 = vld [vmem:[%s1018 + $0xc] sm:$0xf]
      %v1023 = vld [vmem:[%s1018 + $0x10] sm:$0xf]
      %v1024 = vld [vmem:[%s1018 + $0x14] sm:$0xf]
      %v1025 = vld [vmem:[%s1018 + $0x18] sm:$0xf]
      %v1026 = vld [vmem:[%s1018 + $0x1c] sm:$0xf]
      %v1027 = vld [vmem:[%s1018 + $0x20] sm:$0xf]
      %v1028 = vld [vmem:[%s1018 + $0x24] sm:$0xf]
      %v1029 = vld [vmem:[%s1018 + $0x28] sm:$0xf]
      %v1030 = vld [vmem:[%s1018 + $0x2c] sm:$0xf]
      %v1031 = vld [vmem:[%s1018 + $0x30] sm:$0xf]
      %v1032 = vld [vmem:[%s1018 + $0x34] sm:$0xf]
      %v1033 = vld [vmem:[%s1018 + $0x38] sm:$0xf]
      %v1034 = vld [vmem:[%s1018 + $0x3c] sm:$0xf]
      %v1036 = vunpack.c.l.b16 %v1017
      %v1037 = vpack.c.b16 %v854, %v1036
      %vm1038 = vcmask 1045504
      %v1039 = vrot.slane %v1037, 2
      %v1040 = vrot.slane %v865, 2
      %v1041 = vsel %vm1038, %v1039, %v1040
      %v1042 = vrot.slane %v866, 2
      %v1043 = vsel %vm1038, %v1040, %v1042
      %v1044 = vrot.slane %v867, 2
      %v1045 = vsel %vm1038, %v1042, %v1044
      %v1046 = vrot.slane %v868, 2
      %v1047 = vsel %vm1038, %v1044, %v1046
      %v1048 = vrot.slane %v869, 2
      %v1049 = vsel %vm1038, %v1046, %v1048
      %v1071 = vunpack.c.l.b16 %v1019
      %v1072 = vunpack.c.l.b16 %v1020
      %v1073 = vunpack.c.l.b16 %v1021
      %v1074 = vunpack.c.l.b16 %v1022
      %v1075 = vunpack.c.l.b16 %v1023
      %v1076 = vunpack.c.l.b16 %v1024
      %v1077 = vunpack.c.l.b16 %v1025
      %v1078 = vunpack.c.l.b16 %v1026
      %v1079 = vunpack.c.l.b16 %v1027
      %v1080 = vunpack.c.l.b16 %v1028
      %v1081 = vunpack.c.l.b16 %v1029
      %v1082 = vunpack.c.l.b16 %v1030
      %v1083 = vunpack.c.l.b16 %v1031
      %v1084 = vunpack.c.l.b16 %v1032
      %v1085 = vunpack.c.l.b16 %v1033
      %v1086 = vunpack.c.l.b16 %v1034
      %v1087 = vpack.c.b16 %v1072, %v1071
      %v1088 = vpack.c.b16 %v1074, %v1073
      %v1089 = vpack.c.b16 %v1076, %v1075
      %v1090 = vpack.c.b16 %v1078, %v1077
      %v1091 = vpack.c.b16 %v1080, %v1079
      %v1092 = vpack.c.b16 %v1082, %v1081
      %v1093 = vpack.c.b16 %v1084, %v1083
      %v1094 = vpack.c.b16 %v1086, %v1085
      %1103 = vmatpush.bf16.msra.mxu0 %v1094
      %1104 = vmatpush.bf16.msra.mxu0 %v1093
      %1105 = vmatpush.bf16.msra.mxu0 %v1092
      %1106 = vmatpush.bf16.msra.mxu0 %v1091
      %1107 = vmatpush.bf16.msra.mxu0 %v1090
      %1108 = vmatpush.bf16.msra.mxu0 %v1089
      %1109 = vmatpush.bf16.msra.mxu0 %v1088
      %1110 = vmatpush.bf16.msra.mxu0 %v1087
      %1111 = vmatmul.bf16.gmra.mxu0 %v1041
      %v1112 = vpop.f32.mrf.mxu0
      %v1113 = vadd.f32 0.0, %v1112
      %v1114 = vpop.f32.mrf.mxu0
      %v1115 = vadd.f32 0.0, %v1114
      %1116 = vmatmul.bf16.gmra.mxu0 %v1043
      %v1117 = vpop.f32.mrf.mxu0
      %v1118 = vadd.f32 0.0, %v1117
      %v1119 = vpop.f32.mrf.mxu0
      %v1120 = vadd.f32 0.0, %v1119
      %1121 = vmatmul.bf16.gmra.mxu0 %v1045
      %v1122 = vpop.f32.mrf.mxu0
      %v1123 = vadd.f32 0.0, %v1122
      %v1124 = vpop.f32.mrf.mxu0
      %v1125 = vadd.f32 0.0, %v1124
      %1126 = vmatmul.bf16.gmra.mxu0 %v1047
      %v1127 = vpop.f32.mrf.mxu0
      %v1128 = vadd.f32 0.0, %v1127
      %v1129 = vpop.f32.mrf.mxu0
      %v1130 = vadd.f32 0.0, %v1129
      %1131 = vmatmul.bf16.gmra.mxu0 %v1049
      %v1132 = vpop.f32.mrf.mxu0
      %v1133 = vadd.f32 0.0, %v1132
      %v1134 = vpop.f32.mrf.mxu0
      %v1135 = vadd.f32 0.0, %v1134
      %1136 = vdwg.mxu0
      %v1137 = vadd.f32 %v1007, %v1113
      %v1138 = vadd.f32 %v1008, %v1115
      %v1139 = vadd.f32 %v1009, %v1118
      %v1140 = vadd.f32 %v1010, %v1120
      %v1141 = vadd.f32 %v1011, %v1123
      %v1142 = vadd.f32 %v1012, %v1125
      %v1143 = vadd.f32 %v1013, %v1128
      %v1144 = vadd.f32 %v1014, %v1130
      %v1145 = vadd.f32 %v1015, %v1133
      %v1146 = vadd.f32 %v1016, %v1135
      %v1147 = vld [vmem:[%s207 + $0x8] sm:$0xc]
      %v1148 = vld [vmem:[%s207 + $0xc] sm:$0xf]
      %v1149 = vld [vmem:[%s207 + $0x10] sm:$0xf]
      %v1150 = vld [vmem:[%s207 + $0x14] sm:$0xf]
      %v1151 = vld [vmem:[%s207 + $0x18] sm:$0xf]
      %v1152 = vld [vmem:[%s207 + $0x1c] sm:$0xf]
      %v1153 = vld [vmem:[%s207 + $0x20] sm:$0xf]
      %v1154 = vld [vmem:[%s207 + $0x24] sm:$0xf]
      %v1155 = vld [vmem:[%s207 + $0x28] sm:$0xf]
      %v1156 = vld [vmem:[%s207 + $0x2c] sm:$0xf]
      %v1157 = vld [vmem:[%s207 + $0x30] sm:$0x1]
      %s1158 = scalar_lea.vmem %s1, 384
      %v1159 = vld [vmem:[%s1158] sm:$0xf]
      %v1160 = vld [vmem:[%s1158 + $0x4] sm:$0xf]
      %v1161 = vld [vmem:[%s1158 + $0x8] sm:$0xf]
      %v1162 = vld [vmem:[%s1158 + $0xc] sm:$0xf]
      %v1163 = vld [vmem:[%s1158 + $0x10] sm:$0xf]
      %v1164 = vld [vmem:[%s1158 + $0x14] sm:$0xf]
      %v1165 = vld [vmem:[%s1158 + $0x18] sm:$0xf]
      %v1166 = vld [vmem:[%s1158 + $0x1c] sm:$0xf]
      %v1167 = vld [vmem:[%s1158 + $0x20] sm:$0xf]
      %v1168 = vld [vmem:[%s1158 + $0x24] sm:$0xf]
      %v1169 = vld [vmem:[%s1158 + $0x28] sm:$0xf]
      %v1170 = vld [vmem:[%s1158 + $0x2c] sm:$0xf]
      %v1171 = vld [vmem:[%s1158 + $0x30] sm:$0xf]
      %v1172 = vld [vmem:[%s1158 + $0x34] sm:$0xf]
      %v1173 = vld [vmem:[%s1158 + $0x38] sm:$0xf]
      %v1174 = vld [vmem:[%s1158 + $0x3c] sm:$0xf]
      %v1186 = vunpack.c.l.b16 %v1147
      %v1187 = vunpack.c.l.b16 %v1148
      %v1188 = vunpack.c.l.b16 %v1149
      %v1189 = vunpack.c.l.b16 %v1150
      %v1190 = vunpack.c.l.b16 %v1151
      %v1191 = vunpack.c.l.b16 %v1152
      %v1192 = vunpack.c.l.b16 %v1153
      %v1193 = vunpack.c.l.b16 %v1154
      %v1194 = vunpack.c.l.b16 %v1155
      %v1195 = vunpack.c.l.b16 %v1156
      %v1196 = vunpack.c.l.b16 %v1157
      %v1197 = vpack.c.b16 %v1187, %v1186
      %v1198 = vpack.c.b16 %v1189, %v1188
      %v1199 = vpack.c.b16 %v1191, %v1190
      %v1200 = vpack.c.b16 %v1193, %v1192
      %v1201 = vpack.c.b16 %v1195, %v1194
      %v1202 = vpack.c.b16 %v1196, %v1196
      %v1203 = vrot.slane %v1197, 2
      %v1204 = vrot.slane %v1198, 2
      %v1205 = vsel %vm1038, %v1203, %v1204
      %v1206 = vrot.slane %v1199, 2
      %v1207 = vsel %vm1038, %v1204, %v1206
      %v1208 = vrot.slane %v1200, 2
      %v1209 = vsel %vm1038, %v1206, %v1208
      %v1210 = vrot.slane %v1201, 2
      %v1211 = vsel %vm1038, %v1208, %v1210
      %v1212 = vrot.slane %v1202, 2
      %v1213 = vsel %vm1038, %v1210, %v1212
      %v1235 = vunpack.c.l.b16 %v1159
      %v1236 = vunpack.c.l.b16 %v1160
      %v1237 = vunpack.c.l.b16 %v1161
      %v1238 = vunpack.c.l.b16 %v1162
      %v1239 = vunpack.c.l.b16 %v1163
      %v1240 = vunpack.c.l.b16 %v1164
      %v1241 = vunpack.c.l.b16 %v1165
      %v1242 = vunpack.c.l.b16 %v1166
      %v1243 = vunpack.c.l.b16 %v1167
      %v1244 = vunpack.c.l.b16 %v1168
      %v1245 = vunpack.c.l.b16 %v1169
      %v1246 = vunpack.c.l.b16 %v1170
      %v1247 = vunpack.c.l.b16 %v1171
      %v1248 = vunpack.c.l.b16 %v1172
      %v1249 = vunpack.c.l.b16 %v1173
      %v1250 = vunpack.c.l.b16 %v1174
      %v1251 = vpack.c.b16 %v1236, %v1235
      %v1252 = vpack.c.b16 %v1238, %v1237
      %v1253 = vpack.c.b16 %v1240, %v1239
      %v1254 = vpack.c.b16 %v1242, %v1241
      %v1255 = vpack.c.b16 %v1244, %v1243
      %v1256 = vpack.c.b16 %v1246, %v1245
      %v1257 = vpack.c.b16 %v1248, %v1247
      %v1258 = vpack.c.b16 %v1250, %v1249
      %1267 = vmatpush.bf16.msra.mxu0 %v1258
      %1268 = vmatpush.bf16.msra.mxu0 %v1257
      %1269 = vmatpush.bf16.msra.mxu0 %v1256
      %1270 = vmatpush.bf16.msra.mxu0 %v1255
      %1271 = vmatpush.bf16.msra.mxu0 %v1254
      %1272 = vmatpush.bf16.msra.mxu0 %v1253
      %1273 = vmatpush.bf16.msra.mxu0 %v1252
      %1274 = vmatpush.bf16.msra.mxu0 %v1251
      %1275 = vmatmul.bf16.gmra.mxu0 %v1205
      %v1276 = vpop.f32.mrf.mxu0
      %v1277 = vadd.f32 0.0, %v1276
      %v1278 = vpop.f32.mrf.mxu0
      %v1279 = vadd.f32 0.0, %v1278
      %1280 = vmatmul.bf16.gmra.mxu0 %v1207
      %v1281 = vpop.f32.mrf.mxu0
      %v1282 = vadd.f32 0.0, %v1281
      %v1283 = vpop.f32.mrf.mxu0
      %v1284 = vadd.f32 0.0, %v1283
      %1285 = vmatmul.bf16.gmra.mxu0 %v1209
      %v1286 = vpop.f32.mrf.mxu0
      %v1287 = vadd.f32 0.0, %v1286
      %v1288 = vpop.f32.mrf.mxu0
      %v1289 = vadd.f32 0.0, %v1288
      %1290 = vmatmul.bf16.gmra.mxu0 %v1211
      %v1291 = vpop.f32.mrf.mxu0
      %v1292 = vadd.f32 0.0, %v1291
      %v1293 = vpop.f32.mrf.mxu0
      %v1294 = vadd.f32 0.0, %v1293
      %1295 = vmatmul.bf16.gmra.mxu0 %v1213
      %v1296 = vpop.f32.mrf.mxu0
      %v1297 = vadd.f32 0.0, %v1296
      %v1298 = vpop.f32.mrf.mxu0
      %v1299 = vadd.f32 0.0, %v1298
      %1300 = vdwg.mxu0
      %v1301 = vadd.f32 %v1137, %v1277
      %v1302 = vadd.f32 %v1138, %v1279
      %v1303 = vadd.f32 %v1139, %v1282
      %v1304 = vadd.f32 %v1140, %v1284
      %v1305 = vadd.f32 %v1141, %v1287
      %v1306 = vadd.f32 %v1142, %v1289
      %v1307 = vadd.f32 %v1143, %v1292
      %v1308 = vadd.f32 %v1144, %v1294
      %v1309 = vadd.f32 %v1145, %v1297
      %v1310 = vadd.f32 %v1146, %v1299
      %v1311 = vld [vmem:[%s207 + $0x30] sm:$0x3]
      %s1312 = scalar_lea.vmem %s1, 448
      %v1313 = vld [vmem:[%s1312] sm:$0xf]
      %v1314 = vld [vmem:[%s1312 + $0x4] sm:$0xf]
      %v1315 = vld [vmem:[%s1312 + $0x8] sm:$0xf]
      %v1316 = vld [vmem:[%s1312 + $0xc] sm:$0xf]
      %v1317 = vld [vmem:[%s1312 + $0x10] sm:$0xf]
      %v1318 = vld [vmem:[%s1312 + $0x14] sm:$0xf]
      %v1319 = vld [vmem:[%s1312 + $0x18] sm:$0xf]
      %v1320 = vld [vmem:[%s1312 + $0x1c] sm:$0xf]
      %v1321 = vld [vmem:[%s1312 + $0x20] sm:$0xf]
      %v1322 = vld [vmem:[%s1312 + $0x24] sm:$0xf]
      %v1323 = vld [vmem:[%s1312 + $0x28] sm:$0xf]
      %v1324 = vld [vmem:[%s1312 + $0x2c] sm:$0xf]
      %v1325 = vld [vmem:[%s1312 + $0x30] sm:$0xf]
      %v1326 = vld [vmem:[%s1312 + $0x34] sm:$0xf]
      %v1327 = vld [vmem:[%s1312 + $0x38] sm:$0xf]
      %v1328 = vld [vmem:[%s1312 + $0x3c] sm:$0xf]
      %v1330 = vunpack.c.l.b16 %v1311
      %v1331 = vpack.c.b16 %v1330, %v1330
      %vm1332 = vsmask.f32 5376
      %v1334 = vshrl.u32 %v1197, 16
      %v1336 = vrot.slane %v1334, 2
      %v1337 = vshll.u32 %v1197, 16
      %v1339 = vrot.slane %v1337, 3
      %v1340 = vor.u32 %v1336, %v1339
      %v1342 = vshrl.u32 %v1198, 16
      %v1344 = vrot.slane %v1342, 2
      %v1345 = vshll.u32 %v1198, 16
      %v1347 = vrot.slane %v1345, 3
      %v1348 = vor.u32 %v1344, %v1347
      %v1349 = vsel %vm1332, %v1340, %v1348
      %v1351 = vshrl.u32 %v1199, 16
      %v1353 = vrot.slane %v1351, 2
      %v1354 = vshll.u32 %v1199, 16
      %v1356 = vrot.slane %v1354, 3
      %v1357 = vor.u32 %v1353, %v1356
      %v1358 = vsel %vm1332, %v1348, %v1357
      %v1360 = vshrl.u32 %v1200, 16
      %v1362 = vrot.slane %v1360, 2
      %v1363 = vshll.u32 %v1200, 16
      %v1365 = vrot.slane %v1363, 3
      %v1366 = vor.u32 %v1362, %v1365
      %v1367 = vsel %vm1332, %v1357, %v1366
      %v1369 = vshrl.u32 %v1201, 16
      %v1371 = vrot.slane %v1369, 2
      %v1372 = vshll.u32 %v1201, 16
      %v1374 = vrot.slane %v1372, 3
      %v1375 = vor.u32 %v1371, %v1374
      %v1376 = vsel %vm1332, %v1366, %v1375
      %v1378 = vshrl.u32 %v1331, 16
      %v1380 = vrot.slane %v1378, 2
      %v1381 = vshll.u32 %v1331, 16
      %v1383 = vrot.slane %v1381, 3
      %v1384 = vor.u32 %v1380, %v1383
      %v1385 = vsel %vm1332, %v1375, %v1384
      %v1407 = vunpack.c.l.b16 %v1313
      %v1408 = vunpack.c.l.b16 %v1314
      %v1409 = vunpack.c.l.b16 %v1315
      %v1410 = vunpack.c.l.b16 %v1316
      %v1411 = vunpack.c.l.b16 %v1317
      %v1412 = vunpack.c.l.b16 %v1318
      %v1413 = vunpack.c.l.b16 %v1319
      %v1414 = vunpack.c.l.b16 %v1320
      %v1415 = vunpack.c.l.b16 %v1321
      %v1416 = vunpack.c.l.b16 %v1322
      %v1417 = vunpack.c.l.b16 %v1323
      %v1418 = vunpack.c.l.b16 %v1324
      %v1419 = vunpack.c.l.b16 %v1325
      %v1420 = vunpack.c.l.b16 %v1326
      %v1421 = vunpack.c.l.b16 %v1327
      %v1422 = vunpack.c.l.b16 %v1328
      %v1423 = vpack.c.b16 %v1408, %v1407
      %v1424 = vpack.c.b16 %v1410, %v1409
      %v1425 = vpack.c.b16 %v1412, %v1411
      %v1426 = vpack.c.b16 %v1414, %v1413
      %v1427 = vpack.c.b16 %v1416, %v1415
      %v1428 = vpack.c.b16 %v1418, %v1417
      %v1429 = vpack.c.b16 %v1420, %v1419
      %v1430 = vpack.c.b16 %v1422, %v1421
      %1439 = vmatpush.bf16.msra.mxu0 %v1430
      %1440 = vmatpush.bf16.msra.mxu0 %v1429
      %1441 = vmatpush.bf16.msra.mxu0 %v1428
      %1442 = vmatpush.bf16.msra.mxu0 %v1427
      %1443 = vmatpush.bf16.msra.mxu0 %v1426
      %1444 = vmatpush.bf16.msra.mxu0 %v1425
      %1445 = vmatpush.bf16.msra.mxu0 %v1424
      %1446 = vmatpush.bf16.msra.mxu0 %v1423
      %1447 = vmatmul.bf16.gmra.mxu0 %v1349
      %v1448 = vpop.f32.mrf.mxu0
      %v1449 = vadd.f32 0.0, %v1448
      %v1450 = vpop.f32.mrf.mxu0
      %v1451 = vadd.f32 0.0, %v1450
      %1452 = vmatmul.bf16.gmra.mxu0 %v1358
      %v1453 = vpop.f32.mrf.mxu0
      %v1454 = vadd.f32 0.0, %v1453
      %v1455 = vpop.f32.mrf.mxu0
      %v1456 = vadd.f32 0.0, %v1455
      %1457 = vmatmul.bf16.gmra.mxu0 %v1367
      %v1458 = vpop.f32.mrf.mxu0
      %v1459 = vadd.f32 0.0, %v1458
      %v1460 = vpop.f32.mrf.mxu0
      %v1461 = vadd.f32 0.0, %v1460
      %1462 = vmatmul.bf16.gmra.mxu0 %v1376
      %v1463 = vpop.f32.mrf.mxu0
      %v1464 = vadd.f32 0.0, %v1463
      %v1465 = vpop.f32.mrf.mxu0
      %v1466 = vadd.f32 0.0, %v1465
      %1467 = vmatmul.bf16.gmra.mxu0 %v1385
      %v1468 = vpop.f32.mrf.mxu0
      %v1469 = vadd.f32 0.0, %v1468
      %v1470 = vpop.f32.mrf.mxu0
      %v1471 = vadd.f32 0.0, %v1470
      %1472 = vdwg.mxu0
      %v1473 = vadd.f32 %v1301, %v1449
      %v1474 = vadd.f32 %v1302, %v1451
      %v1475 = vadd.f32 %v1303, %v1454
      %v1476 = vadd.f32 %v1304, %v1456
      %v1477 = vadd.f32 %v1305, %v1459
      %v1478 = vadd.f32 %v1306, %v1461
      %v1479 = vadd.f32 %v1307, %v1464
      %v1480 = vadd.f32 %v1308, %v1466
      %v1481 = vadd.f32 %v1309, %v1469
      %v1482 = vadd.f32 %v1310, %v1471
      %v1483 = vld [vmem:[%s207 + $0x8] sm:$0x8]
      %s1484 = scalar_lea.vmem %s1, 512
      %v1485 = vld [vmem:[%s1484] sm:$0xf]
      %v1486 = vld [vmem:[%s1484 + $0x4] sm:$0xf]
      %v1487 = vld [vmem:[%s1484 + $0x8] sm:$0xf]
      %v1488 = vld [vmem:[%s1484 + $0xc] sm:$0xf]
      %v1489 = vld [vmem:[%s1484 + $0x10] sm:$0xf]
      %v1490 = vld [vmem:[%s1484 + $0x14] sm:$0xf]
      %v1491 = vld [vmem:[%s1484 + $0x18] sm:$0xf]
      %v1492 = vld [vmem:[%s1484 + $0x1c] sm:$0xf]
      %v1493 = vld [vmem:[%s1484 + $0x20] sm:$0xf]
      %v1494 = vld [vmem:[%s1484 + $0x24] sm:$0xf]
      %v1495 = vld [vmem:[%s1484 + $0x28] sm:$0xf]
      %v1496 = vld [vmem:[%s1484 + $0x2c] sm:$0xf]
      %v1497 = vld [vmem:[%s1484 + $0x30] sm:$0xf]
      %v1498 = vld [vmem:[%s1484 + $0x34] sm:$0xf]
      %v1499 = vld [vmem:[%s1484 + $0x38] sm:$0xf]
      %v1500 = vld [vmem:[%s1484 + $0x3c] sm:$0xf]
      %v1502 = vunpack.c.l.b16 %v1483
      %v1503 = vpack.c.b16 %v1187, %v1502
      %vm1504 = vcmask 1044480
      %v1505 = vrot.slane %v1503, 3
      %v1506 = vrot.slane %v1198, 3
      %v1507 = vsel %vm1504, %v1505, %v1506
      %v1508 = vrot.slane %v1199, 3
      %v1509 = vsel %vm1504, %v1506, %v1508
      %v1510 = vrot.slane %v1200, 3
      %v1511 = vsel %vm1504, %v1508, %v1510
      %v1512 = vrot.slane %v1201, 3
      %v1513 = vsel %vm1504, %v1510, %v1512
      %v1514 = vrot.slane %v1331, 3
      %v1515 = vsel %vm1504, %v1512, %v1514
      %v1537 = vunpack.c.l.b16 %v1485
      %v1538 = vunpack.c.l.b16 %v1486
      %v1539 = vunpack.c.l.b16 %v1487
      %v1540 = vunpack.c.l.b16 %v1488
      %v1541 = vunpack.c.l.b16 %v1489
      %v1542 = vunpack.c.l.b16 %v1490
      %v1543 = vunpack.c.l.b16 %v1491
      %v1544 = vunpack.c.l.b16 %v1492
      %v1545 = vunpack.c.l.b16 %v1493
      %v1546 = vunpack.c.l.b16 %v1494
      %v1547 = vunpack.c.l.b16 %v1495
      %v1548 = vunpack.c.l.b16 %v1496
      %v1549 = vunpack.c.l.b16 %v1497
      %v1550 = vunpack.c.l.b16 %v1498
      %v1551 = vunpack.c.l.b16 %v1499
      %v1552 = vunpack.c.l.b16 %v1500
      %v1553 = vpack.c.b16 %v1538, %v1537
      %v1554 = vpack.c.b16 %v1540, %v1539
      %v1555 = vpack.c.b16 %v1542, %v1541
      %v1556 = vpack.c.b16 %v1544, %v1543
      %v1557 = vpack.c.b16 %v1546, %v1545
      %v1558 = vpack.c.b16 %v1548, %v1547
      %v1559 = vpack.c.b16 %v1550, %v1549
      %v1560 = vpack.c.b16 %v1552, %v1551
      %1569 = vmatpush.bf16.msra.mxu0 %v1560
      %1570 = vmatpush.bf16.msra.mxu0 %v1559
      %1571 = vmatpush.bf16.msra.mxu0 %v1558
      %1572 = vmatpush.bf16.msra.mxu0 %v1557
      %1573 = vmatpush.bf16.msra.mxu0 %v1556
      %1574 = vmatpush.bf16.msra.mxu0 %v1555
      %1575 = vmatpush.bf16.msra.mxu0 %v1554
      %1576 = vmatpush.bf16.msra.mxu0 %v1553
      %1577 = vmatmul.bf16.gmra.mxu0 %v1507
      %v1578 = vpop.f32.mrf.mxu0
      %v1579 = vadd.f32 0.0, %v1578
      %v1580 = vpop.f32.mrf.mxu0
      %v1581 = vadd.f32 0.0, %v1580
      %1582 = vmatmul.bf16.gmra.mxu0 %v1509
      %v1583 = vpop.f32.mrf.mxu0
      %v1584 = vadd.f32 0.0, %v1583
      %v1585 = vpop.f32.mrf.mxu0
      %v1586 = vadd.f32 0.0, %v1585
      %1587 = vmatmul.bf16.gmra.mxu0 %v1511
      %v1588 = vpop.f32.mrf.mxu0
      %v1589 = vadd.f32 0.0, %v1588
      %v1590 = vpop.f32.mrf.mxu0
      %v1591 = vadd.f32 0.0, %v1590
      %1592 = vmatmul.bf16.gmra.mxu0 %v1513
      %v1593 = vpop.f32.mrf.mxu0
      %v1594 = vadd.f32 0.0, %v1593
      %v1595 = vpop.f32.mrf.mxu0
      %v1596 = vadd.f32 0.0, %v1595
      %1597 = vmatmul.bf16.gmra.mxu0 %v1515
      %v1598 = vpop.f32.mrf.mxu0
      %v1599 = vadd.f32 0.0, %v1598
      %v1600 = vpop.f32.mrf.mxu0
      %v1601 = vadd.f32 0.0, %v1600
      %1602 = vdwg.mxu0
      %v1603 = vadd.f32 %v1473, %v1579
      %v1604 = vadd.f32 %v1474, %v1581
      %v1605 = vadd.f32 %v1475, %v1584
      %v1606 = vadd.f32 %v1476, %v1586
      %v1607 = vadd.f32 %v1477, %v1589
      %v1608 = vadd.f32 %v1478, %v1591
      %v1609 = vadd.f32 %v1479, %v1594
      %v1610 = vadd.f32 %v1480, %v1596
      %v1611 = vadd.f32 %v1481, %v1599
      %v1612 = vadd.f32 %v1482, %v1601
      %v1613 = vld [vmem:[%s212] sm:$0xff]
      %v1614 = vadd.f32 %v1603, %v1613
      %1615 = vst [vmem:[%s217] sm:$0xff] %v1614
      %s1616 = scalar_lea.vmem %s212, 8
      %v1617 = vld [vmem:[%s1616] sm:$0xff]
      %v1619 = vrot.slane %v1617, 6
      %v1621 = vadd.f32 %v1604, %v1619
      %v1622 = vadd.f32 %v1605, %v1619
      %s1623 = scalar_lea.vmem %s217, 8
      %1624 = vst [vmem:[%s1623 - $0x2] sm:$0xfc] %v1621
      %1625 = vst [vmem:[%s1623 + $0x6] sm:$0x3] %v1622
      %s1626 = scalar_lea.vmem %s212, 16
      %v1627 = vld [vmem:[%s1626] sm:$0xff]
      %v1629 = vrot.slane %v1627, 4
      %v1631 = vadd.f32 %v1605, %v1629
      %v1632 = vadd.f32 %v1606, %v1629
      %s1633 = scalar_lea.vmem %s217, 16
      %1634 = vst [vmem:[%s1633 - $0x4] sm:$0xf0] %v1631
      %1635 = vst [vmem:[%s1633 + $0x4] sm:$0xf] %v1632
      %s1636 = scalar_lea.vmem %s212, 24
      %v1637 = vld [vmem:[%s1636] sm:$0xff]
      %v1639 = vrot.slane %v1637, 2
      %v1641 = vadd.f32 %v1606, %v1639
      %v1642 = vadd.f32 %v1607, %v1639
      %s1643 = scalar_lea.vmem %s217, 24
      %1644 = vst [vmem:[%s1643 - $0x6] sm:$0xc0] %v1641
      %1645 = vst [vmem:[%s1643 + $0x2] sm:$0x3f] %v1642
      %s1646 = scalar_lea.vmem %s212, 32
      %v1647 = vld [vmem:[%s1646] sm:$0xff]
      %v1648 = vadd.f32 %v1608, %v1647
      %s1649 = scalar_lea.vmem %s217, 32
      %1650 = vst [vmem:[%s1649] sm:$0xff] %v1648
      %s1651 = scalar_lea.vmem %s212, 40
      %v1652 = vld [vmem:[%s1651] sm:$0xff]
      %v1654 = vrot.slane %v1652, 6
      %v1656 = vadd.f32 %v1609, %v1654
      %v1657 = vadd.f32 %v1610, %v1654
      %s1658 = scalar_lea.vmem %s217, 40
      %1659 = vst [vmem:[%s1658 - $0x2] sm:$0xfc] %v1656
      %1660 = vst [vmem:[%s1658 + $0x6] sm:$0x3] %v1657
      %s1661 = scalar_lea.vmem %s212, 48
      %v1662 = vld [vmem:[%s1661] sm:$0xff]
      %v1664 = vrot.slane %v1662, 4
      %v1666 = vadd.f32 %v1610, %v1664
      %v1667 = vadd.f32 %v1611, %v1664
      %s1668 = scalar_lea.vmem %s217, 48
      %1669 = vst [vmem:[%s1668 - $0x4] sm:$0xf0] %v1666
      %1670 = vst [vmem:[%s1668 + $0x4] sm:$0xf] %v1667
      %s1671 = scalar_lea.vmem %s212, 56
      %v1672 = vld [vmem:[%s1671] sm:$0xff]
      %v1674 = vrot.slane %v1672, 2
      %v1676 = vadd.f32 %v1611, %v1674
      %v1677 = vadd.f32 %v1612, %v1674
      %s1678 = scalar_lea.vmem %s217, 56
      %1679 = vst [vmem:[%s1678 - $0x6] sm:$0xc0] %v1676
      %1680 = vst [vmem:[%s1678 + $0x2] sm:$0x3f] %v1677
      %p1681 = scmp.lt.s32.totalorder %s15, 1
      %s1682 = scalar_select %p1681, %s15, 1
      %s1683 = smul.addr %s1682, 8
      %s1684 = smul.addr %s1683, 8
      %s1685 = scalar_lea.vmem %s4, %s1684
      // Predicated region
      $region37: #{_lambda_.7} parent=35 // pred_check
        %p1686 = pneg %p127
      $region38: #{_lambda_.7} parent=35 // pred_check_branch
        %1688 = sbr.rel (%p1686) target = $region40
      $region39: #{_lambda_.7} parent=35 // pred_region
        _
      $region40: #{_lambda_.7} parent=35 // pred_fallthru
        _
    $region36: #{_lambda_.7} parent=5 // pred_fallthru
      _
    %p1689 = scmp.le.s32.totalorder 2, %s10
    // Predicated region
    $region41: #{_lambda_.7} parent=5 // pred_check
      %p1690 = pneg %p1689
    $region42: #{_lambda_.7} parent=5 // pred_check_branch
      %1692 = sbr.rel (%p1690) target = $region44
    $region43: #{_lambda_.7} parent=5 // pred_region
      %s1693 = ssub.s32 %s10, 2
      // Predicated region
      $region45: #{_lambda_.7} parent=43 // pred_check
        %p1694 = pneg %p133
      $region46: #{_lambda_.7} parent=43 // pred_check_branch
        %1696 = sbr.rel (%p1694) target = $region48
      $region47: #{_lambda_.7} parent=43 // pred_region
        %p1697 = scmp.lt.s32.totalorder %s16, 1
        %s1698 = scalar_select %p1697, %s16, 1
        %s1699 = smul.addr %s1698, 8
        %s1700 = smul.addr %s1699, 8
        %s1701 = scalar_lea.vmem %s4, %s1700
      $region48: #{_lambda_.7} parent=43 // pred_fallthru
        _
    $region44: #{_lambda_.7} parent=5 // pred_fallthru
      _
  $region6: #{_lambda_.7} parent=0 // loop_footer
    %s14 = sadd.s32 1, %s10
  $region7: #{_lambda_.7} parent=0 // loop_footer_branch
    %9 = sbr.rel target = $region3
  $region8: #{_lambda_.7} parent=0 // loop_exit
    _

</llo_original>
